<compile_context>
chip_gen: v7x
topology: tpu7x:2x2x1
jax: 0.10.0
libtpu: 0.0.40
codegen_flags: <defaults>
</compile_context>

<pallas_src>
import math
import functools

import jax
import jax.numpy as jnp
from jax.experimental import pallas as pl
from jax.experimental.pallas import tpu as pltpu

# --- small synthetic DeiT config -------------------------------------------
PATCH = 16
EMBED_DIM = 32
NUM_HEADS = 4
HEAD_DIM = EMBED_DIM // NUM_HEADS
DEPTH = 2
MLP_HIDDEN = 4 * EMBED_DIM
LN_EPS = 1e-6


# --- in-kernel helpers -------------------------------------------------------
def _gelu(x):
    # TODO(synk): PyTorch nn.GELU default is exact erf; tanh approximation used
    # here for robust Mosaic lowering (EUP tanh), ~1e-3 deviation.
    c = math.sqrt(2.0 / math.pi)
    return 0.5 * x * (1.0 + jnp.tanh(c * (x + 0.044715 * x * x * x)))


def _layernorm(v, g, b):
    mu = jnp.mean(v, axis=-1, keepdims=True)
    var = jnp.mean((v - mu) ** 2, axis=-1, keepdims=True)
    return (v - mu) * jax.lax.rsqrt(var + LN_EPS) * g + b


# --- fused kernel: one batch element per grid step ---------------------------
def _backbone_kernel(
        patches_ref, add_ref, patch_w_ref,
        ln1_g_ref, ln1_b_ref, wqkv_ref, bqkv_ref, wproj_ref, bproj_ref,
        ln2_g_ref, ln2_b_ref, w1_ref, b1_ref, w2_ref, b2_ref,
        lnf_g_ref, lnf_b_ref, o_ref,
        *, seq, s_pad, dim, num_heads, head_dim, depth):
    bf16 = jnp.bfloat16
    f32 = jnp.float32

    # --- patch embedding + [cls, dist] tokens + positional embedding --------
    # patches rows are pre-padded/aligned in the wrapper; `add` carries
    # cls/dist (+pos) on rows 0/1, patch pos-embed + conv bias on patch rows,
    # and zeros on the padding rows.
    x = jnp.dot(patches_ref[0], patch_w_ref[...],
                preferred_element_type=f32) + add_ref[...]            # (S_pad, D)

    # additive key mask: padded token columns are excluded from softmax
    col = jax.lax.broadcasted_iota(jnp.int32, (1, 1, s_pad), 2)
    key_mask = jnp.where(col < seq, 0.0, -1e30).astype(f32)           # (1,1,S_pad)

    def split_heads(t, base):
        # (S_pad, 3D) -> (H, S_pad, hd); static lane slices + leading-axis stack
        return jnp.stack(
            [t[:, base + h * head_dim: base + (h + 1) * head_dim]
             for h in range(num_heads)], axis=0)

    # --- DEPTH pre-norm transformer blocks (statically unrolled, small L) ---
    for l in range(depth):
        # multi-head self-attention: fused QKV + fused output projection
        h = _layernorm(x, ln1_g_ref[l], ln1_b_ref[l])
        qkv = (jnp.dot(h.astype(bf16), wqkv_ref[l],
                       preferred_element_type=f32) + bqkv_ref[l])     # (S_pad, 3D)
        # 1/sqrt(head_dim) is pre-folded into the Q third of wqkv/bqkv.
        q = split_heads(qkv, 0).astype(bf16)                          # (H,S,hd)
        k = split_heads(qkv, dim).astype(bf16)
        v = split_heads(qkv, 2 * dim).astype(bf16)

        s = jnp.einsum('hqd,hkd->hqk', q, k,
                       preferred_element_type=f32) + key_mask         # (H,S,S)
        s = s - jnp.max(s, axis=-1, keepdims=True)
        p = jnp.exp(s)
        p = p * pl.reciprocal(jnp.sum(p, axis=-1, keepdims=True), approx=True)
        o = jnp.einsum('hqk,hkd->hqd', p.astype(bf16), v,
                       preferred_element_type=f32)                    # (H,S,hd)
        o = jnp.concatenate([o[hh] for hh in range(num_heads)],
                            axis=-1)                                  # (S_pad,D)
        x = x + (jnp.dot(o.astype(bf16), wproj_ref[l],
                         preferred_element_type=f32) + bproj_ref[l])

        # GELU MLP
        h2 = _layernorm(x, ln2_g_ref[l], ln2_b_ref[l])
        m = jnp.dot(h2.astype(bf16), w1_ref[l],
                    preferred_element_type=f32) + b1_ref[l]
        m = _gelu(m)
        m = jnp.dot(m.astype(bf16), w2_ref[l],
                    preferred_element_type=f32) + b2_ref[l]
        x = x + m

    # --- final LayerNorm -----------------------------------------------------
    o_ref[0] = _layernorm(x, lnf_g_ref[...], lnf_b_ref[...])


# --- glue: patch extraction, params, packing, forward ------------------------
def extract_patches(x, p):
    # NCHW -> (B, N, C*p*p), flattening order (C, p, p) matching
    # Conv2d weight.reshape(D, -1).
    bsz, c, h, w = x.shape
    nh, nw = h // p, w // p
    x = x.reshape(bsz, c, nh, p, nw, p)
    x = x.transpose(0, 2, 4, 1, 3, 5)
    return x.reshape(bsz, nh * nw, c * p * p)


def init_params(key, img_size, in_chans):
    n_patches = (img_size // PATCH) ** 2
    patch_dim = in_chans * PATCH * PATCH
    d, h3, mh = EMBED_DIM, 3 * EMBED_DIM, MLP_HIDDEN

    def norm(k, shape, scale=0.02):
        return scale * jax.random.normal(k, shape, dtype=jnp.float32)

    keys = jax.random.split(key, 4 + DEPTH)
    blocks = []
    for i in range(DEPTH):
        bk = jax.random.split(keys[4 + i], 4)
        blocks.append({
            'ln1_g': jnp.ones((1, d), jnp.float32),
            'ln1_b': jnp.zeros((1, d), jnp.float32),
            'wqkv': norm(bk[0], (d, h3)),
            'bqkv': jnp.zeros((1, h3), jnp.float32),
            'wproj': norm(bk[1], (d, d)),
            'bproj': jnp.zeros((1, d), jnp.float32),
            'ln2_g': jnp.ones((1, d), jnp.float32),
            'ln2_b': jnp.zeros((1, d), jnp.float32),
            'w1': norm(bk[2], (d, mh)),
            'b1': jnp.zeros((1, mh), jnp.float32),
            'w2': norm(bk[3], (mh, d)),
            'b2': jnp.zeros((1, d), jnp.float32),
        })
    return {
        'patch_w': norm(keys[0], (patch_dim, d)),
        'patch_b': jnp.zeros((1, d), jnp.float32),
        'cls': norm(keys[1], (1, 1, d)),
        'dist': norm(keys[2], (1, 1, d)),
        'pos': norm(keys[3], (1, n_patches + 2, d)),
        'ln_g': jnp.ones((1, d), jnp.float32),
        'ln_b': jnp.zeros((1, d), jnp.float32),
        'blocks': blocks,
    }


def pack_params(params, n_patches, s_pad):
    """Stack per-block weights on a leading DEPTH axis, keep QKV fused
    (scale folded into the Q third), build the aligned additive token tensor,
    and cast matmul weights to bf16."""
    d = EMBED_DIM
    scale = 1.0 / math.sqrt(HEAD_DIM)
    bf16 = jnp.bfloat16

    def stack(name):
        return jnp.stack([blk[name] for blk in params['blocks']], axis=0)

    wqkv = stack('wqkv')            # (L, d, 3d)
    bqkv = stack('bqkv')            # (L, 1, 3d)
    qkv_scale = jnp.concatenate(
        [jnp.full((d,), scale, jnp.float32), jnp.ones((2 * d,), jnp.float32)])
    wqkv = wqkv * qkv_scale[None, None, :]
    bqkv = bqkv * qkv_scale[None, None, :]

    # additive tensor: row0 = cls+pos0, row1 = dist+pos1,
    # rows 2..2+N-1 = patch pos + conv bias, padding rows = 0.
    add = jnp.zeros((s_pad, d), jnp.float32)
    add = add.at[0].set(params['cls'][0, 0] + params['pos'][0, 0])
    add = add.at[1].set(params['dist'][0, 0] + params['pos'][0, 1])
    add = add.at[2:2 + n_patches].set(params['pos'][0, 2:] + params['patch_b'])

    return {
        'patch_w': params['patch_w'].astype(bf16),
        'add_tok': add,
        'ln1_g': stack('ln1_g'), 'ln1_b': stack('ln1_b'),
        'wqkv': wqkv.astype(bf16), 'bqkv': bqkv,
        'wproj': stack('wproj').astype(bf16), 'bproj': stack('bproj'),
        'ln2_g': stack('ln2_g'), 'ln2_b': stack('ln2_b'),
        'w1': stack('w1').astype(bf16), 'b1': stack('b1'),
        'w2': stack('w2').astype(bf16), 'b2': stack('b2'),
        'lnf_g': params['ln_g'], 'lnf_b': params['ln_b'],
    }


def transformer_backbone_forward(x, packed, n_patches, s_pad):
    # x: NCHW float32.  Returns DeiT encoder output tokens (B, N+2, D);
    # the downstream STARK head consumes these features.
    bsz = x.shape[0]
    patches = extract_patches(x, PATCH)                    # (B, N, P)
    _, n, p_dim = patches.shape
    seq = n + 2
    # aligned, pre-padded token layout: rows [0,1]=prefix slots (zero patch
    # input), [2:2+N]=patches, remaining rows = padding.
    patches_pad = jnp.zeros((bsz, s_pad, p_dim), jnp.float32)
    patches_pad = patches_pad.at[:, 2:2 + n].set(patches)
    patches_pad = patches_pad.astype(jnp.bfloat16)         # cast in wrapper

    kernel = functools.partial(
        _backbone_kernel, seq=seq, s_pad=s_pad, dim=EMBED_DIM,
        num_heads=NUM_HEADS, head_dim=HEAD_DIM, depth=DEPTH)

    def w_spec(arr):
        nd = arr.ndim
        return pl.BlockSpec(arr.shape, lambda b, _nd=nd: (0,) * _nd)

    out = pl.pallas_call(
        kernel,
        grid=(bsz,),
        in_specs=[
            pl.BlockSpec((1, s_pad, p_dim), lambda b: (b, 0, 0)),
            w_spec(packed['add_tok']), w_spec(packed['patch_w']),
            w_spec(packed['ln1_g']), w_spec(packed['ln1_b']),
            w_spec(packed['wqkv']), w_spec(packed['bqkv']),
            w_spec(packed['wproj']), w_spec(packed['bproj']),
            w_spec(packed['ln2_g']), w_spec(packed['ln2_b']),
            w_spec(packed['w1']), w_spec(packed['b1']),
            w_spec(packed['w2']), w_spec(packed['b2']),
            w_spec(packed['lnf_g']), w_spec(packed['lnf_b']),
        ],
        out_specs=pl.BlockSpec((1, s_pad, EMBED_DIM), lambda b: (b, 0, 0)),
        out_shape=jax.ShapeDtypeStruct((bsz, s_pad, EMBED_DIM), jnp.float32),
        compiler_params=pltpu.CompilerParams(
            dimension_semantics=("parallel",)),
    )(patches_pad,
      packed['add_tok'], packed['patch_w'],
      packed['ln1_g'], packed['ln1_b'], packed['wqkv'], packed['bqkv'],
      packed['wproj'], packed['bproj'],
      packed['ln2_g'], packed['ln2_b'],
      packed['w1'], packed['b1'], packed['w2'], packed['b2'],
      packed['lnf_g'], packed['lnf_b'])
    return out[:, :seq, :]


if __name__ == "__main__":
    key = jax.random.PRNGKey(0)
    kx, kp = jax.random.split(key)
    B, C, H, W = 2, 3, 32, 32          # small image: 2x2 = 4 patches of 16x16
    x = jax.random.normal(kx, (B, C, H, W), dtype=jnp.float32)

    n_patches = (H // PATCH) * (W // PATCH)
    seq = n_patches + 2
    s_pad = max(8, ((seq + 7) // 8) * 8)     # sublane-aligned sequence length

    params = init_params(kp, img_size=H, in_chans=C)
    packed = pack_params(params, n_patches, s_pad)

    out = transformer_backbone_forward(x, packed, n_patches, s_pad)
    jax.block_until_ready(out)
    assert out.shape == (B, seq, EMBED_DIM)
    assert bool(jnp.all(jnp.isfinite(out)))
    print("KERNEL_OK")
</pallas_src>

<mosaic_0001>
module attributes {stable_mosaic.version = 11 : i64} {
  func.func @_backbone_kernel(%arg0: i32, %arg1: memref<1x8x768xbf16, #tpu.memory_space<vmem>>, %arg2: memref<8x32xf32, #tpu.memory_space<vmem>>, %arg3: memref<768x32xbf16, #tpu.memory_space<vmem>>, %arg4: memref<2x1x32xf32, #tpu.memory_space<vmem>>, %arg5: memref<2x1x32xf32, #tpu.memory_space<vmem>>, %arg6: memref<2x32x96xbf16, #tpu.memory_space<vmem>>, %arg7: memref<2x1x96xf32, #tpu.memory_space<vmem>>, %arg8: memref<2x32x32xbf16, #tpu.memory_space<vmem>>, %arg9: memref<2x1x32xf32, #tpu.memory_space<vmem>>, %arg10: memref<2x1x32xf32, #tpu.memory_space<vmem>>, %arg11: memref<2x1x32xf32, #tpu.memory_space<vmem>>, %arg12: memref<2x32x128xbf16, #tpu.memory_space<vmem>>, %arg13: memref<2x1x128xf32, #tpu.memory_space<vmem>>, %arg14: memref<2x128x32xbf16, #tpu.memory_space<vmem>>, %arg15: memref<2x1x32xf32, #tpu.memory_space<vmem>>, %arg16: memref<1x32xf32, #tpu.memory_space<vmem>>, %arg17: memref<1x32xf32, #tpu.memory_space<vmem>>, %arg18: memref<1x8x32xf32, #tpu.memory_space<vmem>>) attributes {dimension_semantics = [#tpu.dimension_semantics<parallel>], iteration_bounds = array<i64: 2>, scalar_prefetch = 0 : i64, scratch_operands = 0 : i64, tpu.core_type = #tpu.core_type<tc>, window_params = [{transform_indices = @transform_0, window_bounds = array<i64: 1, 8, 768>}, {pipeline_mode = #tpu.pipeline_mode<synchronous>, transform_indices = @transform_1, window_bounds = array<i64: 8, 32>}, {pipeline_mode = #tpu.pipeline_mode<synchronous>, transform_indices = @transform_2, window_bounds = array<i64: 768, 32>}, {pipeline_mode = #tpu.pipeline_mode<synchronous>, transform_indices = @transform_3, window_bounds = array<i64: 2, 1, 32>}, {pipeline_mode = #tpu.pipeline_mode<synchronous>, transform_indices = @transform_4, window_bounds = array<i64: 2, 1, 32>}, {pipeline_mode = #tpu.pipeline_mode<synchronous>, transform_indices = @transform_5, window_bounds = array<i64: 2, 32, 96>}, {pipeline_mode = #tpu.pipeline_mode<synchronous>, transform_indices = @transform_6, window_bounds = array<i64: 2, 1, 96>}, {pipeline_mode = #tpu.pipeline_mode<synchronous>, transform_indices = @transform_7, window_bounds = array<i64: 2, 32, 32>}, {pipeline_mode = #tpu.pipeline_mode<synchronous>, transform_indices = @transform_8, window_bounds = array<i64: 2, 1, 32>}, {pipeline_mode = #tpu.pipeline_mode<synchronous>, transform_indices = @transform_9, window_bounds = array<i64: 2, 1, 32>}, {pipeline_mode = #tpu.pipeline_mode<synchronous>, transform_indices = @transform_10, window_bounds = array<i64: 2, 1, 32>}, {pipeline_mode = #tpu.pipeline_mode<synchronous>, transform_indices = @transform_11, window_bounds = array<i64: 2, 32, 128>}, {pipeline_mode = #tpu.pipeline_mode<synchronous>, transform_indices = @transform_12, window_bounds = array<i64: 2, 1, 128>}, {pipeline_mode = #tpu.pipeline_mode<synchronous>, transform_indices = @transform_13, window_bounds = array<i64: 2, 128, 32>}, {pipeline_mode = #tpu.pipeline_mode<synchronous>, transform_indices = @transform_14, window_bounds = array<i64: 2, 1, 32>}, {pipeline_mode = #tpu.pipeline_mode<synchronous>, transform_indices = @transform_15, window_bounds = array<i64: 1, 32>}, {pipeline_mode = #tpu.pipeline_mode<synchronous>, transform_indices = @transform_16, window_bounds = array<i64: 1, 32>}, {transform_indices = @transform_17, window_bounds = array<i64: 1, 8, 32>}]} {
    %c0 = arith.constant 0 : index
    %c0_0 = arith.constant 0 : index
    %c0_1 = arith.constant 0 : index
    %0 = vector.load %arg1[%c0, %c0_0, %c0_1] : memref<1x8x768xbf16, #tpu.memory_space<vmem>>, vector<1x8x768xbf16>
    %1 = vector.shape_cast %0 : vector<1x8x768xbf16> to vector<8x768xbf16>
    %c0_2 = arith.constant 0 : index
    %c0_3 = arith.constant 0 : index
    %2 = vector.load %arg3[%c0_2, %c0_3] : memref<768x32xbf16, #tpu.memory_space<vmem>>, vector<768x32xbf16>
    %cst = arith.constant dense<0.000000e+00> : vector<8x32xf32>
    %3 = tpu.matmul %1, %2, %cst {dimension_numbers = #tpu.dot_dimension_numbers<[1], [0], [0], [1], [0, 0, 1, 1], [], []>} : vector<8x768xbf16>, vector<768x32xbf16>, vector<8x32xf32> -> vector<8x32xf32>
    %c0_4 = arith.constant 0 : index
    %c0_5 = arith.constant 0 : index
    %4 = vector.load %arg2[%c0_4, %c0_5] : memref<8x32xf32, #tpu.memory_space<vmem>>, vector<8x32xf32>
    %5 = arith.addf %3, %4 : vector<8x32xf32>
    %6 = tpu.iota {dimensions = array<i32: 2>} : vector<1x1x8xi32>
    %c6_i32 = arith.constant 6 : i32
    %7 = vector.broadcast %c6_i32 : i32 to vector<1x1x8xi32>
    %8 = arith.cmpi slt, %6, %7 : vector<1x1x8xi32>
    %cst_6 = arith.constant 0.000000e+00 : f32
    %cst_7 = arith.constant -1.000000e+30 : f32
    %9 = vector.broadcast %cst_6 : f32 to vector<1x1x8xf32>
    %10 = vector.broadcast %cst_7 : f32 to vector<1x1x8xf32>
    %11 = arith.select %8, %9, %10 : vector<1x1x8xi1>, vector<1x1x8xf32>
    %c0_8 = arith.constant 0 : index
    %c0_9 = arith.constant 0 : index
    %c0_10 = arith.constant 0 : index
    %12 = vector.load %arg4[%c0_8, %c0_9, %c0_10] : memref<2x1x32xf32, #tpu.memory_space<vmem>>, vector<1x1x32xf32>
    %13 = vector.shape_cast %12 : vector<1x1x32xf32> to vector<1x32xf32>
    %c0_11 = arith.constant 0 : index
    %c0_12 = arith.constant 0 : index
    %c0_13 = arith.constant 0 : index
    %14 = vector.load %arg5[%c0_11, %c0_12, %c0_13] : memref<2x1x32xf32, #tpu.memory_space<vmem>>, vector<1x1x32xf32>
    %15 = vector.shape_cast %14 : vector<1x1x32xf32> to vector<1x32xf32>
    %cst_14 = arith.constant dense<0.000000e+00> : vector<8xf32>
    %16 = vector.multi_reduction <add>, %5, %cst_14 [1] : vector<8x32xf32> to vector<8xf32>
    %17 = vector.shape_cast %16 : vector<8xf32> to vector<8x1xf32>
    %cst_15 = arith.constant 3.200000e+01 : f32
    %18 = vector.broadcast %cst_15 : f32 to vector<8x1xf32>
    %19 = arith.divf %17, %18 : vector<8x1xf32>
    %20 = vector.broadcast %19 : vector<8x1xf32> to vector<8x32xf32>
    %21 = arith.subf %5, %20 : vector<8x32xf32>
    %22 = arith.mulf %21, %21 : vector<8x32xf32>
    %cst_16 = arith.constant dense<0.000000e+00> : vector<8xf32>
    %23 = vector.multi_reduction <add>, %22, %cst_16 [1] : vector<8x32xf32> to vector<8xf32>
    %24 = vector.shape_cast %23 : vector<8xf32> to vector<8x1xf32>
    %cst_17 = arith.constant 3.200000e+01 : f32
    %25 = vector.broadcast %cst_17 : f32 to vector<8x1xf32>
    %26 = arith.divf %24, %25 : vector<8x1xf32>
    %27 = vector.broadcast %19 : vector<8x1xf32> to vector<8x32xf32>
    %28 = arith.subf %5, %27 : vector<8x32xf32>
    %cst_18 = arith.constant 9.99999997E-7 : f32
    %29 = vector.broadcast %cst_18 : f32 to vector<8x1xf32>
    %30 = arith.addf %26, %29 : vector<8x1xf32>
    %31 = math.rsqrt %30 : vector<8x1xf32>
    %32 = vector.broadcast %31 : vector<8x1xf32> to vector<8x32xf32>
    %33 = arith.mulf %28, %32 : vector<8x32xf32>
    %34 = vector.broadcast %13 : vector<1x32xf32> to vector<8x32xf32>
    %35 = arith.mulf %33, %34 : vector<8x32xf32>
    %36 = vector.broadcast %15 : vector<1x32xf32> to vector<8x32xf32>
    %37 = arith.addf %35, %36 : vector<8x32xf32>
    %38 = arith.truncf %37 : vector<8x32xf32> to vector<8x32xbf16>
    %c0_19 = arith.constant 0 : index
    %c0_20 = arith.constant 0 : index
    %c0_21 = arith.constant 0 : index
    %39 = vector.load %arg6[%c0_19, %c0_20, %c0_21] : memref<2x32x96xbf16, #tpu.memory_space<vmem>>, vector<1x32x96xbf16>
    %40 = vector.shape_cast %39 : vector<1x32x96xbf16> to vector<32x96xbf16>
    %cst_22 = arith.constant dense<0.000000e+00> : vector<8x96xf32>
    %41 = tpu.matmul %38, %40, %cst_22 {dimension_numbers = #tpu.dot_dimension_numbers<[1], [0], [0], [1], [0, 0, 1, 1], [], []>} : vector<8x32xbf16>, vector<32x96xbf16>, vector<8x96xf32> -> vector<8x96xf32>
    %c0_23 = arith.constant 0 : index
    %c0_24 = arith.constant 0 : index
    %c0_25 = arith.constant 0 : index
    %42 = vector.load %arg7[%c0_23, %c0_24, %c0_25] : memref<2x1x96xf32, #tpu.memory_space<vmem>>, vector<1x1x96xf32>
    %43 = vector.shape_cast %42 : vector<1x1x96xf32> to vector<1x96xf32>
    %44 = vector.broadcast %43 : vector<1x96xf32> to vector<8x96xf32>
    %45 = arith.addf %41, %44 : vector<8x96xf32>
    %46 = vector.extract_strided_slice %45 {offsets = [0, 0], sizes = [8, 8], strides = [1, 1]} : vector<8x96xf32> to vector<8x8xf32>
    %47 = vector.extract_strided_slice %45 {offsets = [0, 8], sizes = [8, 8], strides = [1, 1]} : vector<8x96xf32> to vector<8x8xf32>
    %48 = vector.extract_strided_slice %45 {offsets = [0, 16], sizes = [8, 8], strides = [1, 1]} : vector<8x96xf32> to vector<8x8xf32>
    %49 = vector.extract_strided_slice %45 {offsets = [0, 24], sizes = [8, 8], strides = [1, 1]} : vector<8x96xf32> to vector<8x8xf32>
    %50 = vector.shape_cast %46 : vector<8x8xf32> to vector<1x8x8xf32>
    %51 = vector.shape_cast %47 : vector<8x8xf32> to vector<1x8x8xf32>
    %52 = vector.shape_cast %48 : vector<8x8xf32> to vector<1x8x8xf32>
    %53 = vector.shape_cast %49 : vector<8x8xf32> to vector<1x8x8xf32>
    %54 = tpu.concatenate %50, %51, %52, %53 in 0 : vector<1x8x8xf32>, vector<1x8x8xf32>, vector<1x8x8xf32>, vector<1x8x8xf32> -> vector<4x8x8xf32>
    %55 = arith.truncf %54 : vector<4x8x8xf32> to vector<4x8x8xbf16>
    %56 = vector.extract_strided_slice %45 {offsets = [0, 32], sizes = [8, 8], strides = [1, 1]} : vector<8x96xf32> to vector<8x8xf32>
    %57 = vector.extract_strided_slice %45 {offsets = [0, 40], sizes = [8, 8], strides = [1, 1]} : vector<8x96xf32> to vector<8x8xf32>
    %58 = vector.extract_strided_slice %45 {offsets = [0, 48], sizes = [8, 8], strides = [1, 1]} : vector<8x96xf32> to vector<8x8xf32>
    %59 = vector.extract_strided_slice %45 {offsets = [0, 56], sizes = [8, 8], strides = [1, 1]} : vector<8x96xf32> to vector<8x8xf32>
    %60 = vector.shape_cast %56 : vector<8x8xf32> to vector<1x8x8xf32>
    %61 = vector.shape_cast %57 : vector<8x8xf32> to vector<1x8x8xf32>
    %62 = vector.shape_cast %58 : vector<8x8xf32> to vector<1x8x8xf32>
    %63 = vector.shape_cast %59 : vector<8x8xf32> to vector<1x8x8xf32>
    %64 = tpu.concatenate %60, %61, %62, %63 in 0 : vector<1x8x8xf32>, vector<1x8x8xf32>, vector<1x8x8xf32>, vector<1x8x8xf32> -> vector<4x8x8xf32>
    %65 = arith.truncf %64 : vector<4x8x8xf32> to vector<4x8x8xbf16>
    %66 = vector.extract_strided_slice %45 {offsets = [0, 64], sizes = [8, 8], strides = [1, 1]} : vector<8x96xf32> to vector<8x8xf32>
    %67 = vector.extract_strided_slice %45 {offsets = [0, 72], sizes = [8, 8], strides = [1, 1]} : vector<8x96xf32> to vector<8x8xf32>
    %68 = vector.extract_strided_slice %45 {offsets = [0, 80], sizes = [8, 8], strides = [1, 1]} : vector<8x96xf32> to vector<8x8xf32>
    %69 = vector.extract_strided_slice %45 {offsets = [0, 88], sizes = [8, 8], strides = [1, 1]} : vector<8x96xf32> to vector<8x8xf32>
    %70 = vector.shape_cast %66 : vector<8x8xf32> to vector<1x8x8xf32>
    %71 = vector.shape_cast %67 : vector<8x8xf32> to vector<1x8x8xf32>
    %72 = vector.shape_cast %68 : vector<8x8xf32> to vector<1x8x8xf32>
    %73 = vector.shape_cast %69 : vector<8x8xf32> to vector<1x8x8xf32>
    %74 = tpu.concatenate %70, %71, %72, %73 in 0 : vector<1x8x8xf32>, vector<1x8x8xf32>, vector<1x8x8xf32>, vector<1x8x8xf32> -> vector<4x8x8xf32>
    %75 = arith.truncf %74 : vector<4x8x8xf32> to vector<4x8x8xbf16>
    "tpu.trace_start"() <{level = 10 : i32, message = "hqd,hkd->hqk"}> : () -> ()
    %cst_26 = arith.constant dense<0.000000e+00> : vector<4x8x8xf32>
    %76 = tpu.matmul %55, %65, %cst_26 {dimension_numbers = #tpu.dot_dimension_numbers<[2], [2], [1], [1], [0, 0, 0, 1, 1, 1], [0], [0]>} : vector<4x8x8xbf16>, vector<4x8x8xbf16>, vector<4x8x8xf32> -> vector<4x8x8xf32>
    "tpu.trace_stop"() : () -> ()
    %77 = vector.broadcast %11 : vector<1x1x8xf32> to vector<4x8x8xf32>
    %78 = arith.addf %76, %77 : vector<4x8x8xf32>
    %cst_27 = arith.constant dense<0xFF800000> : vector<4x8xf32>
    %79 = vector.multi_reduction <maximumf>, %78, %cst_27 [2] : vector<4x8x8xf32> to vector<4x8xf32>
    %80 = vector.shape_cast %79 : vector<4x8xf32> to vector<4x8x1xf32>
    %81 = vector.broadcast %80 : vector<4x8x1xf32> to vector<4x8x8xf32>
    %82 = arith.subf %78, %81 : vector<4x8x8xf32>
    %83 = math.exp %82 : vector<4x8x8xf32>
    %cst_28 = arith.constant dense<0.000000e+00> : vector<4x8xf32>
    %84 = vector.multi_reduction <add>, %83, %cst_28 [2] : vector<4x8x8xf32> to vector<4x8xf32>
    %85 = vector.shape_cast %84 : vector<4x8xf32> to vector<4x8x1xf32>
    %86 = tpu.reciprocal %85 {approx = true} : vector<4x8x1xf32> -> vector<4x8x1xf32>
    %87 = vector.broadcast %86 : vector<4x8x1xf32> to vector<4x8x8xf32>
    %88 = arith.mulf %83, %87 : vector<4x8x8xf32>
    %89 = arith.truncf %88 : vector<4x8x8xf32> to vector<4x8x8xbf16>
    "tpu.trace_start"() <{level = 10 : i32, message = "hqk,hkd->hqd"}> : () -> ()
    %cst_29 = arith.constant dense<0.000000e+00> : vector<4x8x8xf32>
    %90 = tpu.matmul %89, %75, %cst_29 {dimension_numbers = #tpu.dot_dimension_numbers<[2], [1], [1], [2], [0, 0, 0, 1, 1, 2], [0], [0]>} : vector<4x8x8xbf16>, vector<4x8x8xbf16>, vector<4x8x8xf32> -> vector<4x8x8xf32>
    "tpu.trace_stop"() : () -> ()
    %91 = vector.extract_strided_slice %90 {offsets = [0, 0, 0], sizes = [1, 8, 8], strides = [1, 1, 1]} : vector<4x8x8xf32> to vector<1x8x8xf32>
    %92 = vector.shape_cast %91 : vector<1x8x8xf32> to vector<8x8xf32>
    %93 = vector.extract_strided_slice %90 {offsets = [1, 0, 0], sizes = [1, 8, 8], strides = [1, 1, 1]} : vector<4x8x8xf32> to vector<1x8x8xf32>
    %94 = vector.shape_cast %93 : vector<1x8x8xf32> to vector<8x8xf32>
    %95 = vector.extract_strided_slice %90 {offsets = [2, 0, 0], sizes = [1, 8, 8], strides = [1, 1, 1]} : vector<4x8x8xf32> to vector<1x8x8xf32>
    %96 = vector.shape_cast %95 : vector<1x8x8xf32> to vector<8x8xf32>
    %97 = vector.extract_strided_slice %90 {offsets = [3, 0, 0], sizes = [1, 8, 8], strides = [1, 1, 1]} : vector<4x8x8xf32> to vector<1x8x8xf32>
    %98 = vector.shape_cast %97 : vector<1x8x8xf32> to vector<8x8xf32>
    %99 = tpu.concatenate %92, %94, %96, %98 in 1 : vector<8x8xf32>, vector<8x8xf32>, vector<8x8xf32>, vector<8x8xf32> -> vector<8x32xf32>
    %100 = arith.truncf %99 : vector<8x32xf32> to vector<8x32xbf16>
    %c0_30 = arith.constant 0 : index
    %c0_31 = arith.constant 0 : index
    %c0_32 = arith.constant 0 : index
    %101 = vector.load %arg8[%c0_30, %c0_31, %c0_32] : memref<2x32x32xbf16, #tpu.memory_space<vmem>>, vector<1x32x32xbf16>
    %102 = vector.shape_cast %101 : vector<1x32x32xbf16> to vector<32x32xbf16>
    %cst_33 = arith.constant dense<0.000000e+00> : vector<8x32xf32>
    %103 = tpu.matmul %100, %102, %cst_33 {dimension_numbers = #tpu.dot_dimension_numbers<[1], [0], [0], [1], [0, 0, 1, 1], [], []>} : vector<8x32xbf16>, vector<32x32xbf16>, vector<8x32xf32> -> vector<8x32xf32>
    %c0_34 = arith.constant 0 : index
    %c0_35 = arith.constant 0 : index
    %c0_36 = arith.constant 0 : index
    %104 = vector.load %arg9[%c0_34, %c0_35, %c0_36] : memref<2x1x32xf32, #tpu.memory_space<vmem>>, vector<1x1x32xf32>
    %105 = vector.shape_cast %104 : vector<1x1x32xf32> to vector<1x32xf32>
    %106 = vector.broadcast %105 : vector<1x32xf32> to vector<8x32xf32>
    %107 = arith.addf %103, %106 : vector<8x32xf32>
    %108 = arith.addf %5, %107 : vector<8x32xf32>
    %c0_37 = arith.constant 0 : index
    %c0_38 = arith.constant 0 : index
    %c0_39 = arith.constant 0 : index
    %109 = vector.load %arg10[%c0_37, %c0_38, %c0_39] : memref<2x1x32xf32, #tpu.memory_space<vmem>>, vector<1x1x32xf32>
    %110 = vector.shape_cast %109 : vector<1x1x32xf32> to vector<1x32xf32>
    %c0_40 = arith.constant 0 : index
    %c0_41 = arith.constant 0 : index
    %c0_42 = arith.constant 0 : index
    %111 = vector.load %arg11[%c0_40, %c0_41, %c0_42] : memref<2x1x32xf32, #tpu.memory_space<vmem>>, vector<1x1x32xf32>
    %112 = vector.shape_cast %111 : vector<1x1x32xf32> to vector<1x32xf32>
    %cst_43 = arith.constant dense<0.000000e+00> : vector<8xf32>
    %113 = vector.multi_reduction <add>, %108, %cst_43 [1] : vector<8x32xf32> to vector<8xf32>
    %114 = vector.shape_cast %113 : vector<8xf32> to vector<8x1xf32>
    %cst_44 = arith.constant 3.200000e+01 : f32
    %115 = vector.broadcast %cst_44 : f32 to vector<8x1xf32>
    %116 = arith.divf %114, %115 : vector<8x1xf32>
    %117 = vector.broadcast %116 : vector<8x1xf32> to vector<8x32xf32>
    %118 = arith.subf %108, %117 : vector<8x32xf32>
    %119 = arith.mulf %118, %118 : vector<8x32xf32>
    %cst_45 = arith.constant dense<0.000000e+00> : vector<8xf32>
    %120 = vector.multi_reduction <add>, %119, %cst_45 [1] : vector<8x32xf32> to vector<8xf32>
    %121 = vector.shape_cast %120 : vector<8xf32> to vector<8x1xf32>
    %cst_46 = arith.constant 3.200000e+01 : f32
    %122 = vector.broadcast %cst_46 : f32 to vector<8x1xf32>
    %123 = arith.divf %121, %122 : vector<8x1xf32>
    %124 = vector.broadcast %116 : vector<8x1xf32> to vector<8x32xf32>
    %125 = arith.subf %108, %124 : vector<8x32xf32>
    %cst_47 = arith.constant 9.99999997E-7 : f32
    %126 = vector.broadcast %cst_47 : f32 to vector<8x1xf32>
    %127 = arith.addf %123, %126 : vector<8x1xf32>
    %128 = math.rsqrt %127 : vector<8x1xf32>
    %129 = vector.broadcast %128 : vector<8x1xf32> to vector<8x32xf32>
    %130 = arith.mulf %125, %129 : vector<8x32xf32>
    %131 = vector.broadcast %110 : vector<1x32xf32> to vector<8x32xf32>
    %132 = arith.mulf %130, %131 : vector<8x32xf32>
    %133 = vector.broadcast %112 : vector<1x32xf32> to vector<8x32xf32>
    %134 = arith.addf %132, %133 : vector<8x32xf32>
    %135 = arith.truncf %134 : vector<8x32xf32> to vector<8x32xbf16>
    %c0_48 = arith.constant 0 : index
    %c0_49 = arith.constant 0 : index
    %c0_50 = arith.constant 0 : index
    %136 = vector.load %arg12[%c0_48, %c0_49, %c0_50] : memref<2x32x128xbf16, #tpu.memory_space<vmem>>, vector<1x32x128xbf16>
    %137 = vector.shape_cast %136 : vector<1x32x128xbf16> to vector<32x128xbf16>
    %cst_51 = arith.constant dense<0.000000e+00> : vector<8x128xf32>
    %138 = tpu.matmul %135, %137, %cst_51 {dimension_numbers = #tpu.dot_dimension_numbers<[1], [0], [0], [1], [0, 0, 1, 1], [], []>} : vector<8x32xbf16>, vector<32x128xbf16>, vector<8x128xf32> -> vector<8x128xf32>
    %c0_52 = arith.constant 0 : index
    %c0_53 = arith.constant 0 : index
    %c0_54 = arith.constant 0 : index
    %139 = vector.load %arg13[%c0_52, %c0_53, %c0_54] : memref<2x1x128xf32, #tpu.memory_space<vmem>>, vector<1x1x128xf32>
    %140 = vector.shape_cast %139 : vector<1x1x128xf32> to vector<1x128xf32>
    %141 = vector.broadcast %140 : vector<1x128xf32> to vector<8x128xf32>
    %142 = arith.addf %138, %141 : vector<8x128xf32>
    %cst_55 = arith.constant 5.000000e-01 : f32
    %143 = vector.broadcast %cst_55 : f32 to vector<8x128xf32>
    %144 = arith.mulf %143, %142 : vector<8x128xf32>
    %cst_56 = arith.constant 4.471500e-02 : f32
    %145 = vector.broadcast %cst_56 : f32 to vector<8x128xf32>
    %146 = arith.mulf %145, %142 : vector<8x128xf32>
    %147 = arith.mulf %146, %142 : vector<8x128xf32>
    %148 = arith.mulf %147, %142 : vector<8x128xf32>
    %149 = arith.addf %142, %148 : vector<8x128xf32>
    %cst_57 = arith.constant 0.797884583 : f32
    %150 = vector.broadcast %cst_57 : f32 to vector<8x128xf32>
    %151 = arith.mulf %150, %149 : vector<8x128xf32>
    %152 = math.tanh %151 : vector<8x128xf32>
    %cst_58 = arith.constant 1.000000e+00 : f32
    %153 = vector.broadcast %cst_58 : f32 to vector<8x128xf32>
    %154 = arith.addf %153, %152 : vector<8x128xf32>
    %155 = arith.mulf %144, %154 : vector<8x128xf32>
    %156 = arith.truncf %155 : vector<8x128xf32> to vector<8x128xbf16>
    %c0_59 = arith.constant 0 : index
    %c0_60 = arith.constant 0 : index
    %c0_61 = arith.constant 0 : index
    %157 = vector.load %arg14[%c0_59, %c0_60, %c0_61] : memref<2x128x32xbf16, #tpu.memory_space<vmem>>, vector<1x128x32xbf16>
    %158 = vector.shape_cast %157 : vector<1x128x32xbf16> to vector<128x32xbf16>
    %cst_62 = arith.constant dense<0.000000e+00> : vector<8x32xf32>
    %159 = tpu.matmul %156, %158, %cst_62 {dimension_numbers = #tpu.dot_dimension_numbers<[1], [0], [0], [1], [0, 0, 1, 1], [], []>} : vector<8x128xbf16>, vector<128x32xbf16>, vector<8x32xf32> -> vector<8x32xf32>
    %c0_63 = arith.constant 0 : index
    %c0_64 = arith.constant 0 : index
    %c0_65 = arith.constant 0 : index
    %160 = vector.load %arg15[%c0_63, %c0_64, %c0_65] : memref<2x1x32xf32, #tpu.memory_space<vmem>>, vector<1x1x32xf32>
    %161 = vector.shape_cast %160 : vector<1x1x32xf32> to vector<1x32xf32>
    %162 = vector.broadcast %161 : vector<1x32xf32> to vector<8x32xf32>
    %163 = arith.addf %159, %162 : vector<8x32xf32>
    %164 = arith.addf %108, %163 : vector<8x32xf32>
    %c1 = arith.constant 1 : index
    %c0_66 = arith.constant 0 : index
    %c0_67 = arith.constant 0 : index
    %165 = vector.load %arg4[%c1, %c0_66, %c0_67] : memref<2x1x32xf32, #tpu.memory_space<vmem>>, vector<1x1x32xf32>
    %166 = vector.shape_cast %165 : vector<1x1x32xf32> to vector<1x32xf32>
    %c1_68 = arith.constant 1 : index
    %c0_69 = arith.constant 0 : index
    %c0_70 = arith.constant 0 : index
    %167 = vector.load %arg5[%c1_68, %c0_69, %c0_70] : memref<2x1x32xf32, #tpu.memory_space<vmem>>, vector<1x1x32xf32>
    %168 = vector.shape_cast %167 : vector<1x1x32xf32> to vector<1x32xf32>
    %cst_71 = arith.constant dense<0.000000e+00> : vector<8xf32>
    %169 = vector.multi_reduction <add>, %164, %cst_71 [1] : vector<8x32xf32> to vector<8xf32>
    %170 = vector.shape_cast %169 : vector<8xf32> to vector<8x1xf32>
    %cst_72 = arith.constant 3.200000e+01 : f32
    %171 = vector.broadcast %cst_72 : f32 to vector<8x1xf32>
    %172 = arith.divf %170, %171 : vector<8x1xf32>
    %173 = vector.broadcast %172 : vector<8x1xf32> to vector<8x32xf32>
    %174 = arith.subf %164, %173 : vector<8x32xf32>
    %175 = arith.mulf %174, %174 : vector<8x32xf32>
    %cst_73 = arith.constant dense<0.000000e+00> : vector<8xf32>
    %176 = vector.multi_reduction <add>, %175, %cst_73 [1] : vector<8x32xf32> to vector<8xf32>
    %177 = vector.shape_cast %176 : vector<8xf32> to vector<8x1xf32>
    %cst_74 = arith.constant 3.200000e+01 : f32
    %178 = vector.broadcast %cst_74 : f32 to vector<8x1xf32>
    %179 = arith.divf %177, %178 : vector<8x1xf32>
    %180 = vector.broadcast %172 : vector<8x1xf32> to vector<8x32xf32>
    %181 = arith.subf %164, %180 : vector<8x32xf32>
    %cst_75 = arith.constant 9.99999997E-7 : f32
    %182 = vector.broadcast %cst_75 : f32 to vector<8x1xf32>
    %183 = arith.addf %179, %182 : vector<8x1xf32>
    %184 = math.rsqrt %183 : vector<8x1xf32>
    %185 = vector.broadcast %184 : vector<8x1xf32> to vector<8x32xf32>
    %186 = arith.mulf %181, %185 : vector<8x32xf32>
    %187 = vector.broadcast %166 : vector<1x32xf32> to vector<8x32xf32>
    %188 = arith.mulf %186, %187 : vector<8x32xf32>
    %189 = vector.broadcast %168 : vector<1x32xf32> to vector<8x32xf32>
    %190 = arith.addf %188, %189 : vector<8x32xf32>
    %191 = arith.truncf %190 : vector<8x32xf32> to vector<8x32xbf16>
    %c1_76 = arith.constant 1 : index
    %c0_77 = arith.constant 0 : index
    %c0_78 = arith.constant 0 : index
    %192 = vector.load %arg6[%c1_76, %c0_77, %c0_78] : memref<2x32x96xbf16, #tpu.memory_space<vmem>>, vector<1x32x96xbf16>
    %193 = vector.shape_cast %192 : vector<1x32x96xbf16> to vector<32x96xbf16>
    %cst_79 = arith.constant dense<0.000000e+00> : vector<8x96xf32>
    %194 = tpu.matmul %191, %193, %cst_79 {dimension_numbers = #tpu.dot_dimension_numbers<[1], [0], [0], [1], [0, 0, 1, 1], [], []>} : vector<8x32xbf16>, vector<32x96xbf16>, vector<8x96xf32> -> vector<8x96xf32>
    %c1_80 = arith.constant 1 : index
    %c0_81 = arith.constant 0 : index
    %c0_82 = arith.constant 0 : index
    %195 = vector.load %arg7[%c1_80, %c0_81, %c0_82] : memref<2x1x96xf32, #tpu.memory_space<vmem>>, vector<1x1x96xf32>
    %196 = vector.shape_cast %195 : vector<1x1x96xf32> to vector<1x96xf32>
    %197 = vector.broadcast %196 : vector<1x96xf32> to vector<8x96xf32>
    %198 = arith.addf %194, %197 : vector<8x96xf32>
    %199 = vector.extract_strided_slice %198 {offsets = [0, 0], sizes = [8, 8], strides = [1, 1]} : vector<8x96xf32> to vector<8x8xf32>
    %200 = vector.extract_strided_slice %198 {offsets = [0, 8], sizes = [8, 8], strides = [1, 1]} : vector<8x96xf32> to vector<8x8xf32>
    %201 = vector.extract_strided_slice %198 {offsets = [0, 16], sizes = [8, 8], strides = [1, 1]} : vector<8x96xf32> to vector<8x8xf32>
    %202 = vector.extract_strided_slice %198 {offsets = [0, 24], sizes = [8, 8], strides = [1, 1]} : vector<8x96xf32> to vector<8x8xf32>
    %203 = vector.shape_cast %199 : vector<8x8xf32> to vector<1x8x8xf32>
    %204 = vector.shape_cast %200 : vector<8x8xf32> to vector<1x8x8xf32>
    %205 = vector.shape_cast %201 : vector<8x8xf32> to vector<1x8x8xf32>
    %206 = vector.shape_cast %202 : vector<8x8xf32> to vector<1x8x8xf32>
    %207 = tpu.concatenate %203, %204, %205, %206 in 0 : vector<1x8x8xf32>, vector<1x8x8xf32>, vector<1x8x8xf32>, vector<1x8x8xf32> -> vector<4x8x8xf32>
    %208 = arith.truncf %207 : vector<4x8x8xf32> to vector<4x8x8xbf16>
    %209 = vector.extract_strided_slice %198 {offsets = [0, 32], sizes = [8, 8], strides = [1, 1]} : vector<8x96xf32> to vector<8x8xf32>
    %210 = vector.extract_strided_slice %198 {offsets = [0, 40], sizes = [8, 8], strides = [1, 1]} : vector<8x96xf32> to vector<8x8xf32>
    %211 = vector.extract_strided_slice %198 {offsets = [0, 48], sizes = [8, 8], strides = [1, 1]} : vector<8x96xf32> to vector<8x8xf32>
    %212 = vector.extract_strided_slice %198 {offsets = [0, 56], sizes = [8, 8], strides = [1, 1]} : vector<8x96xf32> to vector<8x8xf32>
    %213 = vector.shape_cast %209 : vector<8x8xf32> to vector<1x8x8xf32>
    %214 = vector.shape_cast %210 : vector<8x8xf32> to vector<1x8x8xf32>
    %215 = vector.shape_cast %211 : vector<8x8xf32> to vector<1x8x8xf32>
    %216 = vector.shape_cast %212 : vector<8x8xf32> to vector<1x8x8xf32>
    %217 = tpu.concatenate %213, %214, %215, %216 in 0 : vector<1x8x8xf32>, vector<1x8x8xf32>, vector<1x8x8xf32>, vector<1x8x8xf32> -> vector<4x8x8xf32>
    %218 = arith.truncf %217 : vector<4x8x8xf32> to vector<4x8x8xbf16>
    %219 = vector.extract_strided_slice %198 {offsets = [0, 64], sizes = [8, 8], strides = [1, 1]} : vector<8x96xf32> to vector<8x8xf32>
    %220 = vector.extract_strided_slice %198 {offsets = [0, 72], sizes = [8, 8], strides = [1, 1]} : vector<8x96xf32> to vector<8x8xf32>
    %221 = vector.extract_strided_slice %198 {offsets = [0, 80], sizes = [8, 8], strides = [1, 1]} : vector<8x96xf32> to vector<8x8xf32>
    %222 = vector.extract_strided_slice %198 {offsets = [0, 88], sizes = [8, 8], strides = [1, 1]} : vector<8x96xf32> to vector<8x8xf32>
    %223 = vector.shape_cast %219 : vector<8x8xf32> to vector<1x8x8xf32>
    %224 = vector.shape_cast %220 : vector<8x8xf32> to vector<1x8x8xf32>
    %225 = vector.shape_cast %221 : vector<8x8xf32> to vector<1x8x8xf32>
    %226 = vector.shape_cast %222 : vector<8x8xf32> to vector<1x8x8xf32>
    %227 = tpu.concatenate %223, %224, %225, %226 in 0 : vector<1x8x8xf32>, vector<1x8x8xf32>, vector<1x8x8xf32>, vector<1x8x8xf32> -> vector<4x8x8xf32>
    %228 = arith.truncf %227 : vector<4x8x8xf32> to vector<4x8x8xbf16>
    "tpu.trace_start"() <{level = 10 : i32, message = "hqd,hkd->hqk"}> : () -> ()
    %cst_83 = arith.constant dense<0.000000e+00> : vector<4x8x8xf32>
    %229 = tpu.matmul %208, %218, %cst_83 {dimension_numbers = #tpu.dot_dimension_numbers<[2], [2], [1], [1], [0, 0, 0, 1, 1, 1], [0], [0]>} : vector<4x8x8xbf16>, vector<4x8x8xbf16>, vector<4x8x8xf32> -> vector<4x8x8xf32>
    "tpu.trace_stop"() : () -> ()
    %230 = vector.broadcast %11 : vector<1x1x8xf32> to vector<4x8x8xf32>
    %231 = arith.addf %229, %230 : vector<4x8x8xf32>
    %cst_84 = arith.constant dense<0xFF800000> : vector<4x8xf32>
    %232 = vector.multi_reduction <maximumf>, %231, %cst_84 [2] : vector<4x8x8xf32> to vector<4x8xf32>
    %233 = vector.shape_cast %232 : vector<4x8xf32> to vector<4x8x1xf32>
    %234 = vector.broadcast %233 : vector<4x8x1xf32> to vector<4x8x8xf32>
    %235 = arith.subf %231, %234 : vector<4x8x8xf32>
    %236 = math.exp %235 : vector<4x8x8xf32>
    %cst_85 = arith.constant dense<0.000000e+00> : vector<4x8xf32>
    %237 = vector.multi_reduction <add>, %236, %cst_85 [2] : vector<4x8x8xf32> to vector<4x8xf32>
    %238 = vector.shape_cast %237 : vector<4x8xf32> to vector<4x8x1xf32>
    %239 = tpu.reciprocal %238 {approx = true} : vector<4x8x1xf32> -> vector<4x8x1xf32>
    %240 = vector.broadcast %239 : vector<4x8x1xf32> to vector<4x8x8xf32>
    %241 = arith.mulf %236, %240 : vector<4x8x8xf32>
    %242 = arith.truncf %241 : vector<4x8x8xf32> to vector<4x8x8xbf16>
    "tpu.trace_start"() <{level = 10 : i32, message = "hqk,hkd->hqd"}> : () -> ()
    %cst_86 = arith.constant dense<0.000000e+00> : vector<4x8x8xf32>
    %243 = tpu.matmul %242, %228, %cst_86 {dimension_numbers = #tpu.dot_dimension_numbers<[2], [1], [1], [2], [0, 0, 0, 1, 1, 2], [0], [0]>} : vector<4x8x8xbf16>, vector<4x8x8xbf16>, vector<4x8x8xf32> -> vector<4x8x8xf32>
    "tpu.trace_stop"() : () -> ()
    %244 = vector.extract_strided_slice %243 {offsets = [0, 0, 0], sizes = [1, 8, 8], strides = [1, 1, 1]} : vector<4x8x8xf32> to vector<1x8x8xf32>
    %245 = vector.shape_cast %244 : vector<1x8x8xf32> to vector<8x8xf32>
    %246 = vector.extract_strided_slice %243 {offsets = [1, 0, 0], sizes = [1, 8, 8], strides = [1, 1, 1]} : vector<4x8x8xf32> to vector<1x8x8xf32>
    %247 = vector.shape_cast %246 : vector<1x8x8xf32> to vector<8x8xf32>
    %248 = vector.extract_strided_slice %243 {offsets = [2, 0, 0], sizes = [1, 8, 8], strides = [1, 1, 1]} : vector<4x8x8xf32> to vector<1x8x8xf32>
    %249 = vector.shape_cast %248 : vector<1x8x8xf32> to vector<8x8xf32>
    %250 = vector.extract_strided_slice %243 {offsets = [3, 0, 0], sizes = [1, 8, 8], strides = [1, 1, 1]} : vector<4x8x8xf32> to vector<1x8x8xf32>
    %251 = vector.shape_cast %250 : vector<1x8x8xf32> to vector<8x8xf32>
    %252 = tpu.concatenate %245, %247, %249, %251 in 1 : vector<8x8xf32>, vector<8x8xf32>, vector<8x8xf32>, vector<8x8xf32> -> vector<8x32xf32>
    %253 = arith.truncf %252 : vector<8x32xf32> to vector<8x32xbf16>
    %c1_87 = arith.constant 1 : index
    %c0_88 = arith.constant 0 : index
    %c0_89 = arith.constant 0 : index
    %254 = vector.load %arg8[%c1_87, %c0_88, %c0_89] : memref<2x32x32xbf16, #tpu.memory_space<vmem>>, vector<1x32x32xbf16>
    %255 = vector.shape_cast %254 : vector<1x32x32xbf16> to vector<32x32xbf16>
    %cst_90 = arith.constant dense<0.000000e+00> : vector<8x32xf32>
    %256 = tpu.matmul %253, %255, %cst_90 {dimension_numbers = #tpu.dot_dimension_numbers<[1], [0], [0], [1], [0, 0, 1, 1], [], []>} : vector<8x32xbf16>, vector<32x32xbf16>, vector<8x32xf32> -> vector<8x32xf32>
    %c1_91 = arith.constant 1 : index
    %c0_92 = arith.constant 0 : index
    %c0_93 = arith.constant 0 : index
    %257 = vector.load %arg9[%c1_91, %c0_92, %c0_93] : memref<2x1x32xf32, #tpu.memory_space<vmem>>, vector<1x1x32xf32>
    %258 = vector.shape_cast %257 : vector<1x1x32xf32> to vector<1x32xf32>
    %259 = vector.broadcast %258 : vector<1x32xf32> to vector<8x32xf32>
    %260 = arith.addf %256, %259 : vector<8x32xf32>
    %261 = arith.addf %164, %260 : vector<8x32xf32>
    %c1_94 = arith.constant 1 : index
    %c0_95 = arith.constant 0 : index
    %c0_96 = arith.constant 0 : index
    %262 = vector.load %arg10[%c1_94, %c0_95, %c0_96] : memref<2x1x32xf32, #tpu.memory_space<vmem>>, vector<1x1x32xf32>
    %263 = vector.shape_cast %262 : vector<1x1x32xf32> to vector<1x32xf32>
    %c1_97 = arith.constant 1 : index
    %c0_98 = arith.constant 0 : index
    %c0_99 = arith.constant 0 : index
    %264 = vector.load %arg11[%c1_97, %c0_98, %c0_99] : memref<2x1x32xf32, #tpu.memory_space<vmem>>, vector<1x1x32xf32>
    %265 = vector.shape_cast %264 : vector<1x1x32xf32> to vector<1x32xf32>
    %cst_100 = arith.constant dense<0.000000e+00> : vector<8xf32>
    %266 = vector.multi_reduction <add>, %261, %cst_100 [1] : vector<8x32xf32> to vector<8xf32>
    %267 = vector.shape_cast %266 : vector<8xf32> to vector<8x1xf32>
    %cst_101 = arith.constant 3.200000e+01 : f32
    %268 = vector.broadcast %cst_101 : f32 to vector<8x1xf32>
    %269 = arith.divf %267, %268 : vector<8x1xf32>
    %270 = vector.broadcast %269 : vector<8x1xf32> to vector<8x32xf32>
    %271 = arith.subf %261, %270 : vector<8x32xf32>
    %272 = arith.mulf %271, %271 : vector<8x32xf32>
    %cst_102 = arith.constant dense<0.000000e+00> : vector<8xf32>
    %273 = vector.multi_reduction <add>, %272, %cst_102 [1] : vector<8x32xf32> to vector<8xf32>
    %274 = vector.shape_cast %273 : vector<8xf32> to vector<8x1xf32>
    %cst_103 = arith.constant 3.200000e+01 : f32
    %275 = vector.broadcast %cst_103 : f32 to vector<8x1xf32>
    %276 = arith.divf %274, %275 : vector<8x1xf32>
    %277 = vector.broadcast %269 : vector<8x1xf32> to vector<8x32xf32>
    %278 = arith.subf %261, %277 : vector<8x32xf32>
    %cst_104 = arith.constant 9.99999997E-7 : f32
    %279 = vector.broadcast %cst_104 : f32 to vector<8x1xf32>
    %280 = arith.addf %276, %279 : vector<8x1xf32>
    %281 = math.rsqrt %280 : vector<8x1xf32>
    %282 = vector.broadcast %281 : vector<8x1xf32> to vector<8x32xf32>
    %283 = arith.mulf %278, %282 : vector<8x32xf32>
    %284 = vector.broadcast %263 : vector<1x32xf32> to vector<8x32xf32>
    %285 = arith.mulf %283, %284 : vector<8x32xf32>
    %286 = vector.broadcast %265 : vector<1x32xf32> to vector<8x32xf32>
    %287 = arith.addf %285, %286 : vector<8x32xf32>
    %288 = arith.truncf %287 : vector<8x32xf32> to vector<8x32xbf16>
    %c1_105 = arith.constant 1 : index
    %c0_106 = arith.constant 0 : index
    %c0_107 = arith.constant 0 : index
    %289 = vector.load %arg12[%c1_105, %c0_106, %c0_107] : memref<2x32x128xbf16, #tpu.memory_space<vmem>>, vector<1x32x128xbf16>
    %290 = vector.shape_cast %289 : vector<1x32x128xbf16> to vector<32x128xbf16>
    %cst_108 = arith.constant dense<0.000000e+00> : vector<8x128xf32>
    %291 = tpu.matmul %288, %290, %cst_108 {dimension_numbers = #tpu.dot_dimension_numbers<[1], [0], [0], [1], [0, 0, 1, 1], [], []>} : vector<8x32xbf16>, vector<32x128xbf16>, vector<8x128xf32> -> vector<8x128xf32>
    %c1_109 = arith.constant 1 : index
    %c0_110 = arith.constant 0 : index
    %c0_111 = arith.constant 0 : index
    %292 = vector.load %arg13[%c1_109, %c0_110, %c0_111] : memref<2x1x128xf32, #tpu.memory_space<vmem>>, vector<1x1x128xf32>
    %293 = vector.shape_cast %292 : vector<1x1x128xf32> to vector<1x128xf32>
    %294 = vector.broadcast %293 : vector<1x128xf32> to vector<8x128xf32>
    %295 = arith.addf %291, %294 : vector<8x128xf32>
    %cst_112 = arith.constant 5.000000e-01 : f32
    %296 = vector.broadcast %cst_112 : f32 to vector<8x128xf32>
    %297 = arith.mulf %296, %295 : vector<8x128xf32>
    %cst_113 = arith.constant 4.471500e-02 : f32
    %298 = vector.broadcast %cst_113 : f32 to vector<8x128xf32>
    %299 = arith.mulf %298, %295 : vector<8x128xf32>
    %300 = arith.mulf %299, %295 : vector<8x128xf32>
    %301 = arith.mulf %300, %295 : vector<8x128xf32>
    %302 = arith.addf %295, %301 : vector<8x128xf32>
    %cst_114 = arith.constant 0.797884583 : f32
    %303 = vector.broadcast %cst_114 : f32 to vector<8x128xf32>
    %304 = arith.mulf %303, %302 : vector<8x128xf32>
    %305 = math.tanh %304 : vector<8x128xf32>
    %cst_115 = arith.constant 1.000000e+00 : f32
    %306 = vector.broadcast %cst_115 : f32 to vector<8x128xf32>
    %307 = arith.addf %306, %305 : vector<8x128xf32>
    %308 = arith.mulf %297, %307 : vector<8x128xf32>
    %309 = arith.truncf %308 : vector<8x128xf32> to vector<8x128xbf16>
    %c1_116 = arith.constant 1 : index
    %c0_117 = arith.constant 0 : index
    %c0_118 = arith.constant 0 : index
    %310 = vector.load %arg14[%c1_116, %c0_117, %c0_118] : memref<2x128x32xbf16, #tpu.memory_space<vmem>>, vector<1x128x32xbf16>
    %311 = vector.shape_cast %310 : vector<1x128x32xbf16> to vector<128x32xbf16>
    %cst_119 = arith.constant dense<0.000000e+00> : vector<8x32xf32>
    %312 = tpu.matmul %309, %311, %cst_119 {dimension_numbers = #tpu.dot_dimension_numbers<[1], [0], [0], [1], [0, 0, 1, 1], [], []>} : vector<8x128xbf16>, vector<128x32xbf16>, vector<8x32xf32> -> vector<8x32xf32>
    %c1_120 = arith.constant 1 : index
    %c0_121 = arith.constant 0 : index
    %c0_122 = arith.constant 0 : index
    %313 = vector.load %arg15[%c1_120, %c0_121, %c0_122] : memref<2x1x32xf32, #tpu.memory_space<vmem>>, vector<1x1x32xf32>
    %314 = vector.shape_cast %313 : vector<1x1x32xf32> to vector<1x32xf32>
    %315 = vector.broadcast %314 : vector<1x32xf32> to vector<8x32xf32>
    %316 = arith.addf %312, %315 : vector<8x32xf32>
    %317 = arith.addf %261, %316 : vector<8x32xf32>
    %c0_123 = arith.constant 0 : index
    %c0_124 = arith.constant 0 : index
    %318 = vector.load %arg16[%c0_123, %c0_124] : memref<1x32xf32, #tpu.memory_space<vmem>>, vector<1x32xf32>
    %c0_125 = arith.constant 0 : index
    %c0_126 = arith.constant 0 : index
    %319 = vector.load %arg17[%c0_125, %c0_126] : memref<1x32xf32, #tpu.memory_space<vmem>>, vector<1x32xf32>
    %cst_127 = arith.constant dense<0.000000e+00> : vector<8xf32>
    %320 = vector.multi_reduction <add>, %317, %cst_127 [1] : vector<8x32xf32> to vector<8xf32>
    %321 = vector.shape_cast %320 : vector<8xf32> to vector<8x1xf32>
    %cst_128 = arith.constant 3.200000e+01 : f32
    %322 = vector.broadcast %cst_128 : f32 to vector<8x1xf32>
    %323 = arith.divf %321, %322 : vector<8x1xf32>
    %324 = vector.broadcast %323 : vector<8x1xf32> to vector<8x32xf32>
    %325 = arith.subf %317, %324 : vector<8x32xf32>
    %326 = arith.mulf %325, %325 : vector<8x32xf32>
    %cst_129 = arith.constant dense<0.000000e+00> : vector<8xf32>
    %327 = vector.multi_reduction <add>, %326, %cst_129 [1] : vector<8x32xf32> to vector<8xf32>
    %328 = vector.shape_cast %327 : vector<8xf32> to vector<8x1xf32>
    %cst_130 = arith.constant 3.200000e+01 : f32
    %329 = vector.broadcast %cst_130 : f32 to vector<8x1xf32>
    %330 = arith.divf %328, %329 : vector<8x1xf32>
    %331 = vector.broadcast %323 : vector<8x1xf32> to vector<8x32xf32>
    %332 = arith.subf %317, %331 : vector<8x32xf32>
    %cst_131 = arith.constant 9.99999997E-7 : f32
    %333 = vector.broadcast %cst_131 : f32 to vector<8x1xf32>
    %334 = arith.addf %330, %333 : vector<8x1xf32>
    %335 = math.rsqrt %334 : vector<8x1xf32>
    %336 = vector.broadcast %335 : vector<8x1xf32> to vector<8x32xf32>
    %337 = arith.mulf %332, %336 : vector<8x32xf32>
    %338 = vector.broadcast %318 : vector<1x32xf32> to vector<8x32xf32>
    %339 = arith.mulf %337, %338 : vector<8x32xf32>
    %340 = vector.broadcast %319 : vector<1x32xf32> to vector<8x32xf32>
    %341 = arith.addf %339, %340 : vector<8x32xf32>
    %c0_132 = arith.constant 0 : index
    %c0_133 = arith.constant 0 : index
    %c0_134 = arith.constant 0 : index
    %342 = vector.load %arg18[%c0_132, %c0_133, %c0_134] : memref<1x8x32xf32, #tpu.memory_space<vmem>>, vector<1x8x32xf32>
    %343 = vector.shape_cast %342 : vector<1x8x32xf32> to vector<8x32xf32>
    %344 = vector.shape_cast %341 : vector<8x32xf32> to vector<1x8x32xf32>
    tpu.vector_store %arg18[%c0_132, %c0_133, %c0_134], %344 {strides = array<i32>} : memref<1x8x32xf32, #tpu.memory_space<vmem>>, vector<1x8x32xf32>,
    return
  }
  func.func @transform_0(%arg0: i32) -> (i32, i32, i32) {
    %c0_i32 = arith.constant 0 : i32
    %c0_i32_0 = arith.constant 0 : i32
    %c0_i32_1 = arith.constant 0 : i32
    return %arg0, %c0_i32, %c0_i32_0 : i32, i32, i32
  }
  func.func @transform_1(%arg0: i32) -> (i32, i32) {
    %c0_i32 = arith.constant 0 : i32
    %c0_i32_0 = arith.constant 0 : i32
    %c0_i32_1 = arith.constant 0 : i32
    return %c0_i32, %c0_i32_0 : i32, i32
  }
  func.func @transform_2(%arg0: i32) -> (i32, i32) {
    %c0_i32 = arith.constant 0 : i32
    %c0_i32_0 = arith.constant 0 : i32
    %c0_i32_1 = arith.constant 0 : i32
    return %c0_i32, %c0_i32_0 : i32, i32
  }
  func.func @transform_3(%arg0: i32) -> (i32, i32, i32) {
    %c0_i32 = arith.constant 0 : i32
    %c0_i32_0 = arith.constant 0 : i32
    %c0_i32_1 = arith.constant 0 : i32
    %c0_i32_2 = arith.constant 0 : i32
    return %c0_i32, %c0_i32_0, %c0_i32_1 : i32, i32, i32
  }
  func.func @transform_4(%arg0: i32) -> (i32, i32, i32) {
    %c0_i32 = arith.constant 0 : i32
    %c0_i32_0 = arith.constant 0 : i32
    %c0_i32_1 = arith.constant 0 : i32
    %c0_i32_2 = arith.constant 0 : i32
    return %c0_i32, %c0_i32_0, %c0_i32_1 : i32, i32, i32
  }
  func.func @transform_5(%arg0: i32) -> (i32, i32, i32) {
    %c0_i32 = arith.constant 0 : i32
    %c0_i32_0 = arith.constant 0 : i32
    %c0_i32_1 = arith.constant 0 : i32
    %c0_i32_2 = arith.constant 0 : i32
    return %c0_i32, %c0_i32_0, %c0_i32_1 : i32, i32, i32
  }
  func.func @transform_6(%arg0: i32) -> (i32, i32, i32) {
    %c0_i32 = arith.constant 0 : i32
    %c0_i32_0 = arith.constant 0 : i32
    %c0_i32_1 = arith.constant 0 : i32
    %c0_i32_2 = arith.constant 0 : i32
    return %c0_i32, %c0_i32_0, %c0_i32_1 : i32, i32, i32
  }
  func.func @transform_7(%arg0: i32) -> (i32, i32, i32) {
    %c0_i32 = arith.constant 0 : i32
    %c0_i32_0 = arith.constant 0 : i32
    %c0_i32_1 = arith.constant 0 : i32
    %c0_i32_2 = arith.constant 0 : i32
    return %c0_i32, %c0_i32_0, %c0_i32_1 : i32, i32, i32
  }
  func.func @transform_8(%arg0: i32) -> (i32, i32, i32) {
    %c0_i32 = arith.constant 0 : i32
    %c0_i32_0 = arith.constant 0 : i32
    %c0_i32_1 = arith.constant 0 : i32
    %c0_i32_2 = arith.constant 0 : i32
    return %c0_i32, %c0_i32_0, %c0_i32_1 : i32, i32, i32
  }
  func.func @transform_9(%arg0: i32) -> (i32, i32, i32) {
    %c0_i32 = arith.constant 0 : i32
    %c0_i32_0 = arith.constant 0 : i32
    %c0_i32_1 = arith.constant 0 : i32
    %c0_i32_2 = arith.constant 0 : i32
    return %c0_i32, %c0_i32_0, %c0_i32_1 : i32, i32, i32
  }
  func.func @transform_10(%arg0: i32) -> (i32, i32, i32) {
    %c0_i32 = arith.constant 0 : i32
    %c0_i32_0 = arith.constant 0 : i32
    %c0_i32_1 = arith.constant 0 : i32
    %c0_i32_2 = arith.constant 0 : i32
    return %c0_i32, %c0_i32_0, %c0_i32_1 : i32, i32, i32
  }
  func.func @transform_11(%arg0: i32) -> (i32, i32, i32) {
    %c0_i32 = arith.constant 0 : i32
    %c0_i32_0 = arith.constant 0 : i32
    %c0_i32_1 = arith.constant 0 : i32
    %c0_i32_2 = arith.constant 0 : i32
    return %c0_i32, %c0_i32_0, %c0_i32_1 : i32, i32, i32
  }
  func.func @transform_12(%arg0: i32) -> (i32, i32, i32) {
    %c0_i32 = arith.constant 0 : i32
    %c0_i32_0 = arith.constant 0 : i32
    %c0_i32_1 = arith.constant 0 : i32
    %c0_i32_2 = arith.constant 0 : i32
    return %c0_i32, %c0_i32_0, %c0_i32_1 : i32, i32, i32
  }
  func.func @transform_13(%arg0: i32) -> (i32, i32, i32) {
    %c0_i32 = arith.constant 0 : i32
    %c0_i32_0 = arith.constant 0 : i32
    %c0_i32_1 = arith.constant 0 : i32
    %c0_i32_2 = arith.constant 0 : i32
    return %c0_i32, %c0_i32_0, %c0_i32_1 : i32, i32, i32
  }
  func.func @transform_14(%arg0: i32) -> (i32, i32, i32) {
    %c0_i32 = arith.constant 0 : i32
    %c0_i32_0 = arith.constant 0 : i32
    %c0_i32_1 = arith.constant 0 : i32
    %c0_i32_2 = arith.constant 0 : i32
    return %c0_i32, %c0_i32_0, %c0_i32_1 : i32, i32, i32
  }
  func.func @transform_15(%arg0: i32) -> (i32, i32) {
    %c0_i32 = arith.constant 0 : i32
    %c0_i32_0 = arith.constant 0 : i32
    %c0_i32_1 = arith.constant 0 : i32
    return %c0_i32, %c0_i32_0 : i32, i32
  }
  func.func @transform_16(%arg0: i32) -> (i32, i32) {
    %c0_i32 = arith.constant 0 : i32
    %c0_i32_0 = arith.constant 0 : i32
    %c0_i32_1 = arith.constant 0 : i32
    return %c0_i32, %c0_i32_0 : i32, i32
  }
  func.func @transform_17(%arg0: i32) -> (i32, i32, i32) {
    %c0_i32 = arith.constant 0 : i32
    %c0_i32_0 = arith.constant 0 : i32
    %c0_i32_1 = arith.constant 0 : i32
    return %arg0, %c0_i32, %c0_i32_0 : i32, i32, i32
  }
}

</mosaic_0001>

<llo_original>
// kernel: tpu_custom_call.1
$region0: #{tpu_custom_call.1}
  #allocation0 [shape = 'u32[]', space=smem, size = 0x4, offset = 0x4, fixed_abs, tag = 'smem constant byte address 0x4 - core index']
  #allocation1 [shape = 'u32[144,128]{1,0:T(1,128)}', space=vmem, size = 0x12000, scoped, tag = 'internal scratch']
  %s0 = inlined_call_operand.vmem [shape: bf16[2,8,768], index: 0, kind: input, shape index: {}]
  %s1 = inlined_call_operand.vmem [shape: f32[8,32], index: 1, kind: input, shape index: {}]
  %s2 = inlined_call_operand.vmem [shape: bf16[768,32], index: 2, kind: input, shape index: {}]
  %s3 = inlined_call_operand.vmem [shape: f32[2,1,32], index: 3, kind: input, shape index: {}]
  %s4 = inlined_call_operand.vmem [shape: f32[2,1,32], index: 4, kind: input, shape index: {}]
  %s5 = inlined_call_operand.vmem [shape: bf16[2,32,96], index: 5, kind: input, shape index: {}]
  %s6 = inlined_call_operand.vmem [shape: f32[2,1,96], index: 6, kind: input, shape index: {}]
  %s7 = inlined_call_operand.vmem [shape: bf16[2,32,32], index: 7, kind: input, shape index: {}]
  %s8 = inlined_call_operand.vmem [shape: f32[2,1,32], index: 8, kind: input, shape index: {}]
  %s9 = inlined_call_operand.vmem [shape: f32[2,1,32], index: 9, kind: input, shape index: {}]
  %s10 = inlined_call_operand.vmem [shape: f32[2,1,32], index: 10, kind: input, shape index: {}]
  %s11 = inlined_call_operand.vmem [shape: bf16[2,32,128], index: 11, kind: input, shape index: {}]
  %s12 = inlined_call_operand.vmem [shape: f32[2,1,128], index: 12, kind: input, shape index: {}]
  %s13 = inlined_call_operand.vmem [shape: bf16[2,128,32], index: 13, kind: input, shape index: {}]
  %s14 = inlined_call_operand.vmem [shape: f32[2,1,32], index: 14, kind: input, shape index: {}]
  %s15 = inlined_call_operand.vmem [shape: f32[1,32], index: 15, kind: input, shape index: {}]
  %s16 = inlined_call_operand.vmem [shape: f32[1,32], index: 16, kind: input, shape index: {}]
  %s17 = inlined_call_operand.hbm [shape: f32[2,8,32], index: 17, kind: output, shape index: {}]
  %s18 = sld [smem:[#allocation0]]
  $region101: #{tpu_custom_call.1} parent=0
    _
  %s20 = ssub.s32 1, %s18
  %s21 = scalar_select 0, %s20, %s18
  $region1: #{tpu_custom_call.1} parent=0
    #allocation2 [shape = 'u8[8192]{0}', space=vmem, size = 0x2000, scoped, tag = 'output window, operand 0']
    #allocation3 [shape = 's32[2]{0}', space=sflag, size = 0x8, scoped, tag = 'scoped memory for tpu_custom_call.1']
    %22 = vsyncpa [#allocation3], 0
    %s23 = scalar_lea.sflag [#allocation3], 1
    %24 = vsyncpa %s23, 0
    loop: start=0, step=1, limit=4
    $region2: #{tpu_custom_call.1} parent=1 // loop_pre_header
      _
    $region3: #{tpu_custom_call.1} parent=1 // loop_header
      %s26 = sphi 0, %s30
      %p27 = scmp.ge.s32.totalorder %s26, 4
      %s36 = sphi 0, %s38
      %s39 = sphi 0, %s36
      %s40 = sphi 0, %s39
      %s56 = sphi 0, %s40
      %s60 = sphi 0, %s60
      %s62 = sphi 0, %s60
      %s63 = sphi 0, %s62
      %s77 = sphi 0, %s63
      %s81 = sphi 0, %s81
      %s83 = sphi 0, %s81
      %s84 = sphi 0, %s83
      %s98 = sphi 0, %s84
      %s102 = sphi 0, %s102
      %s104 = sphi 0, %s102
      %s105 = sphi 0, %s104
      %s119 = sphi 0, %s105
      %s123 = sphi 0, %s123
      %s125 = sphi 0, %s123
      %s126 = sphi 0, %s125
      %s140 = sphi 0, %s126
      %s144 = sphi 0, %s144
      %s146 = sphi 0, %s144
      %s147 = sphi 0, %s146
      %s161 = sphi 0, %s147
      %s165 = sphi 0, %s165
      %s167 = sphi 0, %s165
      %s168 = sphi 0, %s167
      %s182 = sphi 0, %s168
      %s186 = sphi 0, %s186
      %s188 = sphi 0, %s186
      %s189 = sphi 0, %s188
      %s203 = sphi 0, %s189
      %s207 = sphi 0, %s207
      %s209 = sphi 0, %s207
      %s210 = sphi 0, %s209
      %s224 = sphi 0, %s210
      %s228 = sphi 0, %s228
      %s230 = sphi 0, %s228
      %s231 = sphi 0, %s230
      %s245 = sphi 0, %s231
      %s249 = sphi 0, %s249
      %s251 = sphi 0, %s249
      %s252 = sphi 0, %s251
      %s266 = sphi 0, %s252
      %s270 = sphi 0, %s270
      %s272 = sphi 0, %s270
      %s273 = sphi 0, %s272
      %s287 = sphi 0, %s273
      %s291 = sphi 0, %s291
      %s293 = sphi 0, %s291
      %s294 = sphi 0, %s293
      %s308 = sphi 0, %s294
      %s312 = sphi 0, %s312
      %s314 = sphi 0, %s312
      %s315 = sphi 0, %s314
      %s329 = sphi 0, %s315
      %s333 = sphi 0, %s333
      %s335 = sphi 0, %s333
      %s336 = sphi 0, %s335
      %s350 = sphi 0, %s336
      %s354 = sphi 0, %s354
      %s356 = sphi 0, %s354
      %s357 = sphi 0, %s356
      %s371 = sphi 0, %s357
      %s375 = sphi 0, %s375
      %s377 = sphi 0, %s375
      %s378 = sphi 0, %s377
      %s392 = sphi 0, %s378
      %s398 = sphi 0, %s400
      %s401 = sphi 0, %s398
      %s402 = sphi 0, %s401
      %s418 = sphi 0, %s402
    $region4: #{tpu_custom_call.1} parent=1 // loop_header_branch
      %29 = sbr.rel (%p27) target = $region8
    $region5: #{tpu_custom_call.1} parent=1 // loop_body
      %s31 = ssub.s32 %s26, 1
      %s32 = ssub.s32 %s26, 2
      %s33 = sadd.s32 %s26, 1
      %s34 = ssub.s32 %s26, %s33
      %p35 = scmp.eq.s32.totalorder %s34, 0
      %s37 = sadd.s32 %s36, 1
      %s38 = scalar_select %p35, %s36, %s37
      %p41 = pneg %p35
      %p42 = scmp.eq.s32.totalorder %s26, 1
      %p43 = por %p41, %p42
      %p44 = scmp.ne.s32.totalorder %s36, %s39
      %p45 = scmp.eq.s32.totalorder %s26, 0
      %p46 = por %p44, %p45
      %p47 = scmp.ne.s32.totalorder %s36, %s39
      %p48 = scmp.eq.s32.totalorder %s31, 1
      %p49 = por %p47, %p48
      %p50 = scmp.ne.s32.totalorder %s39, %s40
      %p51 = scmp.eq.s32.totalorder %s31, 0
      %p52 = por %p50, %p51
      %p53 = scmp.ne.s32.totalorder %s39, %s40
      %p54 = scmp.eq.s32.totalorder %s32, 1
      %p55 = por %p53, %p54
      %p57 = scmp.ne.s32.totalorder %s40, %s56
      %p58 = scmp.eq.s32.totalorder %s32, 0
      %p59 = por %p57, %p58
      %s61 = sadd.s32 %s60, 1
      %p64 = scmp.eq.s32.totalorder %s26, 1
      %p65 = scmp.ne.s32.totalorder %s60, %s62
      %p66 = scmp.eq.s32.totalorder %s26, 0
      %p67 = por %p65, %p66
      %p68 = scmp.ne.s32.totalorder %s60, %s62
      %p69 = scmp.eq.s32.totalorder %s31, 1
      %p70 = por %p68, %p69
      %p71 = scmp.ne.s32.totalorder %s62, %s63
      %p72 = scmp.eq.s32.totalorder %s31, 0
      %p73 = por %p71, %p72
      %p74 = scmp.ne.s32.totalorder %s62, %s63
      %p75 = scmp.eq.s32.totalorder %s32, 1
      %p76 = por %p74, %p75
      %p78 = scmp.ne.s32.totalorder %s63, %s77
      %p79 = scmp.eq.s32.totalorder %s32, 0
      %p80 = por %p78, %p79
      %s82 = sadd.s32 %s81, 1
      %p85 = scmp.eq.s32.totalorder %s26, 1
      %p86 = scmp.ne.s32.totalorder %s81, %s83
      %p87 = scmp.eq.s32.totalorder %s26, 0
      %p88 = por %p86, %p87
      %p89 = scmp.ne.s32.totalorder %s81, %s83
      %p90 = scmp.eq.s32.totalorder %s31, 1
      %p91 = por %p89, %p90
      %p92 = scmp.ne.s32.totalorder %s83, %s84
      %p93 = scmp.eq.s32.totalorder %s31, 0
      %p94 = por %p92, %p93
      %p95 = scmp.ne.s32.totalorder %s83, %s84
      %p96 = scmp.eq.s32.totalorder %s32, 1
      %p97 = por %p95, %p96
      %p99 = scmp.ne.s32.totalorder %s84, %s98
      %p100 = scmp.eq.s32.totalorder %s32, 0
      %p101 = por %p99, %p100
      %s103 = sadd.s32 %s102, 1
      %p106 = scmp.eq.s32.totalorder %s26, 1
      %p107 = scmp.ne.s32.totalorder %s102, %s104
      %p108 = scmp.eq.s32.totalorder %s26, 0
      %p109 = por %p107, %p108
      %p110 = scmp.ne.s32.totalorder %s102, %s104
      %p111 = scmp.eq.s32.totalorder %s31, 1
      %p112 = por %p110, %p111
      %p113 = scmp.ne.s32.totalorder %s104, %s105
      %p114 = scmp.eq.s32.totalorder %s31, 0
      %p115 = por %p113, %p114
      %p116 = scmp.ne.s32.totalorder %s104, %s105
      %p117 = scmp.eq.s32.totalorder %s32, 1
      %p118 = por %p116, %p117
      %p120 = scmp.ne.s32.totalorder %s105, %s119
      %p121 = scmp.eq.s32.totalorder %s32, 0
      %p122 = por %p120, %p121
      %s124 = sadd.s32 %s123, 1
      %p127 = scmp.eq.s32.totalorder %s26, 1
      %p128 = scmp.ne.s32.totalorder %s123, %s125
      %p129 = scmp.eq.s32.totalorder %s26, 0
      %p130 = por %p128, %p129
      %p131 = scmp.ne.s32.totalorder %s123, %s125
      %p132 = scmp.eq.s32.totalorder %s31, 1
      %p133 = por %p131, %p132
      %p134 = scmp.ne.s32.totalorder %s125, %s126
      %p135 = scmp.eq.s32.totalorder %s31, 0
      %p136 = por %p134, %p135
      %p137 = scmp.ne.s32.totalorder %s125, %s126
      %p138 = scmp.eq.s32.totalorder %s32, 1
      %p139 = por %p137, %p138
      %p141 = scmp.ne.s32.totalorder %s126, %s140
      %p142 = scmp.eq.s32.totalorder %s32, 0
      %p143 = por %p141, %p142
      %s145 = sadd.s32 %s144, 1
      %p148 = scmp.eq.s32.totalorder %s26, 1
      %p149 = scmp.ne.s32.totalorder %s144, %s146
      %p150 = scmp.eq.s32.totalorder %s26, 0
      %p151 = por %p149, %p150
      %p152 = scmp.ne.s32.totalorder %s144, %s146
      %p153 = scmp.eq.s32.totalorder %s31, 1
      %p154 = por %p152, %p153
      %p155 = scmp.ne.s32.totalorder %s146, %s147
      %p156 = scmp.eq.s32.totalorder %s31, 0
      %p157 = por %p155, %p156
      %p158 = scmp.ne.s32.totalorder %s146, %s147
      %p159 = scmp.eq.s32.totalorder %s32, 1
      %p160 = por %p158, %p159
      %p162 = scmp.ne.s32.totalorder %s147, %s161
      %p163 = scmp.eq.s32.totalorder %s32, 0
      %p164 = por %p162, %p163
      %s166 = sadd.s32 %s165, 1
      %p169 = scmp.eq.s32.totalorder %s26, 1
      %p170 = scmp.ne.s32.totalorder %s165, %s167
      %p171 = scmp.eq.s32.totalorder %s26, 0
      %p172 = por %p170, %p171
      %p173 = scmp.ne.s32.totalorder %s165, %s167
      %p174 = scmp.eq.s32.totalorder %s31, 1
      %p175 = por %p173, %p174
      %p176 = scmp.ne.s32.totalorder %s167, %s168
      %p177 = scmp.eq.s32.totalorder %s31, 0
      %p178 = por %p176, %p177
      %p179 = scmp.ne.s32.totalorder %s167, %s168
      %p180 = scmp.eq.s32.totalorder %s32, 1
      %p181 = por %p179, %p180
      %p183 = scmp.ne.s32.totalorder %s168, %s182
      %p184 = scmp.eq.s32.totalorder %s32, 0
      %p185 = por %p183, %p184
      %s187 = sadd.s32 %s186, 1
      %p190 = scmp.eq.s32.totalorder %s26, 1
      %p191 = scmp.ne.s32.totalorder %s186, %s188
      %p192 = scmp.eq.s32.totalorder %s26, 0
      %p193 = por %p191, %p192
      %p194 = scmp.ne.s32.totalorder %s186, %s188
      %p195 = scmp.eq.s32.totalorder %s31, 1
      %p196 = por %p194, %p195
      %p197 = scmp.ne.s32.totalorder %s188, %s189
      %p198 = scmp.eq.s32.totalorder %s31, 0
      %p199 = por %p197, %p198
      %p200 = scmp.ne.s32.totalorder %s188, %s189
      %p201 = scmp.eq.s32.totalorder %s32, 1
      %p202 = por %p200, %p201
      %p204 = scmp.ne.s32.totalorder %s189, %s203
      %p205 = scmp.eq.s32.totalorder %s32, 0
      %p206 = por %p204, %p205
      %s208 = sadd.s32 %s207, 1
      %p211 = scmp.eq.s32.totalorder %s26, 1
      %p212 = scmp.ne.s32.totalorder %s207, %s209
      %p213 = scmp.eq.s32.totalorder %s26, 0
      %p214 = por %p212, %p213
      %p215 = scmp.ne.s32.totalorder %s207, %s209
      %p216 = scmp.eq.s32.totalorder %s31, 1
      %p217 = por %p215, %p216
      %p218 = scmp.ne.s32.totalorder %s209, %s210
      %p219 = scmp.eq.s32.totalorder %s31, 0
      %p220 = por %p218, %p219
      %p221 = scmp.ne.s32.totalorder %s209, %s210
      %p222 = scmp.eq.s32.totalorder %s32, 1
      %p223 = por %p221, %p222
      %p225 = scmp.ne.s32.totalorder %s210, %s224
      %p226 = scmp.eq.s32.totalorder %s32, 0
      %p227 = por %p225, %p226
      %s229 = sadd.s32 %s228, 1
      %p232 = scmp.eq.s32.totalorder %s26, 1
      %p233 = scmp.ne.s32.totalorder %s228, %s230
      %p234 = scmp.eq.s32.totalorder %s26, 0
      %p235 = por %p233, %p234
      %p236 = scmp.ne.s32.totalorder %s228, %s230
      %p237 = scmp.eq.s32.totalorder %s31, 1
      %p238 = por %p236, %p237
      %p239 = scmp.ne.s32.totalorder %s230, %s231
      %p240 = scmp.eq.s32.totalorder %s31, 0
      %p241 = por %p239, %p240
      %p242 = scmp.ne.s32.totalorder %s230, %s231
      %p243 = scmp.eq.s32.totalorder %s32, 1
      %p244 = por %p242, %p243
      %p246 = scmp.ne.s32.totalorder %s231, %s245
      %p247 = scmp.eq.s32.totalorder %s32, 0
      %p248 = por %p246, %p247
      %s250 = sadd.s32 %s249, 1
      %p253 = scmp.eq.s32.totalorder %s26, 1
      %p254 = scmp.ne.s32.totalorder %s249, %s251
      %p255 = scmp.eq.s32.totalorder %s26, 0
      %p256 = por %p254, %p255
      %p257 = scmp.ne.s32.totalorder %s249, %s251
      %p258 = scmp.eq.s32.totalorder %s31, 1
      %p259 = por %p257, %p258
      %p260 = scmp.ne.s32.totalorder %s251, %s252
      %p261 = scmp.eq.s32.totalorder %s31, 0
      %p262 = por %p260, %p261
      %p263 = scmp.ne.s32.totalorder %s251, %s252
      %p264 = scmp.eq.s32.totalorder %s32, 1
      %p265 = por %p263, %p264
      %p267 = scmp.ne.s32.totalorder %s252, %s266
      %p268 = scmp.eq.s32.totalorder %s32, 0
      %p269 = por %p267, %p268
      %s271 = sadd.s32 %s270, 1
      %p274 = scmp.eq.s32.totalorder %s26, 1
      %p275 = scmp.ne.s32.totalorder %s270, %s272
      %p276 = scmp.eq.s32.totalorder %s26, 0
      %p277 = por %p275, %p276
      %p278 = scmp.ne.s32.totalorder %s270, %s272
      %p279 = scmp.eq.s32.totalorder %s31, 1
      %p280 = por %p278, %p279
      %p281 = scmp.ne.s32.totalorder %s272, %s273
      %p282 = scmp.eq.s32.totalorder %s31, 0
      %p283 = por %p281, %p282
      %p284 = scmp.ne.s32.totalorder %s272, %s273
      %p285 = scmp.eq.s32.totalorder %s32, 1
      %p286 = por %p284, %p285
      %p288 = scmp.ne.s32.totalorder %s273, %s287
      %p289 = scmp.eq.s32.totalorder %s32, 0
      %p290 = por %p288, %p289
      %s292 = sadd.s32 %s291, 1
      %p295 = scmp.eq.s32.totalorder %s26, 1
      %p296 = scmp.ne.s32.totalorder %s291, %s293
      %p297 = scmp.eq.s32.totalorder %s26, 0
      %p298 = por %p296, %p297
      %p299 = scmp.ne.s32.totalorder %s291, %s293
      %p300 = scmp.eq.s32.totalorder %s31, 1
      %p301 = por %p299, %p300
      %p302 = scmp.ne.s32.totalorder %s293, %s294
      %p303 = scmp.eq.s32.totalorder %s31, 0
      %p304 = por %p302, %p303
      %p305 = scmp.ne.s32.totalorder %s293, %s294
      %p306 = scmp.eq.s32.totalorder %s32, 1
      %p307 = por %p305, %p306
      %p309 = scmp.ne.s32.totalorder %s294, %s308
      %p310 = scmp.eq.s32.totalorder %s32, 0
      %p311 = por %p309, %p310
      %s313 = sadd.s32 %s312, 1
      %p316 = scmp.eq.s32.totalorder %s26, 1
      %p317 = scmp.ne.s32.totalorder %s312, %s314
      %p318 = scmp.eq.s32.totalorder %s26, 0
      %p319 = por %p317, %p318
      %p320 = scmp.ne.s32.totalorder %s312, %s314
      %p321 = scmp.eq.s32.totalorder %s31, 1
      %p322 = por %p320, %p321
      %p323 = scmp.ne.s32.totalorder %s314, %s315
      %p324 = scmp.eq.s32.totalorder %s31, 0
      %p325 = por %p323, %p324
      %p326 = scmp.ne.s32.totalorder %s314, %s315
      %p327 = scmp.eq.s32.totalorder %s32, 1
      %p328 = por %p326, %p327
      %p330 = scmp.ne.s32.totalorder %s315, %s329
      %p331 = scmp.eq.s32.totalorder %s32, 0
      %p332 = por %p330, %p331
      %s334 = sadd.s32 %s333, 1
      %p337 = scmp.eq.s32.totalorder %s26, 1
      %p338 = scmp.ne.s32.totalorder %s333, %s335
      %p339 = scmp.eq.s32.totalorder %s26, 0
      %p340 = por %p338, %p339
      %p341 = scmp.ne.s32.totalorder %s333, %s335
      %p342 = scmp.eq.s32.totalorder %s31, 1
      %p343 = por %p341, %p342
      %p344 = scmp.ne.s32.totalorder %s335, %s336
      %p345 = scmp.eq.s32.totalorder %s31, 0
      %p346 = por %p344, %p345
      %p347 = scmp.ne.s32.totalorder %s335, %s336
      %p348 = scmp.eq.s32.totalorder %s32, 1
      %p349 = por %p347, %p348
      %p351 = scmp.ne.s32.totalorder %s336, %s350
      %p352 = scmp.eq.s32.totalorder %s32, 0
      %p353 = por %p351, %p352
      %s355 = sadd.s32 %s354, 1
      %p358 = scmp.eq.s32.totalorder %s26, 1
      %p359 = scmp.ne.s32.totalorder %s354, %s356
      %p360 = scmp.eq.s32.totalorder %s26, 0
      %p361 = por %p359, %p360
      %p362 = scmp.ne.s32.totalorder %s354, %s356
      %p363 = scmp.eq.s32.totalorder %s31, 1
      %p364 = por %p362, %p363
      %p365 = scmp.ne.s32.totalorder %s356, %s357
      %p366 = scmp.eq.s32.totalorder %s31, 0
      %p367 = por %p365, %p366
      %p368 = scmp.ne.s32.totalorder %s356, %s357
      %p369 = scmp.eq.s32.totalorder %s32, 1
      %p370 = por %p368, %p369
      %p372 = scmp.ne.s32.totalorder %s357, %s371
      %p373 = scmp.eq.s32.totalorder %s32, 0
      %p374 = por %p372, %p373
      %s376 = sadd.s32 %s375, 1
      %p379 = scmp.eq.s32.totalorder %s26, 1
      %p380 = scmp.ne.s32.totalorder %s375, %s377
      %p381 = scmp.eq.s32.totalorder %s26, 0
      %p382 = por %p380, %p381
      %p383 = scmp.ne.s32.totalorder %s375, %s377
      %p384 = scmp.eq.s32.totalorder %s31, 1
      %p385 = por %p383, %p384
      %p386 = scmp.ne.s32.totalorder %s377, %s378
      %p387 = scmp.eq.s32.totalorder %s31, 0
      %p388 = por %p386, %p387
      %p389 = scmp.ne.s32.totalorder %s377, %s378
      %p390 = scmp.eq.s32.totalorder %s32, 1
      %p391 = por %p389, %p390
      %p393 = scmp.ne.s32.totalorder %s378, %s392
      %p394 = scmp.eq.s32.totalorder %s32, 0
      %p395 = por %p393, %p394
      %s396 = ssub.s32 %s26, %s33
      %p397 = scmp.eq.s32.totalorder %s396, 0
      %s399 = sadd.s32 %s398, 1
      %s400 = scalar_select %p397, %s398, %s399
      %p403 = pneg %p397
      %p404 = scmp.eq.s32.totalorder %s26, 1
      %p405 = por %p403, %p404
      %p406 = scmp.ne.s32.totalorder %s398, %s401
      %p407 = scmp.eq.s32.totalorder %s26, 0
      %p408 = por %p406, %p407
      %p409 = scmp.ne.s32.totalorder %s398, %s401
      %p410 = scmp.eq.s32.totalorder %s31, 1
      %p411 = por %p409, %p410
      %p412 = scmp.ne.s32.totalorder %s401, %s402
      %p413 = scmp.eq.s32.totalorder %s31, 0
      %p414 = por %p412, %p413
      %p415 = scmp.ne.s32.totalorder %s401, %s402
      %p416 = scmp.eq.s32.totalorder %s32, 1
      %p417 = por %p415, %p416
      %p419 = scmp.ne.s32.totalorder %s402, %s418
      %p420 = scmp.eq.s32.totalorder %s32, 0
      %p421 = por %p419, %p420
      %p422 = scmp.le.s32.totalorder 1, %s26
      %p423 = scmp.lt.s32.totalorder %s26, 3
      %p424 = pnand %p422, %p423
      %p425 = pneg %p424
      // Predicated region
      $region9: #{tpu_custom_call.1} parent=5 // pred_check
        _
      $region10: #{tpu_custom_call.1} parent=5 // pred_check_branch
        %427 = sbr.rel (%p424) target = $region12
      $region11: #{tpu_custom_call.1} parent=5 // pred_region
        %s428 = ssub.s32 %s26, 1
        // Predicated region
        $region13: #{tpu_custom_call.1} parent=11 // pred_check
          %p429 = pneg %p73
        $region14: #{tpu_custom_call.1} parent=11 // pred_check_branch
          %431 = sbr.rel (%p429) target = $region16
        $region15: #{tpu_custom_call.1} parent=11 // pred_region
          _
        $region16: #{tpu_custom_call.1} parent=11 // pred_fallthru
          _
        // Predicated region
        $region17: #{tpu_custom_call.1} parent=11 // pred_check
          %p432 = pneg %p94
        $region18: #{tpu_custom_call.1} parent=11 // pred_check_branch
          %434 = sbr.rel (%p432) target = $region20
        $region19: #{tpu_custom_call.1} parent=11 // pred_region
          _
        $region20: #{tpu_custom_call.1} parent=11 // pred_fallthru
          _
        // Predicated region
        $region21: #{tpu_custom_call.1} parent=11 // pred_check
          %p435 = pneg %p115
        $region22: #{tpu_custom_call.1} parent=11 // pred_check_branch
          %437 = sbr.rel (%p435) target = $region24
        $region23: #{tpu_custom_call.1} parent=11 // pred_region
          _
        $region24: #{tpu_custom_call.1} parent=11 // pred_fallthru
          _
        // Predicated region
        $region25: #{tpu_custom_call.1} parent=11 // pred_check
          %p438 = pneg %p136
        $region26: #{tpu_custom_call.1} parent=11 // pred_check_branch
          %440 = sbr.rel (%p438) target = $region28
        $region27: #{tpu_custom_call.1} parent=11 // pred_region
          _
        $region28: #{tpu_custom_call.1} parent=11 // pred_fallthru
          _
        // Predicated region
        $region29: #{tpu_custom_call.1} parent=11 // pred_check
          %p441 = pneg %p157
        $region30: #{tpu_custom_call.1} parent=11 // pred_check_branch
          %443 = sbr.rel (%p441) target = $region32
        $region31: #{tpu_custom_call.1} parent=11 // pred_region
          _
        $region32: #{tpu_custom_call.1} parent=11 // pred_fallthru
          _
        // Predicated region
        $region33: #{tpu_custom_call.1} parent=11 // pred_check
          %p444 = pneg %p178
        $region34: #{tpu_custom_call.1} parent=11 // pred_check_branch
          %446 = sbr.rel (%p444) target = $region36
        $region35: #{tpu_custom_call.1} parent=11 // pred_region
          _
        $region36: #{tpu_custom_call.1} parent=11 // pred_fallthru
          _
        // Predicated region
        $region37: #{tpu_custom_call.1} parent=11 // pred_check
          %p447 = pneg %p199
        $region38: #{tpu_custom_call.1} parent=11 // pred_check_branch
          %449 = sbr.rel (%p447) target = $region40
        $region39: #{tpu_custom_call.1} parent=11 // pred_region
          _
        $region40: #{tpu_custom_call.1} parent=11 // pred_fallthru
          _
        // Predicated region
        $region41: #{tpu_custom_call.1} parent=11 // pred_check
          %p450 = pneg %p220
        $region42: #{tpu_custom_call.1} parent=11 // pred_check_branch
          %452 = sbr.rel (%p450) target = $region44
        $region43: #{tpu_custom_call.1} parent=11 // pred_region
          _
        $region44: #{tpu_custom_call.1} parent=11 // pred_fallthru
          _
        // Predicated region
        $region45: #{tpu_custom_call.1} parent=11 // pred_check
          %p453 = pneg %p241
        $region46: #{tpu_custom_call.1} parent=11 // pred_check_branch
          %455 = sbr.rel (%p453) target = $region48
        $region47: #{tpu_custom_call.1} parent=11 // pred_region
          _
        $region48: #{tpu_custom_call.1} parent=11 // pred_fallthru
          _
        // Predicated region
        $region49: #{tpu_custom_call.1} parent=11 // pred_check
          %p456 = pneg %p262
        $region50: #{tpu_custom_call.1} parent=11 // pred_check_branch
          %458 = sbr.rel (%p456) target = $region52
        $region51: #{tpu_custom_call.1} parent=11 // pred_region
          _
        $region52: #{tpu_custom_call.1} parent=11 // pred_fallthru
          _
        // Predicated region
        $region53: #{tpu_custom_call.1} parent=11 // pred_check
          %p459 = pneg %p283
        $region54: #{tpu_custom_call.1} parent=11 // pred_check_branch
          %461 = sbr.rel (%p459) target = $region56
        $region55: #{tpu_custom_call.1} parent=11 // pred_region
          _
        $region56: #{tpu_custom_call.1} parent=11 // pred_fallthru
          _
        // Predicated region
        $region57: #{tpu_custom_call.1} parent=11 // pred_check
          %p462 = pneg %p304
        $region58: #{tpu_custom_call.1} parent=11 // pred_check_branch
          %464 = sbr.rel (%p462) target = $region60
        $region59: #{tpu_custom_call.1} parent=11 // pred_region
          _
        $region60: #{tpu_custom_call.1} parent=11 // pred_fallthru
          _
        // Predicated region
        $region61: #{tpu_custom_call.1} parent=11 // pred_check
          %p465 = pneg %p325
        $region62: #{tpu_custom_call.1} parent=11 // pred_check_branch
          %467 = sbr.rel (%p465) target = $region64
        $region63: #{tpu_custom_call.1} parent=11 // pred_region
          _
        $region64: #{tpu_custom_call.1} parent=11 // pred_fallthru
          _
        // Predicated region
        $region65: #{tpu_custom_call.1} parent=11 // pred_check
          %p468 = pneg %p346
        $region66: #{tpu_custom_call.1} parent=11 // pred_check_branch
          %470 = sbr.rel (%p468) target = $region68
        $region67: #{tpu_custom_call.1} parent=11 // pred_region
          _
        $region68: #{tpu_custom_call.1} parent=11 // pred_fallthru
          _
        // Predicated region
        $region69: #{tpu_custom_call.1} parent=11 // pred_check
          %p471 = pneg %p367
        $region70: #{tpu_custom_call.1} parent=11 // pred_check_branch
          %473 = sbr.rel (%p471) target = $region72
        $region71: #{tpu_custom_call.1} parent=11 // pred_region
          _
        $region72: #{tpu_custom_call.1} parent=11 // pred_fallthru
          _
        // Predicated region
        $region73: #{tpu_custom_call.1} parent=11 // pred_check
          %p474 = pneg %p388
        $region74: #{tpu_custom_call.1} parent=11 // pred_check_branch
          %476 = sbr.rel (%p474) target = $region76
        $region75: #{tpu_custom_call.1} parent=11 // pred_region
          _
        $region76: #{tpu_custom_call.1} parent=11 // pred_fallthru
          _
      $region12: #{tpu_custom_call.1} parent=5 // pred_fallthru
        _
      %p477 = scmp.lt.s32.totalorder %s26, 2
      // Predicated region
      $region77: #{tpu_custom_call.1} parent=5 // pred_check
        %p478 = pneg %p477
      $region78: #{tpu_custom_call.1} parent=5 // pred_check_branch
        %480 = sbr.rel (%p478) target = $region80
      $region79: #{tpu_custom_call.1} parent=5 // pred_region
        // Predicated region
        $region81: #{tpu_custom_call.1} parent=79 // pred_check
          %p481 = pneg %p46
        $region82: #{tpu_custom_call.1} parent=79 // pred_check_branch
          %483 = sbr.rel (%p481) target = $region84
        $region83: #{tpu_custom_call.1} parent=79 // pred_region
          %p484 = scmp.lt.s32.totalorder %s26, 1
          %s485 = scalar_select %p484, %s26, 1
          %s486 = smul.addr %s485, 6
          %s487 = smul.addr %s486, 4
          %s488 = scalar_lea.vmem %s0, %s487
        $region84: #{tpu_custom_call.1} parent=79 // pred_fallthru
          _
      $region80: #{tpu_custom_call.1} parent=5 // pred_fallthru
        _
      %p489 = scmp.le.s32.totalorder 1, %s26
      %p490 = scmp.lt.s32.totalorder %s26, 3
      %p491 = pnand %p489, %p490
      %p492 = pneg %p491
      // Predicated region
      $region85: #{tpu_custom_call.1} parent=5 // pred_check
        _
      $region86: #{tpu_custom_call.1} parent=5 // pred_check_branch
        %494 = sbr.rel (%p491) target = $region88
      $region87: #{tpu_custom_call.1} parent=5 // pred_region
        %s495 = ssub.s32 %s26, 1
        %p496 = scmp.lt.s32.totalorder %s31, 1
        %s497 = scalar_select %p496, %s31, 1
        %s498 = smul.addr %s497, 6
        %s499 = smul.addr %s498, 4
        %s500 = scalar_lea.vmem %s0, %s499
        %p501 = pneg %p52
        %p502 = pneg %p49
        %p503 = pneg %p73
        %p504 = pneg %p70
        %p505 = pneg %p94
        %p506 = pneg %p91
        %p507 = pneg %p115
        %p508 = pneg %p112
        %p509 = pneg %p136
        %p510 = pneg %p133
        %p511 = pneg %p157
        %p512 = pneg %p154
        %p513 = pneg %p178
        %p514 = pneg %p175
        %p515 = pneg %p199
        %p516 = pneg %p196
        %p517 = pneg %p220
        %p518 = pneg %p217
        %p519 = pneg %p241
        %p520 = pneg %p238
        %p521 = pneg %p262
        %p522 = pneg %p259
        %p523 = pneg %p283
        %p524 = pneg %p280
        %p525 = pneg %p304
        %p526 = pneg %p301
        %p527 = pneg %p325
        %p528 = pneg %p322
        %p529 = pneg %p346
        %p530 = pneg %p343
        %p531 = pneg %p367
        %p532 = pneg %p364
        %p533 = pneg %p388
        %p534 = pneg %p385
        %p535 = pneg %p414
        %p536 = pneg %p411
        %s537 = sand.u32 %s401, 1
        %s538 = scalar_lea.sflag [#allocation3], %s537
        %s539 = sand.u32 %s401, 1
        %s540 = smul.addr %s539, 8
        %s541 = scalar_lea.vmem [#allocation2], %s540
        %p542 = scmp.lt.s32.totalorder %s31, 1
        %s543 = scalar_select %p542, %s31, 1
        %s544 = smul.addr %s543, 6
        %s545 = smul.addr %s544, 4
        %s546 = scalar_lea.vmem %s0, %s545
        %v548 = vld [vmem:[%s546] sm:$0xff]
        %v549 = vld [vmem:[%s546 + $0x8] sm:$0xff]
        %v550 = vld [vmem:[%s546 + $0x10] sm:$0xff]
        %v551 = vld [vmem:[%s2] sm:$0xf]
        %v552 = vld [vmem:[%s2 + $0x4] sm:$0xf]
        %v553 = vld [vmem:[%s2 + $0x8] sm:$0xf]
        %v554 = vld [vmem:[%s2 + $0xc] sm:$0xf]
        %v555 = vld [vmem:[%s2 + $0x10] sm:$0xf]
        %v556 = vld [vmem:[%s2 + $0x14] sm:$0xf]
        %v557 = vld [vmem:[%s2 + $0x18] sm:$0xf]
        %v558 = vld [vmem:[%s2 + $0x1c] sm:$0xf]
        %v559 = vld [vmem:[%s2 + $0x20] sm:$0xf]
        %v560 = vld [vmem:[%s2 + $0x24] sm:$0xf]
        %v561 = vld [vmem:[%s2 + $0x28] sm:$0xf]
        %v562 = vld [vmem:[%s2 + $0x2c] sm:$0xf]
        %v563 = vld [vmem:[%s2 + $0x30] sm:$0xf]
        %v564 = vld [vmem:[%s2 + $0x34] sm:$0xf]
        %v565 = vld [vmem:[%s2 + $0x38] sm:$0xf]
        %v566 = vld [vmem:[%s2 + $0x3c] sm:$0xf]
        %v567 = vld [vmem:[%s2 + $0x40] sm:$0xf]
        %v568 = vld [vmem:[%s2 + $0x44] sm:$0xf]
        %v569 = vld [vmem:[%s2 + $0x48] sm:$0xf]
        %v570 = vld [vmem:[%s2 + $0x4c] sm:$0xf]
        %v571 = vld [vmem:[%s2 + $0x50] sm:$0xf]
        %v572 = vld [vmem:[%s2 + $0x54] sm:$0xf]
        %v573 = vld [vmem:[%s2 + $0x58] sm:$0xf]
        %v574 = vld [vmem:[%s2 + $0x5c] sm:$0xf]
        %v575 = vld [vmem:[%s2 + $0x60] sm:$0xf]
        %v576 = vld [vmem:[%s2 + $0x64] sm:$0xf]
        %v577 = vld [vmem:[%s2 + $0x68] sm:$0xf]
        %v578 = vld [vmem:[%s2 + $0x6c] sm:$0xf]
        %v579 = vld [vmem:[%s2 + $0x70] sm:$0xf]
        %v580 = vld [vmem:[%s2 + $0x74] sm:$0xf]
        %v581 = vld [vmem:[%s2 + $0x78] sm:$0xf]
        %v582 = vld [vmem:[%s2 + $0x7c] sm:$0xf]
        %v583 = vld [vmem:[%s2 + $0x80] sm:$0xf]
        %v584 = vld [vmem:[%s2 + $0x84] sm:$0xf]
        %v585 = vld [vmem:[%s2 + $0x88] sm:$0xf]
        %v586 = vld [vmem:[%s2 + $0x8c] sm:$0xf]
        %v587 = vld [vmem:[%s2 + $0x90] sm:$0xf]
        %v588 = vld [vmem:[%s2 + $0x94] sm:$0xf]
        %v589 = vld [vmem:[%s2 + $0x98] sm:$0xf]
        %v590 = vld [vmem:[%s2 + $0x9c] sm:$0xf]
        %v591 = vld [vmem:[%s2 + $0xa0] sm:$0xf]
        %v592 = vld [vmem:[%s2 + $0xa4] sm:$0xf]
        %v593 = vld [vmem:[%s2 + $0xa8] sm:$0xf]
        %v594 = vld [vmem:[%s2 + $0xac] sm:$0xf]
        %v595 = vld [vmem:[%s2 + $0xb0] sm:$0xf]
        %v596 = vld [vmem:[%s2 + $0xb4] sm:$0xf]
        %v597 = vld [vmem:[%s2 + $0xb8] sm:$0xf]
        %v598 = vld [vmem:[%s2 + $0xbc] sm:$0xf]
        %v599 = vld [vmem:[%s2 + $0xc0] sm:$0xf]
        %v600 = vld [vmem:[%s2 + $0xc4] sm:$0xf]
        %v601 = vld [vmem:[%s2 + $0xc8] sm:$0xf]
        %v602 = vld [vmem:[%s2 + $0xcc] sm:$0xf]
        %v603 = vld [vmem:[%s2 + $0xd0] sm:$0xf]
        %v604 = vld [vmem:[%s2 + $0xd4] sm:$0xf]
        %v605 = vld [vmem:[%s2 + $0xd8] sm:$0xf]
        %v606 = vld [vmem:[%s2 + $0xdc] sm:$0xf]
        %v607 = vld [vmem:[%s2 + $0xe0] sm:$0xf]
        %v608 = vld [vmem:[%s2 + $0xe4] sm:$0xf]
        %v609 = vld [vmem:[%s2 + $0xe8] sm:$0xf]
        %v610 = vld [vmem:[%s2 + $0xec] sm:$0xf]
        %v611 = vld [vmem:[%s2 + $0xf0] sm:$0xf]
        %v612 = vld [vmem:[%s2 + $0xf4] sm:$0xf]
        %v613 = vld [vmem:[%s2 + $0xf8] sm:$0xf]
        %v614 = vld [vmem:[%s2 + $0xfc] sm:$0xf]
        %v615 = vld [vmem:[%s2 + $0x100] sm:$0xf]
        %v616 = vld [vmem:[%s2 + $0x104] sm:$0xf]
        %v617 = vld [vmem:[%s2 + $0x108] sm:$0xf]
        %v618 = vld [vmem:[%s2 + $0x10c] sm:$0xf]
        %v619 = vld [vmem:[%s2 + $0x110] sm:$0xf]
        %v620 = vld [vmem:[%s2 + $0x114] sm:$0xf]
        %v621 = vld [vmem:[%s2 + $0x118] sm:$0xf]
        %v622 = vld [vmem:[%s2 + $0x11c] sm:$0xf]
        %v623 = vld [vmem:[%s2 + $0x120] sm:$0xf]
        %v624 = vld [vmem:[%s2 + $0x124] sm:$0xf]
        %v625 = vld [vmem:[%s2 + $0x128] sm:$0xf]
        %v626 = vld [vmem:[%s2 + $0x12c] sm:$0xf]
        %v627 = vld [vmem:[%s2 + $0x130] sm:$0xf]
        %v628 = vld [vmem:[%s2 + $0x134] sm:$0xf]
        %v629 = vld [vmem:[%s2 + $0x138] sm:$0xf]
        %v630 = vld [vmem:[%s2 + $0x13c] sm:$0xf]
        %v631 = vld [vmem:[%s2 + $0x140] sm:$0xf]
        %v632 = vld [vmem:[%s2 + $0x144] sm:$0xf]
        %v633 = vld [vmem:[%s2 + $0x148] sm:$0xf]
        %v634 = vld [vmem:[%s2 + $0x14c] sm:$0xf]
        %v635 = vld [vmem:[%s2 + $0x150] sm:$0xf]
        %v636 = vld [vmem:[%s2 + $0x154] sm:$0xf]
        %v637 = vld [vmem:[%s2 + $0x158] sm:$0xf]
        %v638 = vld [vmem:[%s2 + $0x15c] sm:$0xf]
        %v639 = vld [vmem:[%s2 + $0x160] sm:$0xf]
        %v640 = vld [vmem:[%s2 + $0x164] sm:$0xf]
        %v641 = vld [vmem:[%s2 + $0x168] sm:$0xf]
        %v642 = vld [vmem:[%s2 + $0x16c] sm:$0xf]
        %v643 = vld [vmem:[%s2 + $0x170] sm:$0xf]
        %v644 = vld [vmem:[%s2 + $0x174] sm:$0xf]
        %v645 = vld [vmem:[%s2 + $0x178] sm:$0xf]
        %v646 = vld [vmem:[%s2 + $0x17c] sm:$0xf]
        %v647 = vld [vmem:[%s1] sm:$0xff]
        %v651 = vunpack.c.l.b16 %v548
        %v652 = vunpack.c.h.b16 %v548
        %v653 = vunpack.c.l.b16 %v549
        %v654 = vunpack.c.h.b16 %v549
        %v655 = vunpack.c.l.b16 %v550
        %v656 = vunpack.c.h.b16 %v550
        %v657 = vpack.c.b16 %v651, %v651
        %v658 = vpack.c.b16 %v652, %v652
        %v659 = vpack.c.b16 %v653, %v653
        %v660 = vpack.c.b16 %v654, %v654
        %v661 = vpack.c.b16 %v655, %v655
        %v662 = vpack.c.b16 %v656, %v656
        %v765 = vunpack.c.l.b16 %v551
        %v766 = vunpack.c.l.b16 %v552
        %v767 = vunpack.c.l.b16 %v553
        %v768 = vunpack.c.l.b16 %v554
        %v769 = vunpack.c.l.b16 %v555
        %v770 = vunpack.c.l.b16 %v556
        %v771 = vunpack.c.l.b16 %v557
        %v772 = vunpack.c.l.b16 %v558
        %v773 = vunpack.c.l.b16 %v559
        %v774 = vunpack.c.l.b16 %v560
        %v775 = vunpack.c.l.b16 %v561
        %v776 = vunpack.c.l.b16 %v562
        %v777 = vunpack.c.l.b16 %v563
        %v778 = vunpack.c.l.b16 %v564
        %v779 = vunpack.c.l.b16 %v565
        %v780 = vunpack.c.l.b16 %v566
        %v781 = vunpack.c.l.b16 %v567
        %v782 = vunpack.c.l.b16 %v568
        %v783 = vunpack.c.l.b16 %v569
        %v784 = vunpack.c.l.b16 %v570
        %v785 = vunpack.c.l.b16 %v571
        %v786 = vunpack.c.l.b16 %v572
        %v787 = vunpack.c.l.b16 %v573
        %v788 = vunpack.c.l.b16 %v574
        %v789 = vunpack.c.l.b16 %v575
        %v790 = vunpack.c.l.b16 %v576
        %v791 = vunpack.c.l.b16 %v577
        %v792 = vunpack.c.l.b16 %v578
        %v793 = vunpack.c.l.b16 %v579
        %v794 = vunpack.c.l.b16 %v580
        %v795 = vunpack.c.l.b16 %v581
        %v796 = vunpack.c.l.b16 %v582
        %v797 = vunpack.c.l.b16 %v583
        %v798 = vunpack.c.l.b16 %v584
        %v799 = vunpack.c.l.b16 %v585
        %v800 = vunpack.c.l.b16 %v586
        %v801 = vunpack.c.l.b16 %v587
        %v802 = vunpack.c.l.b16 %v588
        %v803 = vunpack.c.l.b16 %v589
        %v804 = vunpack.c.l.b16 %v590
        %v805 = vunpack.c.l.b16 %v591
        %v806 = vunpack.c.l.b16 %v592
        %v807 = vunpack.c.l.b16 %v593
        %v808 = vunpack.c.l.b16 %v594
        %v809 = vunpack.c.l.b16 %v595
        %v810 = vunpack.c.l.b16 %v596
        %v811 = vunpack.c.l.b16 %v597
        %v812 = vunpack.c.l.b16 %v598
        %v813 = vunpack.c.l.b16 %v599
        %v814 = vunpack.c.l.b16 %v600
        %v815 = vunpack.c.l.b16 %v601
        %v816 = vunpack.c.l.b16 %v602
        %v817 = vunpack.c.l.b16 %v603
        %v818 = vunpack.c.l.b16 %v604
        %v819 = vunpack.c.l.b16 %v605
        %v820 = vunpack.c.l.b16 %v606
        %v821 = vunpack.c.l.b16 %v607
        %v822 = vunpack.c.l.b16 %v608
        %v823 = vunpack.c.l.b16 %v609
        %v824 = vunpack.c.l.b16 %v610
        %v825 = vunpack.c.l.b16 %v611
        %v826 = vunpack.c.l.b16 %v612
        %v827 = vunpack.c.l.b16 %v613
        %v828 = vunpack.c.l.b16 %v614
        %v829 = vunpack.c.l.b16 %v615
        %v830 = vunpack.c.l.b16 %v616
        %v831 = vunpack.c.l.b16 %v617
        %v832 = vunpack.c.l.b16 %v618
        %v833 = vunpack.c.l.b16 %v619
        %v834 = vunpack.c.l.b16 %v620
        %v835 = vunpack.c.l.b16 %v621
        %v836 = vunpack.c.l.b16 %v622
        %v837 = vunpack.c.l.b16 %v623
        %v838 = vunpack.c.l.b16 %v624
        %v839 = vunpack.c.l.b16 %v625
        %v840 = vunpack.c.l.b16 %v626
        %v841 = vunpack.c.l.b16 %v627
        %v842 = vunpack.c.l.b16 %v628
        %v843 = vunpack.c.l.b16 %v629
        %v844 = vunpack.c.l.b16 %v630
        %v845 = vunpack.c.l.b16 %v631
        %v846 = vunpack.c.l.b16 %v632
        %v847 = vunpack.c.l.b16 %v633
        %v848 = vunpack.c.l.b16 %v634
        %v849 = vunpack.c.l.b16 %v635
        %v850 = vunpack.c.l.b16 %v636
        %v851 = vunpack.c.l.b16 %v637
        %v852 = vunpack.c.l.b16 %v638
        %v853 = vunpack.c.l.b16 %v639
        %v854 = vunpack.c.l.b16 %v640
        %v855 = vunpack.c.l.b16 %v641
        %v856 = vunpack.c.l.b16 %v642
        %v857 = vunpack.c.l.b16 %v643
        %v858 = vunpack.c.l.b16 %v644
        %v859 = vunpack.c.l.b16 %v645
        %v860 = vunpack.c.l.b16 %v646
        %v861 = vpack.c.b16 %v766, %v765
        %v862 = vpack.c.b16 %v768, %v767
        %v863 = vpack.c.b16 %v770, %v769
        %v864 = vpack.c.b16 %v772, %v771
        %v865 = vpack.c.b16 %v774, %v773
        %v866 = vpack.c.b16 %v776, %v775
        %v867 = vpack.c.b16 %v778, %v777
        %v868 = vpack.c.b16 %v780, %v779
        %v869 = vpack.c.b16 %v782, %v781
        %v870 = vpack.c.b16 %v784, %v783
        %v871 = vpack.c.b16 %v786, %v785
        %v872 = vpack.c.b16 %v788, %v787
        %v873 = vpack.c.b16 %v790, %v789
        %v874 = vpack.c.b16 %v792, %v791
        %v875 = vpack.c.b16 %v794, %v793
        %v876 = vpack.c.b16 %v796, %v795
        %v877 = vpack.c.b16 %v798, %v797
        %v878 = vpack.c.b16 %v800, %v799
        %v879 = vpack.c.b16 %v802, %v801
        %v880 = vpack.c.b16 %v804, %v803
        %v881 = vpack.c.b16 %v806, %v805
        %v882 = vpack.c.b16 %v808, %v807
        %v883 = vpack.c.b16 %v810, %v809
        %v884 = vpack.c.b16 %v812, %v811
        %v885 = vpack.c.b16 %v814, %v813
        %v886 = vpack.c.b16 %v816, %v815
        %v887 = vpack.c.b16 %v818, %v817
        %v888 = vpack.c.b16 %v820, %v819
        %v889 = vpack.c.b16 %v822, %v821
        %v890 = vpack.c.b16 %v824, %v823
        %v891 = vpack.c.b16 %v826, %v825
        %v892 = vpack.c.b16 %v828, %v827
        %v893 = vpack.c.b16 %v830, %v829
        %v894 = vpack.c.b16 %v832, %v831
        %v895 = vpack.c.b16 %v834, %v833
        %v896 = vpack.c.b16 %v836, %v835
        %v897 = vpack.c.b16 %v838, %v837
        %v898 = vpack.c.b16 %v840, %v839
        %v899 = vpack.c.b16 %v842, %v841
        %v900 = vpack.c.b16 %v844, %v843
        %v901 = vpack.c.b16 %v846, %v845
        %v902 = vpack.c.b16 %v848, %v847
        %v903 = vpack.c.b16 %v850, %v849
        %v904 = vpack.c.b16 %v852, %v851
        %v905 = vpack.c.b16 %v854, %v853
        %v906 = vpack.c.b16 %v856, %v855
        %v907 = vpack.c.b16 %v858, %v857
        %v908 = vpack.c.b16 %v860, %v859
        %957 = vmatprep.subr.bf16.mxu0 0
        %958 = vmatpush1.bf16.msra.mxu0 %v861
        %959 = vmatprep.subr.bf16.mxu0 0
        %960 = vmatpush1.bf16.msra.mxu0 %v862
        %961 = vmatprep.subr.bf16.mxu0 0
        %962 = vmatpush1.bf16.msra.mxu0 %v863
        %963 = vmatprep.subr.bf16.mxu0 0
        %964 = vmatpush1.bf16.msra.mxu0 %v864
        %965 = vmatprep.subr.bf16.mxu0 0
        %966 = vmatpush1.bf16.msra.mxu0 %v865
        %967 = vmatprep.subr.bf16.mxu0 0
        %968 = vmatpush1.bf16.msra.mxu0 %v866
        %969 = vmatprep.subr.bf16.mxu0 0
        %970 = vmatpush1.bf16.msra.mxu0 %v867
        %971 = vmatprep.subr.bf16.mxu0 0
        %972 = vmatpush1.bf16.msra.mxu0 %v868
        %973 = vmatprep.subr.bf16.mxu0 0
        %974 = vmatpush1.bf16.msra.mxu0 %v869
        %975 = vmatprep.subr.bf16.mxu0 0
        %976 = vmatpush1.bf16.msra.mxu0 %v870
        %977 = vmatprep.subr.bf16.mxu0 0
        %978 = vmatpush1.bf16.msra.mxu0 %v871
        %979 = vmatprep.subr.bf16.mxu0 0
        %980 = vmatpush1.bf16.msra.mxu0 %v872
        %981 = vmatprep.subr.bf16.mxu0 0
        %982 = vmatpush1.bf16.msra.mxu0 %v873
        %983 = vmatprep.subr.bf16.mxu0 0
        %984 = vmatpush1.bf16.msra.mxu0 %v874
        %985 = vmatprep.subr.bf16.mxu0 0
        %986 = vmatpush1.bf16.msra.mxu0 %v875
        %987 = vmatprep.subr.bf16.mxu0 0
        %988 = vmatpush1.bf16.msra.mxu0 %v876
        %989 = vmatprep.mubr.bf16.mxu0 %v658
        %990 = vmatmul.mubr.bf16.gmra.mrb[0].mxu0 %v657
        %v991 = vpop.f32.mrb[0].mxu0
        %v992 = vadd.f32 %v647, %v991
        %v993 = vpop.f32.mrb[0].mxu0
        %v994 = vpop.f32.mrb[0].mxu0
        %v995 = vpop.f32.mrb[0].mxu0
        %996 = vdwg.mxu0
        %997 = vmatprep.subr.bf16.mxu0 0
        %998 = vmatpush1.bf16.msra.mxu0 %v877
        %999 = vmatprep.subr.bf16.mxu0 0
        %1000 = vmatpush1.bf16.msra.mxu0 %v878
        %1001 = vmatprep.subr.bf16.mxu0 0
        %1002 = vmatpush1.bf16.msra.mxu0 %v879
        %1003 = vmatprep.subr.bf16.mxu0 0
        %1004 = vmatpush1.bf16.msra.mxu0 %v880
        %1005 = vmatprep.subr.bf16.mxu0 0
        %1006 = vmatpush1.bf16.msra.mxu0 %v881
        %1007 = vmatprep.subr.bf16.mxu0 0
        %1008 = vmatpush1.bf16.msra.mxu0 %v882
        %1009 = vmatprep.subr.bf16.mxu0 0
        %1010 = vmatpush1.bf16.msra.mxu0 %v883
        %1011 = vmatprep.subr.bf16.mxu0 0
        %1012 = vmatpush1.bf16.msra.mxu0 %v884
        %1013 = vmatprep.subr.bf16.mxu0 0
        %1014 = vmatpush1.bf16.msra.mxu0 %v885
        %1015 = vmatprep.subr.bf16.mxu0 0
        %1016 = vmatpush1.bf16.msra.mxu0 %v886
        %1017 = vmatprep.subr.bf16.mxu0 0
        %1018 = vmatpush1.bf16.msra.mxu0 %v887
        %1019 = vmatprep.subr.bf16.mxu0 0
        %1020 = vmatpush1.bf16.msra.mxu0 %v888
        %1021 = vmatprep.subr.bf16.mxu0 0
        %1022 = vmatpush1.bf16.msra.mxu0 %v889
        %1023 = vmatprep.subr.bf16.mxu0 0
        %1024 = vmatpush1.bf16.msra.mxu0 %v890
        %1025 = vmatprep.subr.bf16.mxu0 0
        %1026 = vmatpush1.bf16.msra.mxu0 %v891
        %1027 = vmatprep.subr.bf16.mxu0 0
        %1028 = vmatpush1.bf16.msra.mxu0 %v892
        %1029 = vmatprep.mubr.bf16.mxu0 %v660
        %1030 = vmatmul.mubr.bf16.gmra.mrb[0].mxu0 %v659
        %v1031 = vpop.f32.mrb[0].mxu0
        %v1032 = vadd.f32 %v992, %v1031
        %v1033 = vpop.f32.mrb[0].mxu0
        %v1034 = vpop.f32.mrb[0].mxu0
        %v1035 = vpop.f32.mrb[0].mxu0
        %1036 = vdwg.mxu0
        %1037 = vmatprep.subr.bf16.mxu0 0
        %1038 = vmatpush1.bf16.msra.mxu0 %v893
        %1039 = vmatprep.subr.bf16.mxu0 0
        %1040 = vmatpush1.bf16.msra.mxu0 %v894
        %1041 = vmatprep.subr.bf16.mxu0 0
        %1042 = vmatpush1.bf16.msra.mxu0 %v895
        %1043 = vmatprep.subr.bf16.mxu0 0
        %1044 = vmatpush1.bf16.msra.mxu0 %v896
        %1045 = vmatprep.subr.bf16.mxu0 0
        %1046 = vmatpush1.bf16.msra.mxu0 %v897
        %1047 = vmatprep.subr.bf16.mxu0 0
        %1048 = vmatpush1.bf16.msra.mxu0 %v898
        %1049 = vmatprep.subr.bf16.mxu0 0
        %1050 = vmatpush1.bf16.msra.mxu0 %v899
        %1051 = vmatprep.subr.bf16.mxu0 0
        %1052 = vmatpush1.bf16.msra.mxu0 %v900
        %1053 = vmatprep.subr.bf16.mxu0 0
        %1054 = vmatpush1.bf16.msra.mxu0 %v901
        %1055 = vmatprep.subr.bf16.mxu0 0
        %1056 = vmatpush1.bf16.msra.mxu0 %v902
        %1057 = vmatprep.subr.bf16.mxu0 0
        %1058 = vmatpush1.bf16.msra.mxu0 %v903
        %1059 = vmatprep.subr.bf16.mxu0 0
        %1060 = vmatpush1.bf16.msra.mxu0 %v904
        %1061 = vmatprep.subr.bf16.mxu0 0
        %1062 = vmatpush1.bf16.msra.mxu0 %v905
        %1063 = vmatprep.subr.bf16.mxu0 0
        %1064 = vmatpush1.bf16.msra.mxu0 %v906
        %1065 = vmatprep.subr.bf16.mxu0 0
        %1066 = vmatpush1.bf16.msra.mxu0 %v907
        %1067 = vmatprep.subr.bf16.mxu0 0
        %1068 = vmatpush1.bf16.msra.mxu0 %v908
        %1069 = vmatprep.mubr.bf16.mxu0 %v662
        %1070 = vmatmul.mubr.bf16.gmra.mrb[0].mxu0 %v661
        %v1071 = vpop.f32.mrb[0].mxu0
        %v1072 = vadd.f32 %v1032, %v1071
        %v1073 = vpop.f32.mrb[0].mxu0
        %v1074 = vpop.f32.mrb[0].mxu0
        %v1075 = vpop.f32.mrb[0].mxu0
        %1076 = vdwg.mxu0
        %v1077 = vlaneseq
        %v1078 = vand.u32 %v1077, 127
        %vm1079 = vcmp.lt.s32.totalorder %v1078, 6
        %v1080 = vsel %vm1079, 0.0, -1e+30
        %v1081 = vld [vmem:[%s3] sm:$0x1]
        %v1082 = vld [vmem:[%s4] sm:$0x1]
        %vm1083 = vcmask 261120
        %v1084 = vsel %vm1083, %v1072, 0.0
        %1085 = vadd.xlane.f32.xlu0 %v1084
        %v1086 = vpop.xlane.xlu0 %1085
        %v1087 = vrcp.pop 32.0
        %v1088 = vmul.f32 %v1086, %v1087
        %v1089 = vsub.f32 %v1072, %v1088
        %v1090 = vmul.f32 %v1089, %v1089
        %v1091 = vsel %vm1083, %v1090, 0.0
        %1092 = vadd.xlane.f32.xlu0 %v1091
        %v1093 = vpop.xlane.xlu0 %1092
        %v1094 = vmul.f32 %v1093, %v1087
        %v1095 = vadd.f32 %v1094, 1e-06
        %v1096 = vrsqrt.pop %v1095
        %v1097 = vmul.f32 %v1089, %v1096
        %v1099 = vlaneseq
        %v1100 = vshrl.u32 %v1099, 7
        %v1101 = vsub.s32 0, %v1100
        %v1102 = vrot.slane %v1081, %v1101
        %v1104 = vmul.f32 %v1097, %v1102
        %v1106 = vlaneseq
        %v1107 = vshrl.u32 %v1106, 7
        %v1108 = vsub.s32 0, %v1107
        %v1109 = vrot.slane %v1082, %v1108
        %v1111 = vadd.f32 %v1104, %v1109
        %v1112 = vpack.c.bf16 %v1111, %v1111
        %v1113 = vld [vmem:[%s5] sm:$0xf]
        %v1114 = vld [vmem:[%s5 + $0x4] sm:$0xf]
        %v1115 = vld [vmem:[%s5 + $0x8] sm:$0xf]
        %v1116 = vld [vmem:[%s5 + $0xc] sm:$0xf]
        %v1117 = vld [vmem:[%s6] sm:$0x1]
        %v1119 = vlaneseq
        %v1120 = vshrl.u32 %v1119, 7
        %v1121 = vsub.s32 0, %v1120
        %v1122 = vrot.slane %v1117, %v1121
        %v1128 = vunpack.c.l.b16 %v1113
        %v1129 = vunpack.c.l.b16 %v1114
        %v1130 = vunpack.c.l.b16 %v1115
        %v1131 = vunpack.c.l.b16 %v1116
        %v1132 = vpack.c.b16 %v1129, %v1128
        %v1133 = vpack.c.b16 %v1131, %v1130
        %v1137 = vsel %vm1083, %v1112, 0
        %1139 = vmatprep.subr.bf16.mxu0 0
        %1140 = vmatpush1.bf16.msra.mxu0 %v1132
        %1141 = vmatprep.subr.bf16.mxu0 0
        %1142 = vmatpush1.bf16.msra.mxu0 %v1133
        %1143 = vmatprep.subr.bf16.mxu0 0
        %1144 = vmatpush1.bf16.msra.mxu0 0
        %1145 = vmatprep.subr.bf16.mxu0 0
        %1146 = vmatpush1.bf16.msra.mxu0 0
        %1147 = vmatprep.subr.bf16.mxu0 0
        %1148 = vmatpush1.bf16.msra.mxu0 0
        %1149 = vmatprep.subr.bf16.mxu0 0
        %1150 = vmatpush1.bf16.msra.mxu0 0
        %1151 = vmatprep.subr.bf16.mxu0 0
        %1152 = vmatpush1.bf16.msra.mxu0 0
        %1153 = vmatprep.subr.bf16.mxu0 0
        %1154 = vmatpush1.bf16.msra.mxu0 0
        %1155 = vmatprep.subr.bf16.mxu0 0
        %1156 = vmatpush1.bf16.msra.mxu0 0
        %1157 = vmatprep.subr.bf16.mxu0 0
        %1158 = vmatpush1.bf16.msra.mxu0 0
        %1159 = vmatprep.subr.bf16.mxu0 0
        %1160 = vmatpush1.bf16.msra.mxu0 0
        %1161 = vmatprep.subr.bf16.mxu0 0
        %1162 = vmatpush1.bf16.msra.mxu0 0
        %1163 = vmatprep.subr.bf16.mxu0 0
        %1164 = vmatpush1.bf16.msra.mxu0 0
        %1165 = vmatprep.subr.bf16.mxu0 0
        %1166 = vmatpush1.bf16.msra.mxu0 0
        %1167 = vmatprep.subr.bf16.mxu0 0
        %1168 = vmatpush1.bf16.msra.mxu0 0
        %1169 = vmatprep.subr.bf16.mxu0 0
        %1170 = vmatpush1.bf16.msra.mxu0 0
        %1171 = vmatprep.mubr.bf16.mxu0 0
        %1172 = vmatmul.mubr.bf16.gmra.mrb[0].mxu0 %v1137
        %v1173 = vpop.f32.mrb[0].mxu0
        %v1174 = vadd.f32 %v1122, %v1173
        %v1175 = vpop.f32.mrb[0].mxu0
        %v1176 = vpop.f32.mrb[0].mxu0
        %v1177 = vpop.f32.mrb[0].mxu0
        %1178 = vdwg.mxu0
        %1180 = vrot.lane.b32.xlu0 %v1174, 120
        %v1181 = vpop.permute.xlu0 %1180
        %1183 = vrot.lane.b32.xlu0 %v1174, 112
        %v1184 = vpop.permute.xlu0 %1183
        %1186 = vrot.lane.b32.xlu0 %v1174, 104
        %v1187 = vpop.permute.xlu0 %1186
        %v1189 = vpack.c.bf16 %v1174, %v1174
        %v1190 = vpack.c.bf16 %v1181, %v1181
        %v1191 = vpack.c.bf16 %v1184, %v1184
        %v1192 = vpack.c.bf16 %v1187, %v1187
        %1194 = vrot.lane.b32.xlu0 %v1189, 96
        %v1195 = vpop.permute.xlu0 %1194
        %vm1196 = vcmask 64512
        %v1198 = vsel %vm1196, %v1189, 0
        %v1201 = vsel %vm1196, %v1195, 0
        %1203 = vmatprep.subr.bf16.mxu0 0
        %1204 = vmatpush1.bf16.xpose.msra.mxu0 %v1201
        %1205 = vmatprep.subr.bf16.mxu0 0
        %1206 = vmatpush1.bf16.xpose.msra.mxu0 0
        %1207 = vmatprep.subr.bf16.mxu0 0
        %1208 = vmatpush1.bf16.xpose.msra.mxu0 0
        %1209 = vmatprep.subr.bf16.mxu0 0
        %1210 = vmatpush1.bf16.xpose.msra.mxu0 0
        %1211 = vmatprep.subr.bf16.mxu0 0
        %1212 = vmatpush1.bf16.xpose.msra.mxu0 0
        %1213 = vmatprep.subr.bf16.mxu0 0
        %1214 = vmatpush1.bf16.xpose.msra.mxu0 0
        %1215 = vmatprep.subr.bf16.mxu0 0
        %1216 = vmatpush1.bf16.xpose.msra.mxu0 0
        %1217 = vmatprep.subr.bf16.mxu0 0
        %1218 = vmatpush1.bf16.xpose.msra.mxu0 0
        %1219 = vmatprep.subr.bf16.mxu0 0
        %1220 = vmatpush1.bf16.xpose.msra.mxu0 0
        %1221 = vmatprep.subr.bf16.mxu0 0
        %1222 = vmatpush1.bf16.xpose.msra.mxu0 0
        %1223 = vmatprep.subr.bf16.mxu0 0
        %1224 = vmatpush1.bf16.xpose.msra.mxu0 0
        %1225 = vmatprep.subr.bf16.mxu0 0
        %1226 = vmatpush1.bf16.xpose.msra.mxu0 0
        %1227 = vmatprep.subr.bf16.mxu0 0
        %1228 = vmatpush1.bf16.xpose.msra.mxu0 0
        %1229 = vmatprep.subr.bf16.mxu0 0
        %1230 = vmatpush1.bf16.xpose.msra.mxu0 0
        %1231 = vmatprep.subr.bf16.mxu0 0
        %1232 = vmatpush1.bf16.xpose.msra.mxu0 0
        %1233 = vmatprep.subr.bf16.mxu0 0
        %1234 = vmatpush1.bf16.xpose.msra.mxu0 0
        %1235 = vmatprep.mubr.bf16.mxu0 0
        %1236 = vmatmul.mubr.bf16.gmra.mrb[0].mxu0 %v1198
        %v1237 = vpop.f32.mrb[0].mxu0
        %v1238 = vadd.f32 %v1080, %v1237
        %v1239 = vpop.f32.mrb[0].mxu0
        %v1240 = vpop.f32.mrb[0].mxu0
        %v1241 = vpop.f32.mrb[0].mxu0
        %1242 = vdwg.mxu0
        %1244 = vrot.lane.b32.xlu0 %v1190, 96
        %v1245 = vpop.permute.xlu0 %1244
        %v1247 = vsel %vm1196, %v1190, 0
        %v1250 = vsel %vm1196, %v1245, 0
        %1252 = vmatprep.subr.bf16.mxu0 0
        %1253 = vmatpush1.bf16.xpose.msra.mxu0 %v1250
        %1254 = vmatprep.subr.bf16.mxu0 0
        %1255 = vmatpush1.bf16.xpose.msra.mxu0 0
        %1256 = vmatprep.subr.bf16.mxu0 0
        %1257 = vmatpush1.bf16.xpose.msra.mxu0 0
        %1258 = vmatprep.subr.bf16.mxu0 0
        %1259 = vmatpush1.bf16.xpose.msra.mxu0 0
        %1260 = vmatprep.subr.bf16.mxu0 0
        %1261 = vmatpush1.bf16.xpose.msra.mxu0 0
        %1262 = vmatprep.subr.bf16.mxu0 0
        %1263 = vmatpush1.bf16.xpose.msra.mxu0 0
        %1264 = vmatprep.subr.bf16.mxu0 0
        %1265 = vmatpush1.bf16.xpose.msra.mxu0 0
        %1266 = vmatprep.subr.bf16.mxu0 0
        %1267 = vmatpush1.bf16.xpose.msra.mxu0 0
        %1268 = vmatprep.subr.bf16.mxu0 0
        %1269 = vmatpush1.bf16.xpose.msra.mxu0 0
        %1270 = vmatprep.subr.bf16.mxu0 0
        %1271 = vmatpush1.bf16.xpose.msra.mxu0 0
        %1272 = vmatprep.subr.bf16.mxu0 0
        %1273 = vmatpush1.bf16.xpose.msra.mxu0 0
        %1274 = vmatprep.subr.bf16.mxu0 0
        %1275 = vmatpush1.bf16.xpose.msra.mxu0 0
        %1276 = vmatprep.subr.bf16.mxu0 0
        %1277 = vmatpush1.bf16.xpose.msra.mxu0 0
        %1278 = vmatprep.subr.bf16.mxu0 0
        %1279 = vmatpush1.bf16.xpose.msra.mxu0 0
        %1280 = vmatprep.subr.bf16.mxu0 0
        %1281 = vmatpush1.bf16.xpose.msra.mxu0 0
        %1282 = vmatprep.subr.bf16.mxu0 0
        %1283 = vmatpush1.bf16.xpose.msra.mxu0 0
        %1284 = vmatprep.mubr.bf16.mxu0 0
        %1285 = vmatmul.mubr.bf16.gmra.mrb[0].mxu0 %v1247
        %v1286 = vpop.f32.mrb[0].mxu0
        %v1287 = vadd.f32 %v1080, %v1286
        %v1288 = vpop.f32.mrb[0].mxu0
        %v1289 = vpop.f32.mrb[0].mxu0
        %v1290 = vpop.f32.mrb[0].mxu0
        %1291 = vdwg.mxu0
        %1293 = vrot.lane.b32.xlu0 %v1191, 96
        %v1294 = vpop.permute.xlu0 %1293
        %v1296 = vsel %vm1196, %v1191, 0
        %v1299 = vsel %vm1196, %v1294, 0
        %1301 = vmatprep.subr.bf16.mxu0 0
        %1302 = vmatpush1.bf16.xpose.msra.mxu0 %v1299
        %1303 = vmatprep.subr.bf16.mxu0 0
        %1304 = vmatpush1.bf16.xpose.msra.mxu0 0
        %1305 = vmatprep.subr.bf16.mxu0 0
        %1306 = vmatpush1.bf16.xpose.msra.mxu0 0
        %1307 = vmatprep.subr.bf16.mxu0 0
        %1308 = vmatpush1.bf16.xpose.msra.mxu0 0
        %1309 = vmatprep.subr.bf16.mxu0 0
        %1310 = vmatpush1.bf16.xpose.msra.mxu0 0
        %1311 = vmatprep.subr.bf16.mxu0 0
        %1312 = vmatpush1.bf16.xpose.msra.mxu0 0
        %1313 = vmatprep.subr.bf16.mxu0 0
        %1314 = vmatpush1.bf16.xpose.msra.mxu0 0
        %1315 = vmatprep.subr.bf16.mxu0 0
        %1316 = vmatpush1.bf16.xpose.msra.mxu0 0
        %1317 = vmatprep.subr.bf16.mxu0 0
        %1318 = vmatpush1.bf16.xpose.msra.mxu0 0
        %1319 = vmatprep.subr.bf16.mxu0 0
        %1320 = vmatpush1.bf16.xpose.msra.mxu0 0
        %1321 = vmatprep.subr.bf16.mxu0 0
        %1322 = vmatpush1.bf16.xpose.msra.mxu0 0
        %1323 = vmatprep.subr.bf16.mxu0 0
        %1324 = vmatpush1.bf16.xpose.msra.mxu0 0
        %1325 = vmatprep.subr.bf16.mxu0 0
        %1326 = vmatpush1.bf16.xpose.msra.mxu0 0
        %1327 = vmatprep.subr.bf16.mxu0 0
        %1328 = vmatpush1.bf16.xpose.msra.mxu0 0
        %1329 = vmatprep.subr.bf16.mxu0 0
        %1330 = vmatpush1.bf16.xpose.msra.mxu0 0
        %1331 = vmatprep.subr.bf16.mxu0 0
        %1332 = vmatpush1.bf16.xpose.msra.mxu0 0
        %1333 = vmatprep.mubr.bf16.mxu0 0
        %1334 = vmatmul.mubr.bf16.gmra.mrb[0].mxu0 %v1296
        %v1335 = vpop.f32.mrb[0].mxu0
        %v1336 = vadd.f32 %v1080, %v1335
        %v1337 = vpop.f32.mrb[0].mxu0
        %v1338 = vpop.f32.mrb[0].mxu0
        %v1339 = vpop.f32.mrb[0].mxu0
        %1340 = vdwg.mxu0
        %1342 = vrot.lane.b32.xlu0 %v1192, 96
        %v1343 = vpop.permute.xlu0 %1342
        %v1345 = vsel %vm1196, %v1192, 0
        %v1348 = vsel %vm1196, %v1343, 0
        %1350 = vmatprep.subr.bf16.mxu0 0
        %1351 = vmatpush1.bf16.xpose.msra.mxu0 %v1348
        %1352 = vmatprep.subr.bf16.mxu0 0
        %1353 = vmatpush1.bf16.xpose.msra.mxu0 0
        %1354 = vmatprep.subr.bf16.mxu0 0
        %1355 = vmatpush1.bf16.xpose.msra.mxu0 0
        %1356 = vmatprep.subr.bf16.mxu0 0
        %1357 = vmatpush1.bf16.xpose.msra.mxu0 0
        %1358 = vmatprep.subr.bf16.mxu0 0
        %1359 = vmatpush1.bf16.xpose.msra.mxu0 0
        %1360 = vmatprep.subr.bf16.mxu0 0
        %1361 = vmatpush1.bf16.xpose.msra.mxu0 0
        %1362 = vmatprep.subr.bf16.mxu0 0
        %1363 = vmatpush1.bf16.xpose.msra.mxu0 0
        %1364 = vmatprep.subr.bf16.mxu0 0
        %1365 = vmatpush1.bf16.xpose.msra.mxu0 0
        %1366 = vmatprep.subr.bf16.mxu0 0
        %1367 = vmatpush1.bf16.xpose.msra.mxu0 0
        %1368 = vmatprep.subr.bf16.mxu0 0
        %1369 = vmatpush1.bf16.xpose.msra.mxu0 0
        %1370 = vmatprep.subr.bf16.mxu0 0
        %1371 = vmatpush1.bf16.xpose.msra.mxu0 0
        %1372 = vmatprep.subr.bf16.mxu0 0
        %1373 = vmatpush1.bf16.xpose.msra.mxu0 0
        %1374 = vmatprep.subr.bf16.mxu0 0
        %1375 = vmatpush1.bf16.xpose.msra.mxu0 0
        %1376 = vmatprep.subr.bf16.mxu0 0
        %1377 = vmatpush1.bf16.xpose.msra.mxu0 0
        %1378 = vmatprep.subr.bf16.mxu0 0
        %1379 = vmatpush1.bf16.xpose.msra.mxu0 0
        %1380 = vmatprep.subr.bf16.mxu0 0
        %1381 = vmatpush1.bf16.xpose.msra.mxu0 0
        %1382 = vmatprep.mubr.bf16.mxu0 0
        %1383 = vmatmul.mubr.bf16.gmra.mrb[0].mxu0 %v1345
        %v1384 = vpop.f32.mrb[0].mxu0
        %v1385 = vadd.f32 %v1080, %v1384
        %v1386 = vpop.f32.mrb[0].mxu0
        %v1387 = vpop.f32.mrb[0].mxu0
        %v1388 = vpop.f32.mrb[0].mxu0
        %1389 = vdwg.mxu0
        %v1390 = vsel %vm1196, %v1238, -inf
        %1391 = vmax.xlane.f32.xlu0 %v1390
        %v1392 = vpop.xlane.xlu0 %1391
        %v1393 = vsel %vm1196, %v1287, -inf
        %1394 = vmax.xlane.f32.xlu0 %v1393
        %v1395 = vpop.xlane.xlu0 %1394
        %v1396 = vsel %vm1196, %v1336, -inf
        %1397 = vmax.xlane.f32.xlu0 %v1396
        %v1398 = vpop.xlane.xlu0 %1397
        %v1399 = vsel %vm1196, %v1385, -inf
        %1400 = vmax.xlane.f32.xlu0 %v1399
        %v1401 = vpop.xlane.xlu0 %1400
        %v1402 = vsub.f32 %v1238, %v1392
        %v1403 = vsub.f32 %v1287, %v1395
        %v1404 = vsub.f32 %v1336, %v1398
        %v1405 = vsub.f32 %v1385, %v1401
        %v1406 = vmul.f32 %v1402, 1.442695
        %v1407 = vpow.pop %v1406
        %v1408 = vmul.f32 %v1403, 1.442695
        %v1409 = vpow.pop %v1408
        %v1410 = vmul.f32 %v1404, 1.442695
        %v1411 = vpow.pop %v1410
        %v1412 = vmul.f32 %v1405, 1.442695
        %v1413 = vpow.pop %v1412
        %v1414 = vsel %vm1196, %v1407, 0.0
        %1415 = vadd.xlane.f32.xlu0 %v1414
        %v1416 = vpop.xlane.xlu0 %1415
        %v1417 = vsel %vm1196, %v1409, 0.0
        %1418 = vadd.xlane.f32.xlu0 %v1417
        %v1419 = vpop.xlane.xlu0 %1418
        %v1420 = vsel %vm1196, %v1411, 0.0
        %1421 = vadd.xlane.f32.xlu0 %v1420
        %v1422 = vpop.xlane.xlu0 %1421
        %v1423 = vsel %vm1196, %v1413, 0.0
        %1424 = vadd.xlane.f32.xlu0 %v1423
        %v1425 = vpop.xlane.xlu0 %1424
        %v1426 = vrcp.pop %v1416
        %v1427 = vrcp.pop %v1419
        %v1428 = vrcp.pop %v1422
        %v1429 = vrcp.pop %v1425
        %v1430 = vmul.f32 %v1407, %v1426
        %v1431 = vmul.f32 %v1409, %v1427
        %v1432 = vmul.f32 %v1411, %v1428
        %v1433 = vmul.f32 %v1413, %v1429
        %v1434 = vpack.c.bf16 %v1430, %v1430
        %v1435 = vpack.c.bf16 %v1431, %v1431
        %v1436 = vpack.c.bf16 %v1432, %v1432
        %v1437 = vpack.c.bf16 %v1433, %v1433
        %1438 = vrot.lane.b32.xlu0 %v1189, 64
        %v1439 = vpop.permute.xlu0 %1438
        %v1441 = vsel %vm1196, %v1434, 0
        %vm1443 = vcmask 1043456
        %v1445 = vsel %vm1443, %v1439, 0
        %1447 = vmatprep.subr.bf16.mxu0 0
        %1448 = vmatpush1.bf16.msra.mxu0 %v1445
        %1449 = vmatprep.subr.bf16.mxu0 0
        %1450 = vmatpush1.bf16.msra.mxu0 0
        %1451 = vmatprep.subr.bf16.mxu0 0
        %1452 = vmatpush1.bf16.msra.mxu0 0
        %1453 = vmatprep.subr.bf16.mxu0 0
        %1454 = vmatpush1.bf16.msra.mxu0 0
        %1455 = vmatprep.subr.bf16.mxu0 0
        %1456 = vmatpush1.bf16.msra.mxu0 0
        %1457 = vmatprep.subr.bf16.mxu0 0
        %1458 = vmatpush1.bf16.msra.mxu0 0
        %1459 = vmatprep.subr.bf16.mxu0 0
        %1460 = vmatpush1.bf16.msra.mxu0 0
        %1461 = vmatprep.subr.bf16.mxu0 0
        %1462 = vmatpush1.bf16.msra.mxu0 0
        %1463 = vmatprep.subr.bf16.mxu0 0
        %1464 = vmatpush1.bf16.msra.mxu0 0
        %1465 = vmatprep.subr.bf16.mxu0 0
        %1466 = vmatpush1.bf16.msra.mxu0 0
        %1467 = vmatprep.subr.bf16.mxu0 0
        %1468 = vmatpush1.bf16.msra.mxu0 0
        %1469 = vmatprep.subr.bf16.mxu0 0
        %1470 = vmatpush1.bf16.msra.mxu0 0
        %1471 = vmatprep.subr.bf16.mxu0 0
        %1472 = vmatpush1.bf16.msra.mxu0 0
        %1473 = vmatprep.subr.bf16.mxu0 0
        %1474 = vmatpush1.bf16.msra.mxu0 0
        %1475 = vmatprep.subr.bf16.mxu0 0
        %1476 = vmatpush1.bf16.msra.mxu0 0
        %1477 = vmatprep.subr.bf16.mxu0 0
        %1478 = vmatpush1.bf16.msra.mxu0 0
        %1479 = vmatprep.mubr.bf16.mxu0 0
        %1480 = vmatmul.mubr.bf16.gmra.mrb[0].mxu0 %v1441
        %v1481 = vpop.f32.mrb[0].mxu0
        %v1482 = vadd.f32 0.0, %v1481
        %v1483 = vpop.f32.mrb[0].mxu0
        %v1484 = vpop.f32.mrb[0].mxu0
        %v1485 = vpop.f32.mrb[0].mxu0
        %1486 = vdwg.mxu0
        %1487 = vrot.lane.b32.xlu0 %v1190, 64
        %v1488 = vpop.permute.xlu0 %1487
        %v1490 = vsel %vm1196, %v1435, 0
        %v1493 = vsel %vm1443, %v1488, 0
        %1495 = vmatprep.subr.bf16.mxu0 0
        %1496 = vmatpush1.bf16.msra.mxu0 %v1493
        %1497 = vmatprep.subr.bf16.mxu0 0
        %1498 = vmatpush1.bf16.msra.mxu0 0
        %1499 = vmatprep.subr.bf16.mxu0 0
        %1500 = vmatpush1.bf16.msra.mxu0 0
        %1501 = vmatprep.subr.bf16.mxu0 0
        %1502 = vmatpush1.bf16.msra.mxu0 0
        %1503 = vmatprep.subr.bf16.mxu0 0
        %1504 = vmatpush1.bf16.msra.mxu0 0
        %1505 = vmatprep.subr.bf16.mxu0 0
        %1506 = vmatpush1.bf16.msra.mxu0 0
        %1507 = vmatprep.subr.bf16.mxu0 0
        %1508 = vmatpush1.bf16.msra.mxu0 0
        %1509 = vmatprep.subr.bf16.mxu0 0
        %1510 = vmatpush1.bf16.msra.mxu0 0
        %1511 = vmatprep.subr.bf16.mxu0 0
        %1512 = vmatpush1.bf16.msra.mxu0 0
        %1513 = vmatprep.subr.bf16.mxu0 0
        %1514 = vmatpush1.bf16.msra.mxu0 0
        %1515 = vmatprep.subr.bf16.mxu0 0
        %1516 = vmatpush1.bf16.msra.mxu0 0
        %1517 = vmatprep.subr.bf16.mxu0 0
        %1518 = vmatpush1.bf16.msra.mxu0 0
        %1519 = vmatprep.subr.bf16.mxu0 0
        %1520 = vmatpush1.bf16.msra.mxu0 0
        %1521 = vmatprep.subr.bf16.mxu0 0
        %1522 = vmatpush1.bf16.msra.mxu0 0
        %1523 = vmatprep.subr.bf16.mxu0 0
        %1524 = vmatpush1.bf16.msra.mxu0 0
        %1525 = vmatprep.subr.bf16.mxu0 0
        %1526 = vmatpush1.bf16.msra.mxu0 0
        %1527 = vmatprep.mubr.bf16.mxu0 0
        %1528 = vmatmul.mubr.bf16.gmra.mrb[0].mxu0 %v1490
        %v1529 = vpop.f32.mrb[0].mxu0
        %v1530 = vadd.f32 0.0, %v1529
        %v1531 = vpop.f32.mrb[0].mxu0
        %v1532 = vpop.f32.mrb[0].mxu0
        %v1533 = vpop.f32.mrb[0].mxu0
        %1534 = vdwg.mxu0
        %1535 = vrot.lane.b32.xlu0 %v1191, 64
        %v1536 = vpop.permute.xlu0 %1535
        %v1538 = vsel %vm1196, %v1436, 0
        %v1541 = vsel %vm1443, %v1536, 0
        %1543 = vmatprep.subr.bf16.mxu0 0
        %1544 = vmatpush1.bf16.msra.mxu0 %v1541
        %1545 = vmatprep.subr.bf16.mxu0 0
        %1546 = vmatpush1.bf16.msra.mxu0 0
        %1547 = vmatprep.subr.bf16.mxu0 0
        %1548 = vmatpush1.bf16.msra.mxu0 0
        %1549 = vmatprep.subr.bf16.mxu0 0
        %1550 = vmatpush1.bf16.msra.mxu0 0
        %1551 = vmatprep.subr.bf16.mxu0 0
        %1552 = vmatpush1.bf16.msra.mxu0 0
        %1553 = vmatprep.subr.bf16.mxu0 0
        %1554 = vmatpush1.bf16.msra.mxu0 0
        %1555 = vmatprep.subr.bf16.mxu0 0
        %1556 = vmatpush1.bf16.msra.mxu0 0
        %1557 = vmatprep.subr.bf16.mxu0 0
        %1558 = vmatpush1.bf16.msra.mxu0 0
        %1559 = vmatprep.subr.bf16.mxu0 0
        %1560 = vmatpush1.bf16.msra.mxu0 0
        %1561 = vmatprep.subr.bf16.mxu0 0
        %1562 = vmatpush1.bf16.msra.mxu0 0
        %1563 = vmatprep.subr.bf16.mxu0 0
        %1564 = vmatpush1.bf16.msra.mxu0 0
        %1565 = vmatprep.subr.bf16.mxu0 0
        %1566 = vmatpush1.bf16.msra.mxu0 0
        %1567 = vmatprep.subr.bf16.mxu0 0
        %1568 = vmatpush1.bf16.msra.mxu0 0
        %1569 = vmatprep.subr.bf16.mxu0 0
        %1570 = vmatpush1.bf16.msra.mxu0 0
        %1571 = vmatprep.subr.bf16.mxu0 0
        %1572 = vmatpush1.bf16.msra.mxu0 0
        %1573 = vmatprep.subr.bf16.mxu0 0
        %1574 = vmatpush1.bf16.msra.mxu0 0
        %1575 = vmatprep.mubr.bf16.mxu0 0
        %1576 = vmatmul.mubr.bf16.gmra.mrb[0].mxu0 %v1538
        %v1577 = vpop.f32.mrb[0].mxu0
        %v1578 = vadd.f32 0.0, %v1577
        %v1579 = vpop.f32.mrb[0].mxu0
        %v1580 = vpop.f32.mrb[0].mxu0
        %v1581 = vpop.f32.mrb[0].mxu0
        %1582 = vdwg.mxu0
        %1583 = vrot.lane.b32.xlu0 %v1192, 64
        %v1584 = vpop.permute.xlu0 %1583
        %v1586 = vsel %vm1196, %v1437, 0
        %v1589 = vsel %vm1443, %v1584, 0
        %1591 = vmatprep.subr.bf16.mxu0 0
        %1592 = vmatpush1.bf16.msra.mxu0 %v1589
        %1593 = vmatprep.subr.bf16.mxu0 0
        %1594 = vmatpush1.bf16.msra.mxu0 0
        %1595 = vmatprep.subr.bf16.mxu0 0
        %1596 = vmatpush1.bf16.msra.mxu0 0
        %1597 = vmatprep.subr.bf16.mxu0 0
        %1598 = vmatpush1.bf16.msra.mxu0 0
        %1599 = vmatprep.subr.bf16.mxu0 0
        %1600 = vmatpush1.bf16.msra.mxu0 0
        %1601 = vmatprep.subr.bf16.mxu0 0
        %1602 = vmatpush1.bf16.msra.mxu0 0
        %1603 = vmatprep.subr.bf16.mxu0 0
        %1604 = vmatpush1.bf16.msra.mxu0 0
        %1605 = vmatprep.subr.bf16.mxu0 0
        %1606 = vmatpush1.bf16.msra.mxu0 0
        %1607 = vmatprep.subr.bf16.mxu0 0
        %1608 = vmatpush1.bf16.msra.mxu0 0
        %1609 = vmatprep.subr.bf16.mxu0 0
        %1610 = vmatpush1.bf16.msra.mxu0 0
        %1611 = vmatprep.subr.bf16.mxu0 0
        %1612 = vmatpush1.bf16.msra.mxu0 0
        %1613 = vmatprep.subr.bf16.mxu0 0
        %1614 = vmatpush1.bf16.msra.mxu0 0
        %1615 = vmatprep.subr.bf16.mxu0 0
        %1616 = vmatpush1.bf16.msra.mxu0 0
        %1617 = vmatprep.subr.bf16.mxu0 0
        %1618 = vmatpush1.bf16.msra.mxu0 0
        %1619 = vmatprep.subr.bf16.mxu0 0
        %1620 = vmatpush1.bf16.msra.mxu0 0
        %1621 = vmatprep.subr.bf16.mxu0 0
        %1622 = vmatpush1.bf16.msra.mxu0 0
        %1623 = vmatprep.mubr.bf16.mxu0 0
        %1624 = vmatmul.mubr.bf16.gmra.mrb[0].mxu0 %v1586
        %v1625 = vpop.f32.mrb[0].mxu0
        %v1626 = vadd.f32 0.0, %v1625
        %v1627 = vpop.f32.mrb[0].mxu0
        %v1628 = vpop.f32.mrb[0].mxu0
        %v1629 = vpop.f32.mrb[0].mxu0
        %1630 = vdwg.mxu0
        %1632 = vrot.lane.b32.xlu0 %v1530, 8
        %v1633 = vpop.permute.xlu0 %1632
        %1636 = vrot.lane.b32.xlu0 %v1578, 16
        %v1637 = vpop.permute.xlu0 %1636
        %1640 = vrot.lane.b32.xlu0 %v1626, 24
        %v1641 = vpop.permute.xlu0 %1640
        %v1643 = vsel %vm1196, %v1482, %v1633
        %vm1644 = vcmask 130048
        %v1645 = vsel %vm1644, %v1643, %v1637
        %vm1646 = vcmask 195584
        %v1647 = vsel %vm1646, %v1645, %v1641
        %v1648 = vpack.c.bf16 %v1647, %v1647
        %v1649 = vld [vmem:[%s7] sm:$0xf]
        %v1650 = vld [vmem:[%s7 + $0x4] sm:$0xf]
        %v1651 = vld [vmem:[%s7 + $0x8] sm:$0xf]
        %v1652 = vld [vmem:[%s7 + $0xc] sm:$0xf]
        %v1653 = vld [vmem:[%s8] sm:$0x1]
        %v1655 = vlaneseq
        %v1656 = vshrl.u32 %v1655, 7
        %v1657 = vsub.s32 0, %v1656
        %v1658 = vrot.slane %v1653, %v1657
        %v1664 = vunpack.c.l.b16 %v1649
        %v1665 = vunpack.c.l.b16 %v1650
        %v1666 = vunpack.c.l.b16 %v1651
        %v1667 = vunpack.c.l.b16 %v1652
        %v1668 = vpack.c.b16 %v1665, %v1664
        %v1669 = vpack.c.b16 %v1667, %v1666
        %v1673 = vsel %vm1083, %v1648, 0
        %1675 = vmatprep.subr.bf16.mxu0 0
        %1676 = vmatpush1.bf16.msra.mxu0 %v1668
        %1677 = vmatprep.subr.bf16.mxu0 0
        %1678 = vmatpush1.bf16.msra.mxu0 %v1669
        %1679 = vmatprep.subr.bf16.mxu0 0
        %1680 = vmatpush1.bf16.msra.mxu0 0
        %1681 = vmatprep.subr.bf16.mxu0 0
        %1682 = vmatpush1.bf16.msra.mxu0 0
        %1683 = vmatprep.subr.bf16.mxu0 0
        %1684 = vmatpush1.bf16.msra.mxu0 0
        %1685 = vmatprep.subr.bf16.mxu0 0
        %1686 = vmatpush1.bf16.msra.mxu0 0
        %1687 = vmatprep.subr.bf16.mxu0 0
        %1688 = vmatpush1.bf16.msra.mxu0 0
        %1689 = vmatprep.subr.bf16.mxu0 0
        %1690 = vmatpush1.bf16.msra.mxu0 0
        %1691 = vmatprep.subr.bf16.mxu0 0
        %1692 = vmatpush1.bf16.msra.mxu0 0
        %1693 = vmatprep.subr.bf16.mxu0 0
        %1694 = vmatpush1.bf16.msra.mxu0 0
        %1695 = vmatprep.subr.bf16.mxu0 0
        %1696 = vmatpush1.bf16.msra.mxu0 0
        %1697 = vmatprep.subr.bf16.mxu0 0
        %1698 = vmatpush1.bf16.msra.mxu0 0
        %1699 = vmatprep.subr.bf16.mxu0 0
        %1700 = vmatpush1.bf16.msra.mxu0 0
        %1701 = vmatprep.subr.bf16.mxu0 0
        %1702 = vmatpush1.bf16.msra.mxu0 0
        %1703 = vmatprep.subr.bf16.mxu0 0
        %1704 = vmatpush1.bf16.msra.mxu0 0
        %1705 = vmatprep.subr.bf16.mxu0 0
        %1706 = vmatpush1.bf16.msra.mxu0 0
        %1707 = vmatprep.mubr.bf16.mxu0 0
        %1708 = vmatmul.mubr.bf16.gmra.mrb[0].mxu0 %v1673
        %v1709 = vpop.f32.mrb[0].mxu0
        %v1710 = vadd.f32 %v1658, %v1709
        %v1711 = vpop.f32.mrb[0].mxu0
        %v1712 = vpop.f32.mrb[0].mxu0
        %v1713 = vpop.f32.mrb[0].mxu0
        %1714 = vdwg.mxu0
        %v1715 = vadd.f32 %v1072, %v1710
        %v1716 = vld [vmem:[%s9] sm:$0x1]
        %v1717 = vld [vmem:[%s10] sm:$0x1]
        %v1718 = vsel %vm1083, %v1715, 0.0
        %1719 = vadd.xlane.f32.xlu0 %v1718
        %v1720 = vpop.xlane.xlu0 %1719
        %v1721 = vmul.f32 %v1720, %v1087
        %v1722 = vsub.f32 %v1715, %v1721
        %v1723 = vmul.f32 %v1722, %v1722
        %v1724 = vsel %vm1083, %v1723, 0.0
        %1725 = vadd.xlane.f32.xlu0 %v1724
        %v1726 = vpop.xlane.xlu0 %1725
        %v1727 = vmul.f32 %v1726, %v1087
        %v1728 = vadd.f32 %v1727, 1e-06
        %v1729 = vrsqrt.pop %v1728
        %v1730 = vmul.f32 %v1722, %v1729
        %v1732 = vlaneseq
        %v1733 = vshrl.u32 %v1732, 7
        %v1734 = vsub.s32 0, %v1733
        %v1735 = vrot.slane %v1716, %v1734
        %v1737 = vmul.f32 %v1730, %v1735
        %v1739 = vlaneseq
        %v1740 = vshrl.u32 %v1739, 7
        %v1741 = vsub.s32 0, %v1740
        %v1742 = vrot.slane %v1717, %v1741
        %v1744 = vadd.f32 %v1737, %v1742
        %v1745 = vpack.c.bf16 %v1744, %v1744
        %v1746 = vld [vmem:[%s11] sm:$0xf]
        %v1747 = vld [vmem:[%s11 + $0x4] sm:$0xf]
        %v1748 = vld [vmem:[%s11 + $0x8] sm:$0xf]
        %v1749 = vld [vmem:[%s11 + $0xc] sm:$0xf]
        %v1750 = vld [vmem:[%s12] sm:$0x1]
        %v1752 = vlaneseq
        %v1753 = vshrl.u32 %v1752, 7
        %v1754 = vsub.s32 0, %v1753
        %v1755 = vrot.slane %v1750, %v1754
        %v1761 = vunpack.c.l.b16 %v1746
        %v1762 = vunpack.c.l.b16 %v1747
        %v1763 = vunpack.c.l.b16 %v1748
        %v1764 = vunpack.c.l.b16 %v1749
        %v1765 = vpack.c.b16 %v1762, %v1761
        %v1766 = vpack.c.b16 %v1764, %v1763
        %v1770 = vsel %vm1083, %v1745, 0
        %1772 = vmatprep.subr.bf16.mxu0 0
        %1773 = vmatpush1.bf16.msra.mxu0 %v1765
        %1774 = vmatprep.subr.bf16.mxu0 0
        %1775 = vmatpush1.bf16.msra.mxu0 %v1766
        %1776 = vmatprep.subr.bf16.mxu0 0
        %1777 = vmatpush1.bf16.msra.mxu0 0
        %1778 = vmatprep.subr.bf16.mxu0 0
        %1779 = vmatpush1.bf16.msra.mxu0 0
        %1780 = vmatprep.subr.bf16.mxu0 0
        %1781 = vmatpush1.bf16.msra.mxu0 0
        %1782 = vmatprep.subr.bf16.mxu0 0
        %1783 = vmatpush1.bf16.msra.mxu0 0
        %1784 = vmatprep.subr.bf16.mxu0 0
        %1785 = vmatpush1.bf16.msra.mxu0 0
        %1786 = vmatprep.subr.bf16.mxu0 0
        %1787 = vmatpush1.bf16.msra.mxu0 0
        %1788 = vmatprep.subr.bf16.mxu0 0
        %1789 = vmatpush1.bf16.msra.mxu0 0
        %1790 = vmatprep.subr.bf16.mxu0 0
        %1791 = vmatpush1.bf16.msra.mxu0 0
        %1792 = vmatprep.subr.bf16.mxu0 0
        %1793 = vmatpush1.bf16.msra.mxu0 0
        %1794 = vmatprep.subr.bf16.mxu0 0
        %1795 = vmatpush1.bf16.msra.mxu0 0
        %1796 = vmatprep.subr.bf16.mxu0 0
        %1797 = vmatpush1.bf16.msra.mxu0 0
        %1798 = vmatprep.subr.bf16.mxu0 0
        %1799 = vmatpush1.bf16.msra.mxu0 0
        %1800 = vmatprep.subr.bf16.mxu0 0
        %1801 = vmatpush1.bf16.msra.mxu0 0
        %1802 = vmatprep.subr.bf16.mxu0 0
        %1803 = vmatpush1.bf16.msra.mxu0 0
        %1804 = vmatprep.mubr.bf16.mxu0 0
        %1805 = vmatmul.mubr.bf16.gmra.mrb[0].mxu0 %v1770
        %v1806 = vpop.f32.mrb[0].mxu0
        %v1807 = vadd.f32 %v1755, %v1806
        %v1808 = vpop.f32.mrb[0].mxu0
        %v1809 = vpop.f32.mrb[0].mxu0
        %v1810 = vpop.f32.mrb[0].mxu0
        %1811 = vdwg.mxu0
        %v1812 = vmul.f32 %v1807, 0.5
        %v1813 = vmul.f32 %v1807, 0.044715
        %v1814 = vmul.f32 %v1813, %v1807
        %v1815 = vmul.f32 %v1814, %v1807
        %v1816 = vadd.f32 %v1807, %v1815
        %v1817 = vmul.f32 %v1816, 0.7978846
        %v1818 = vtanh.pop %v1817
        %v1819 = vadd.f32 %v1818, 1.0
        %v1820 = vmul.f32 %v1812, %v1819
        %v1821 = vpack.c.bf16 %v1820, %v1820
        %v1822 = vld [vmem:[%s13] sm:$0xf]
        %v1823 = vld [vmem:[%s13 + $0x4] sm:$0xf]
        %v1824 = vld [vmem:[%s13 + $0x8] sm:$0xf]
        %v1825 = vld [vmem:[%s13 + $0xc] sm:$0xf]
        %v1826 = vld [vmem:[%s13 + $0x10] sm:$0xf]
        %v1827 = vld [vmem:[%s13 + $0x14] sm:$0xf]
        %v1828 = vld [vmem:[%s13 + $0x18] sm:$0xf]
        %v1829 = vld [vmem:[%s13 + $0x1c] sm:$0xf]
        %v1830 = vld [vmem:[%s13 + $0x20] sm:$0xf]
        %v1831 = vld [vmem:[%s13 + $0x24] sm:$0xf]
        %v1832 = vld [vmem:[%s13 + $0x28] sm:$0xf]
        %v1833 = vld [vmem:[%s13 + $0x2c] sm:$0xf]
        %v1834 = vld [vmem:[%s13 + $0x30] sm:$0xf]
        %v1835 = vld [vmem:[%s13 + $0x34] sm:$0xf]
        %v1836 = vld [vmem:[%s13 + $0x38] sm:$0xf]
        %v1837 = vld [vmem:[%s13 + $0x3c] sm:$0xf]
        %v1838 = vld [vmem:[%s14] sm:$0x1]
        %v1840 = vlaneseq
        %v1841 = vshrl.u32 %v1840, 7
        %v1842 = vsub.s32 0, %v1841
        %v1843 = vrot.slane %v1838, %v1842
        %v1861 = vunpack.c.l.b16 %v1822
        %v1862 = vunpack.c.l.b16 %v1823
        %v1863 = vunpack.c.l.b16 %v1824
        %v1864 = vunpack.c.l.b16 %v1825
        %v1865 = vunpack.c.l.b16 %v1826
        %v1866 = vunpack.c.l.b16 %v1827
        %v1867 = vunpack.c.l.b16 %v1828
        %v1868 = vunpack.c.l.b16 %v1829
        %v1869 = vunpack.c.l.b16 %v1830
        %v1870 = vunpack.c.l.b16 %v1831
        %v1871 = vunpack.c.l.b16 %v1832
        %v1872 = vunpack.c.l.b16 %v1833
        %v1873 = vunpack.c.l.b16 %v1834
        %v1874 = vunpack.c.l.b16 %v1835
        %v1875 = vunpack.c.l.b16 %v1836
        %v1876 = vunpack.c.l.b16 %v1837
        %v1877 = vpack.c.b16 %v1862, %v1861
        %v1878 = vpack.c.b16 %v1864, %v1863
        %v1879 = vpack.c.b16 %v1866, %v1865
        %v1880 = vpack.c.b16 %v1868, %v1867
        %v1881 = vpack.c.b16 %v1870, %v1869
        %v1882 = vpack.c.b16 %v1872, %v1871
        %v1883 = vpack.c.b16 %v1874, %v1873
        %v1884 = vpack.c.b16 %v1876, %v1875
        %1893 = vmatprep.subr.bf16.mxu0 0
        %1894 = vmatpush1.bf16.msra.mxu0 %v1877
        %1895 = vmatprep.subr.bf16.mxu0 0
        %1896 = vmatpush1.bf16.msra.mxu0 %v1878
        %1897 = vmatprep.subr.bf16.mxu0 0
        %1898 = vmatpush1.bf16.msra.mxu0 %v1879
        %1899 = vmatprep.subr.bf16.mxu0 0
        %1900 = vmatpush1.bf16.msra.mxu0 %v1880
        %1901 = vmatprep.subr.bf16.mxu0 0
        %1902 = vmatpush1.bf16.msra.mxu0 %v1881
        %1903 = vmatprep.subr.bf16.mxu0 0
        %1904 = vmatpush1.bf16.msra.mxu0 %v1882
        %1905 = vmatprep.subr.bf16.mxu0 0
        %1906 = vmatpush1.bf16.msra.mxu0 %v1883
        %1907 = vmatprep.subr.bf16.mxu0 0
        %1908 = vmatpush1.bf16.msra.mxu0 %v1884
        %1909 = vmatprep.subr.bf16.mxu0 0
        %1910 = vmatpush1.bf16.msra.mxu0 0
        %1911 = vmatprep.subr.bf16.mxu0 0
        %1912 = vmatpush1.bf16.msra.mxu0 0
        %1913 = vmatprep.subr.bf16.mxu0 0
        %1914 = vmatpush1.bf16.msra.mxu0 0
        %1915 = vmatprep.subr.bf16.mxu0 0
        %1916 = vmatpush1.bf16.msra.mxu0 0
        %1917 = vmatprep.subr.bf16.mxu0 0
        %1918 = vmatpush1.bf16.msra.mxu0 0
        %1919 = vmatprep.subr.bf16.mxu0 0
        %1920 = vmatpush1.bf16.msra.mxu0 0
        %1921 = vmatprep.subr.bf16.mxu0 0
        %1922 = vmatpush1.bf16.msra.mxu0 0
        %1923 = vmatprep.subr.bf16.mxu0 0
        %1924 = vmatpush1.bf16.msra.mxu0 0
        %1925 = vmatprep.mubr.bf16.mxu0 0
        %1926 = vmatmul.mubr.bf16.gmra.mrb[0].mxu0 %v1821
        %v1927 = vpop.f32.mrb[0].mxu0
        %v1928 = vadd.f32 %v1843, %v1927
        %v1929 = vpop.f32.mrb[0].mxu0
        %v1930 = vpop.f32.mrb[0].mxu0
        %v1931 = vpop.f32.mrb[0].mxu0
        %1932 = vdwg.mxu0
        %v1933 = vadd.f32 %v1715, %v1928
        %s1934 = scalar_lea.vmem %s3, 1
        %v1935 = vld [vmem:[%s1934] sm:$0x1]
        %s1936 = scalar_lea.vmem %s4, 1
        %v1937 = vld [vmem:[%s1936] sm:$0x1]
        %v1938 = vsel %vm1083, %v1933, 0.0
        %1939 = vadd.xlane.f32.xlu0 %v1938
        %v1940 = vpop.xlane.xlu0 %1939
        %v1941 = vmul.f32 %v1940, %v1087
        %v1942 = vsub.f32 %v1933, %v1941
        %v1943 = vmul.f32 %v1942, %v1942
        %v1944 = vsel %vm1083, %v1943, 0.0
        %1945 = vadd.xlane.f32.xlu0 %v1944
        %v1946 = vpop.xlane.xlu0 %1945
        %v1947 = vmul.f32 %v1946, %v1087
        %v1948 = vadd.f32 %v1947, 1e-06
        %v1949 = vrsqrt.pop %v1948
        %v1950 = vmul.f32 %v1942, %v1949
        %v1952 = vlaneseq
        %v1953 = vshrl.u32 %v1952, 7
        %v1954 = vsub.s32 0, %v1953
        %v1955 = vrot.slane %v1935, %v1954
        %v1957 = vmul.f32 %v1950, %v1955
        %v1959 = vlaneseq
        %v1960 = vshrl.u32 %v1959, 7
        %v1961 = vsub.s32 0, %v1960
        %v1962 = vrot.slane %v1937, %v1961
        %v1964 = vadd.f32 %v1957, %v1962
        %v1965 = vpack.c.bf16 %v1964, %v1964
        %s1966 = scalar_lea.vmem %s5, 16
        %v1967 = vld [vmem:[%s1966] sm:$0xf]
        %v1968 = vld [vmem:[%s1966 + $0x4] sm:$0xf]
        %v1969 = vld [vmem:[%s1966 + $0x8] sm:$0xf]
        %v1970 = vld [vmem:[%s1966 + $0xc] sm:$0xf]
        %s1971 = scalar_lea.vmem %s6, 1
        %v1972 = vld [vmem:[%s1971] sm:$0x1]
        %v1974 = vlaneseq
        %v1975 = vshrl.u32 %v1974, 7
        %v1976 = vsub.s32 0, %v1975
        %v1977 = vrot.slane %v1972, %v1976
        %v1983 = vunpack.c.l.b16 %v1967
        %v1984 = vunpack.c.l.b16 %v1968
        %v1985 = vunpack.c.l.b16 %v1969
        %v1986 = vunpack.c.l.b16 %v1970
        %v1987 = vpack.c.b16 %v1984, %v1983
        %v1988 = vpack.c.b16 %v1986, %v1985
        %v1992 = vsel %vm1083, %v1965, 0
        %1994 = vmatprep.subr.bf16.mxu0 0
        %1995 = vmatpush1.bf16.msra.mxu0 %v1987
        %1996 = vmatprep.subr.bf16.mxu0 0
        %1997 = vmatpush1.bf16.msra.mxu0 %v1988
        %1998 = vmatprep.subr.bf16.mxu0 0
        %1999 = vmatpush1.bf16.msra.mxu0 0
        %2000 = vmatprep.subr.bf16.mxu0 0
        %2001 = vmatpush1.bf16.msra.mxu0 0
        %2002 = vmatprep.subr.bf16.mxu0 0
        %2003 = vmatpush1.bf16.msra.mxu0 0
        %2004 = vmatprep.subr.bf16.mxu0 0
        %2005 = vmatpush1.bf16.msra.mxu0 0
        %2006 = vmatprep.subr.bf16.mxu0 0
        %2007 = vmatpush1.bf16.msra.mxu0 0
        %2008 = vmatprep.subr.bf16.mxu0 0
        %2009 = vmatpush1.bf16.msra.mxu0 0
        %2010 = vmatprep.subr.bf16.mxu0 0
        %2011 = vmatpush1.bf16.msra.mxu0 0
        %2012 = vmatprep.subr.bf16.mxu0 0
        %2013 = vmatpush1.bf16.msra.mxu0 0
        %2014 = vmatprep.subr.bf16.mxu0 0
        %2015 = vmatpush1.bf16.msra.mxu0 0
        %2016 = vmatprep.subr.bf16.mxu0 0
        %2017 = vmatpush1.bf16.msra.mxu0 0
        %2018 = vmatprep.subr.bf16.mxu0 0
        %2019 = vmatpush1.bf16.msra.mxu0 0
        %2020 = vmatprep.subr.bf16.mxu0 0
        %2021 = vmatpush1.bf16.msra.mxu0 0
        %2022 = vmatprep.subr.bf16.mxu0 0
        %2023 = vmatpush1.bf16.msra.mxu0 0
        %2024 = vmatprep.subr.bf16.mxu0 0
        %2025 = vmatpush1.bf16.msra.mxu0 0
        %2026 = vmatprep.mubr.bf16.mxu0 0
        %2027 = vmatmul.mubr.bf16.gmra.mrb[0].mxu0 %v1992
        %v2028 = vpop.f32.mrb[0].mxu0
        %v2029 = vadd.f32 %v1977, %v2028
        %v2030 = vpop.f32.mrb[0].mxu0
        %v2031 = vpop.f32.mrb[0].mxu0
        %v2032 = vpop.f32.mrb[0].mxu0
        %2033 = vdwg.mxu0
        %2035 = vrot.lane.b32.xlu0 %v2029, 120
        %v2036 = vpop.permute.xlu0 %2035
        %2038 = vrot.lane.b32.xlu0 %v2029, 112
        %v2039 = vpop.permute.xlu0 %2038
        %2041 = vrot.lane.b32.xlu0 %v2029, 104
        %v2042 = vpop.permute.xlu0 %2041
        %v2044 = vpack.c.bf16 %v2029, %v2029
        %v2045 = vpack.c.bf16 %v2036, %v2036
        %v2046 = vpack.c.bf16 %v2039, %v2039
        %v2047 = vpack.c.bf16 %v2042, %v2042
        %2049 = vrot.lane.b32.xlu0 %v2044, 96
        %v2050 = vpop.permute.xlu0 %2049
        %v2052 = vsel %vm1196, %v2044, 0
        %v2055 = vsel %vm1196, %v2050, 0
        %2057 = vmatprep.subr.bf16.mxu0 0
        %2058 = vmatpush1.bf16.xpose.msra.mxu0 %v2055
        %2059 = vmatprep.subr.bf16.mxu0 0
        %2060 = vmatpush1.bf16.xpose.msra.mxu0 0
        %2061 = vmatprep.subr.bf16.mxu0 0
        %2062 = vmatpush1.bf16.xpose.msra.mxu0 0
        %2063 = vmatprep.subr.bf16.mxu0 0
        %2064 = vmatpush1.bf16.xpose.msra.mxu0 0
        %2065 = vmatprep.subr.bf16.mxu0 0
        %2066 = vmatpush1.bf16.xpose.msra.mxu0 0
        %2067 = vmatprep.subr.bf16.mxu0 0
        %2068 = vmatpush1.bf16.xpose.msra.mxu0 0
        %2069 = vmatprep.subr.bf16.mxu0 0
        %2070 = vmatpush1.bf16.xpose.msra.mxu0 0
        %2071 = vmatprep.subr.bf16.mxu0 0
        %2072 = vmatpush1.bf16.xpose.msra.mxu0 0
        %2073 = vmatprep.subr.bf16.mxu0 0
        %2074 = vmatpush1.bf16.xpose.msra.mxu0 0
        %2075 = vmatprep.subr.bf16.mxu0 0
        %2076 = vmatpush1.bf16.xpose.msra.mxu0 0
        %2077 = vmatprep.subr.bf16.mxu0 0
        %2078 = vmatpush1.bf16.xpose.msra.mxu0 0
        %2079 = vmatprep.subr.bf16.mxu0 0
        %2080 = vmatpush1.bf16.xpose.msra.mxu0 0
        %2081 = vmatprep.subr.bf16.mxu0 0
        %2082 = vmatpush1.bf16.xpose.msra.mxu0 0
        %2083 = vmatprep.subr.bf16.mxu0 0
        %2084 = vmatpush1.bf16.xpose.msra.mxu0 0
        %2085 = vmatprep.subr.bf16.mxu0 0
        %2086 = vmatpush1.bf16.xpose.msra.mxu0 0
        %2087 = vmatprep.subr.bf16.mxu0 0
        %2088 = vmatpush1.bf16.xpose.msra.mxu0 0
        %2089 = vmatprep.mubr.bf16.mxu0 0
        %2090 = vmatmul.mubr.bf16.gmra.mrb[0].mxu0 %v2052
        %v2091 = vpop.f32.mrb[0].mxu0
        %v2092 = vadd.f32 %v1080, %v2091
        %v2093 = vpop.f32.mrb[0].mxu0
        %v2094 = vpop.f32.mrb[0].mxu0
        %v2095 = vpop.f32.mrb[0].mxu0
        %2096 = vdwg.mxu0
        %2098 = vrot.lane.b32.xlu0 %v2045, 96
        %v2099 = vpop.permute.xlu0 %2098
        %v2101 = vsel %vm1196, %v2045, 0
        %v2104 = vsel %vm1196, %v2099, 0
        %2106 = vmatprep.subr.bf16.mxu0 0
        %2107 = vmatpush1.bf16.xpose.msra.mxu0 %v2104
        %2108 = vmatprep.subr.bf16.mxu0 0
        %2109 = vmatpush1.bf16.xpose.msra.mxu0 0
        %2110 = vmatprep.subr.bf16.mxu0 0
        %2111 = vmatpush1.bf16.xpose.msra.mxu0 0
        %2112 = vmatprep.subr.bf16.mxu0 0
        %2113 = vmatpush1.bf16.xpose.msra.mxu0 0
        %2114 = vmatprep.subr.bf16.mxu0 0
        %2115 = vmatpush1.bf16.xpose.msra.mxu0 0
        %2116 = vmatprep.subr.bf16.mxu0 0
        %2117 = vmatpush1.bf16.xpose.msra.mxu0 0
        %2118 = vmatprep.subr.bf16.mxu0 0
        %2119 = vmatpush1.bf16.xpose.msra.mxu0 0
        %2120 = vmatprep.subr.bf16.mxu0 0
        %2121 = vmatpush1.bf16.xpose.msra.mxu0 0
        %2122 = vmatprep.subr.bf16.mxu0 0
        %2123 = vmatpush1.bf16.xpose.msra.mxu0 0
        %2124 = vmatprep.subr.bf16.mxu0 0
        %2125 = vmatpush1.bf16.xpose.msra.mxu0 0
        %2126 = vmatprep.subr.bf16.mxu0 0
        %2127 = vmatpush1.bf16.xpose.msra.mxu0 0
        %2128 = vmatprep.subr.bf16.mxu0 0
        %2129 = vmatpush1.bf16.xpose.msra.mxu0 0
        %2130 = vmatprep.subr.bf16.mxu0 0
        %2131 = vmatpush1.bf16.xpose.msra.mxu0 0
        %2132 = vmatprep.subr.bf16.mxu0 0
        %2133 = vmatpush1.bf16.xpose.msra.mxu0 0
        %2134 = vmatprep.subr.bf16.mxu0 0
        %2135 = vmatpush1.bf16.xpose.msra.mxu0 0
        %2136 = vmatprep.subr.bf16.mxu0 0
        %2137 = vmatpush1.bf16.xpose.msra.mxu0 0
        %2138 = vmatprep.mubr.bf16.mxu0 0
        %2139 = vmatmul.mubr.bf16.gmra.mrb[0].mxu0 %v2101
        %v2140 = vpop.f32.mrb[0].mxu0
        %v2141 = vadd.f32 %v1080, %v2140
        %v2142 = vpop.f32.mrb[0].mxu0
        %v2143 = vpop.f32.mrb[0].mxu0
        %v2144 = vpop.f32.mrb[0].mxu0
        %2145 = vdwg.mxu0
        %2147 = vrot.lane.b32.xlu0 %v2046, 96
        %v2148 = vpop.permute.xlu0 %2147
        %v2150 = vsel %vm1196, %v2046, 0
        %v2153 = vsel %vm1196, %v2148, 0
        %2155 = vmatprep.subr.bf16.mxu0 0
        %2156 = vmatpush1.bf16.xpose.msra.mxu0 %v2153
        %2157 = vmatprep.subr.bf16.mxu0 0
        %2158 = vmatpush1.bf16.xpose.msra.mxu0 0
        %2159 = vmatprep.subr.bf16.mxu0 0
        %2160 = vmatpush1.bf16.xpose.msra.mxu0 0
        %2161 = vmatprep.subr.bf16.mxu0 0
        %2162 = vmatpush1.bf16.xpose.msra.mxu0 0
        %2163 = vmatprep.subr.bf16.mxu0 0
        %2164 = vmatpush1.bf16.xpose.msra.mxu0 0
        %2165 = vmatprep.subr.bf16.mxu0 0
        %2166 = vmatpush1.bf16.xpose.msra.mxu0 0
        %2167 = vmatprep.subr.bf16.mxu0 0
        %2168 = vmatpush1.bf16.xpose.msra.mxu0 0
        %2169 = vmatprep.subr.bf16.mxu0 0
        %2170 = vmatpush1.bf16.xpose.msra.mxu0 0
        %2171 = vmatprep.subr.bf16.mxu0 0
        %2172 = vmatpush1.bf16.xpose.msra.mxu0 0
        %2173 = vmatprep.subr.bf16.mxu0 0
        %2174 = vmatpush1.bf16.xpose.msra.mxu0 0
        %2175 = vmatprep.subr.bf16.mxu0 0
        %2176 = vmatpush1.bf16.xpose.msra.mxu0 0
        %2177 = vmatprep.subr.bf16.mxu0 0
        %2178 = vmatpush1.bf16.xpose.msra.mxu0 0
        %2179 = vmatprep.subr.bf16.mxu0 0
        %2180 = vmatpush1.bf16.xpose.msra.mxu0 0
        %2181 = vmatprep.subr.bf16.mxu0 0
        %2182 = vmatpush1.bf16.xpose.msra.mxu0 0
        %2183 = vmatprep.subr.bf16.mxu0 0
        %2184 = vmatpush1.bf16.xpose.msra.mxu0 0
        %2185 = vmatprep.subr.bf16.mxu0 0
        %2186 = vmatpush1.bf16.xpose.msra.mxu0 0
        %2187 = vmatprep.mubr.bf16.mxu0 0
        %2188 = vmatmul.mubr.bf16.gmra.mrb[0].mxu0 %v2150
        %v2189 = vpop.f32.mrb[0].mxu0
        %v2190 = vadd.f32 %v1080, %v2189
        %v2191 = vpop.f32.mrb[0].mxu0
        %v2192 = vpop.f32.mrb[0].mxu0
        %v2193 = vpop.f32.mrb[0].mxu0
        %2194 = vdwg.mxu0
        %2196 = vrot.lane.b32.xlu0 %v2047, 96
        %v2197 = vpop.permute.xlu0 %2196
        %v2199 = vsel %vm1196, %v2047, 0
        %v2202 = vsel %vm1196, %v2197, 0
        %2204 = vmatprep.subr.bf16.mxu0 0
        %2205 = vmatpush1.bf16.xpose.msra.mxu0 %v2202
        %2206 = vmatprep.subr.bf16.mxu0 0
        %2207 = vmatpush1.bf16.xpose.msra.mxu0 0
        %2208 = vmatprep.subr.bf16.mxu0 0
        %2209 = vmatpush1.bf16.xpose.msra.mxu0 0
        %2210 = vmatprep.subr.bf16.mxu0 0
        %2211 = vmatpush1.bf16.xpose.msra.mxu0 0
        %2212 = vmatprep.subr.bf16.mxu0 0
        %2213 = vmatpush1.bf16.xpose.msra.mxu0 0
        %2214 = vmatprep.subr.bf16.mxu0 0
        %2215 = vmatpush1.bf16.xpose.msra.mxu0 0
        %2216 = vmatprep.subr.bf16.mxu0 0
        %2217 = vmatpush1.bf16.xpose.msra.mxu0 0
        %2218 = vmatprep.subr.bf16.mxu0 0
        %2219 = vmatpush1.bf16.xpose.msra.mxu0 0
        %2220 = vmatprep.subr.bf16.mxu0 0
        %2221 = vmatpush1.bf16.xpose.msra.mxu0 0
        %2222 = vmatprep.subr.bf16.mxu0 0
        %2223 = vmatpush1.bf16.xpose.msra.mxu0 0
        %2224 = vmatprep.subr.bf16.mxu0 0
        %2225 = vmatpush1.bf16.xpose.msra.mxu0 0
        %2226 = vmatprep.subr.bf16.mxu0 0
        %2227 = vmatpush1.bf16.xpose.msra.mxu0 0
        %2228 = vmatprep.subr.bf16.mxu0 0
        %2229 = vmatpush1.bf16.xpose.msra.mxu0 0
        %2230 = vmatprep.subr.bf16.mxu0 0
        %2231 = vmatpush1.bf16.xpose.msra.mxu0 0
        %2232 = vmatprep.subr.bf16.mxu0 0
        %2233 = vmatpush1.bf16.xpose.msra.mxu0 0
        %2234 = vmatprep.subr.bf16.mxu0 0
        %2235 = vmatpush1.bf16.xpose.msra.mxu0 0
        %2236 = vmatprep.mubr.bf16.mxu0 0
        %2237 = vmatmul.mubr.bf16.gmra.mrb[0].mxu0 %v2199
        %v2238 = vpop.f32.mrb[0].mxu0
        %v2239 = vadd.f32 %v1080, %v2238
        %v2240 = vpop.f32.mrb[0].mxu0
        %v2241 = vpop.f32.mrb[0].mxu0
        %v2242 = vpop.f32.mrb[0].mxu0
        %2243 = vdwg.mxu0
        %v2244 = vsel %vm1196, %v2092, -inf
        %2245 = vmax.xlane.f32.xlu0 %v2244
        %v2246 = vpop.xlane.xlu0 %2245
        %v2247 = vsel %vm1196, %v2141, -inf
        %2248 = vmax.xlane.f32.xlu0 %v2247
        %v2249 = vpop.xlane.xlu0 %2248
        %v2250 = vsel %vm1196, %v2190, -inf
        %2251 = vmax.xlane.f32.xlu0 %v2250
        %v2252 = vpop.xlane.xlu0 %2251
        %v2253 = vsel %vm1196, %v2239, -inf
        %2254 = vmax.xlane.f32.xlu0 %v2253
        %v2255 = vpop.xlane.xlu0 %2254
        %v2256 = vsub.f32 %v2092, %v2246
        %v2257 = vsub.f32 %v2141, %v2249
        %v2258 = vsub.f32 %v2190, %v2252
        %v2259 = vsub.f32 %v2239, %v2255
        %v2260 = vmul.f32 %v2256, 1.442695
        %v2261 = vpow.pop %v2260
        %v2262 = vmul.f32 %v2257, 1.442695
        %v2263 = vpow.pop %v2262
        %v2264 = vmul.f32 %v2258, 1.442695
        %v2265 = vpow.pop %v2264
        %v2266 = vmul.f32 %v2259, 1.442695
        %v2267 = vpow.pop %v2266
        %v2268 = vsel %vm1196, %v2261, 0.0
        %2269 = vadd.xlane.f32.xlu0 %v2268
        %v2270 = vpop.xlane.xlu0 %2269
        %v2271 = vsel %vm1196, %v2263, 0.0
        %2272 = vadd.xlane.f32.xlu0 %v2271
        %v2273 = vpop.xlane.xlu0 %2272
        %v2274 = vsel %vm1196, %v2265, 0.0
        %2275 = vadd.xlane.f32.xlu0 %v2274
        %v2276 = vpop.xlane.xlu0 %2275
        %v2277 = vsel %vm1196, %v2267, 0.0
        %2278 = vadd.xlane.f32.xlu0 %v2277
        %v2279 = vpop.xlane.xlu0 %2278
        %v2280 = vrcp.pop %v2270
        %v2281 = vrcp.pop %v2273
        %v2282 = vrcp.pop %v2276
        %v2283 = vrcp.pop %v2279
        %v2284 = vmul.f32 %v2261, %v2280
        %v2285 = vmul.f32 %v2263, %v2281
        %v2286 = vmul.f32 %v2265, %v2282
        %v2287 = vmul.f32 %v2267, %v2283
        %v2288 = vpack.c.bf16 %v2284, %v2284
        %v2289 = vpack.c.bf16 %v2285, %v2285
        %v2290 = vpack.c.bf16 %v2286, %v2286
        %v2291 = vpack.c.bf16 %v2287, %v2287
        %2292 = vrot.lane.b32.xlu0 %v2044, 64
        %v2293 = vpop.permute.xlu0 %2292
        %v2295 = vsel %vm1196, %v2288, 0
        %v2298 = vsel %vm1443, %v2293, 0
        %2300 = vmatprep.subr.bf16.mxu0 0
        %2301 = vmatpush1.bf16.msra.mxu0 %v2298
        %2302 = vmatprep.subr.bf16.mxu0 0
        %2303 = vmatpush1.bf16.msra.mxu0 0
        %2304 = vmatprep.subr.bf16.mxu0 0
        %2305 = vmatpush1.bf16.msra.mxu0 0
        %2306 = vmatprep.subr.bf16.mxu0 0
        %2307 = vmatpush1.bf16.msra.mxu0 0
        %2308 = vmatprep.subr.bf16.mxu0 0
        %2309 = vmatpush1.bf16.msra.mxu0 0
        %2310 = vmatprep.subr.bf16.mxu0 0
        %2311 = vmatpush1.bf16.msra.mxu0 0
        %2312 = vmatprep.subr.bf16.mxu0 0
        %2313 = vmatpush1.bf16.msra.mxu0 0
        %2314 = vmatprep.subr.bf16.mxu0 0
        %2315 = vmatpush1.bf16.msra.mxu0 0
        %2316 = vmatprep.subr.bf16.mxu0 0
        %2317 = vmatpush1.bf16.msra.mxu0 0
        %2318 = vmatprep.subr.bf16.mxu0 0
        %2319 = vmatpush1.bf16.msra.mxu0 0
        %2320 = vmatprep.subr.bf16.mxu0 0
        %2321 = vmatpush1.bf16.msra.mxu0 0
        %2322 = vmatprep.subr.bf16.mxu0 0
        %2323 = vmatpush1.bf16.msra.mxu0 0
        %2324 = vmatprep.subr.bf16.mxu0 0
        %2325 = vmatpush1.bf16.msra.mxu0 0
        %2326 = vmatprep.subr.bf16.mxu0 0
        %2327 = vmatpush1.bf16.msra.mxu0 0
        %2328 = vmatprep.subr.bf16.mxu0 0
        %2329 = vmatpush1.bf16.msra.mxu0 0
        %2330 = vmatprep.subr.bf16.mxu0 0
        %2331 = vmatpush1.bf16.msra.mxu0 0
        %2332 = vmatprep.mubr.bf16.mxu0 0
        %2333 = vmatmul.mubr.bf16.gmra.mrb[0].mxu0 %v2295
        %v2334 = vpop.f32.mrb[0].mxu0
        %v2335 = vadd.f32 0.0, %v2334
        %v2336 = vpop.f32.mrb[0].mxu0
        %v2337 = vpop.f32.mrb[0].mxu0
        %v2338 = vpop.f32.mrb[0].mxu0
        %2339 = vdwg.mxu0
        %2340 = vrot.lane.b32.xlu0 %v2045, 64
        %v2341 = vpop.permute.xlu0 %2340
        %v2343 = vsel %vm1196, %v2289, 0
        %v2346 = vsel %vm1443, %v2341, 0
        %2348 = vmatprep.subr.bf16.mxu0 0
        %2349 = vmatpush1.bf16.msra.mxu0 %v2346
        %2350 = vmatprep.subr.bf16.mxu0 0
        %2351 = vmatpush1.bf16.msra.mxu0 0
        %2352 = vmatprep.subr.bf16.mxu0 0
        %2353 = vmatpush1.bf16.msra.mxu0 0
        %2354 = vmatprep.subr.bf16.mxu0 0
        %2355 = vmatpush1.bf16.msra.mxu0 0
        %2356 = vmatprep.subr.bf16.mxu0 0
        %2357 = vmatpush1.bf16.msra.mxu0 0
        %2358 = vmatprep.subr.bf16.mxu0 0
        %2359 = vmatpush1.bf16.msra.mxu0 0
        %2360 = vmatprep.subr.bf16.mxu0 0
        %2361 = vmatpush1.bf16.msra.mxu0 0
        %2362 = vmatprep.subr.bf16.mxu0 0
        %2363 = vmatpush1.bf16.msra.mxu0 0
        %2364 = vmatprep.subr.bf16.mxu0 0
        %2365 = vmatpush1.bf16.msra.mxu0 0
        %2366 = vmatprep.subr.bf16.mxu0 0
        %2367 = vmatpush1.bf16.msra.mxu0 0
        %2368 = vmatprep.subr.bf16.mxu0 0
        %2369 = vmatpush1.bf16.msra.mxu0 0
        %2370 = vmatprep.subr.bf16.mxu0 0
        %2371 = vmatpush1.bf16.msra.mxu0 0
        %2372 = vmatprep.subr.bf16.mxu0 0
        %2373 = vmatpush1.bf16.msra.mxu0 0
        %2374 = vmatprep.subr.bf16.mxu0 0
        %2375 = vmatpush1.bf16.msra.mxu0 0
        %2376 = vmatprep.subr.bf16.mxu0 0
        %2377 = vmatpush1.bf16.msra.mxu0 0
        %2378 = vmatprep.subr.bf16.mxu0 0
        %2379 = vmatpush1.bf16.msra.mxu0 0
        %2380 = vmatprep.mubr.bf16.mxu0 0
        %2381 = vmatmul.mubr.bf16.gmra.mrb[0].mxu0 %v2343
        %v2382 = vpop.f32.mrb[0].mxu0
        %v2383 = vadd.f32 0.0, %v2382
        %v2384 = vpop.f32.mrb[0].mxu0
        %v2385 = vpop.f32.mrb[0].mxu0
        %v2386 = vpop.f32.mrb[0].mxu0
        %2387 = vdwg.mxu0
        %2388 = vrot.lane.b32.xlu0 %v2046, 64
        %v2389 = vpop.permute.xlu0 %2388
        %v2391 = vsel %vm1196, %v2290, 0
        %v2394 = vsel %vm1443, %v2389, 0
        %2396 = vmatprep.subr.bf16.mxu0 0
        %2397 = vmatpush1.bf16.msra.mxu0 %v2394
        %2398 = vmatprep.subr.bf16.mxu0 0
        %2399 = vmatpush1.bf16.msra.mxu0 0
        %2400 = vmatprep.subr.bf16.mxu0 0
        %2401 = vmatpush1.bf16.msra.mxu0 0
        %2402 = vmatprep.subr.bf16.mxu0 0
        %2403 = vmatpush1.bf16.msra.mxu0 0
        %2404 = vmatprep.subr.bf16.mxu0 0
        %2405 = vmatpush1.bf16.msra.mxu0 0
        %2406 = vmatprep.subr.bf16.mxu0 0
        %2407 = vmatpush1.bf16.msra.mxu0 0
        %2408 = vmatprep.subr.bf16.mxu0 0
        %2409 = vmatpush1.bf16.msra.mxu0 0
        %2410 = vmatprep.subr.bf16.mxu0 0
        %2411 = vmatpush1.bf16.msra.mxu0 0
        %2412 = vmatprep.subr.bf16.mxu0 0
        %2413 = vmatpush1.bf16.msra.mxu0 0
        %2414 = vmatprep.subr.bf16.mxu0 0
        %2415 = vmatpush1.bf16.msra.mxu0 0
        %2416 = vmatprep.subr.bf16.mxu0 0
        %2417 = vmatpush1.bf16.msra.mxu0 0
        %2418 = vmatprep.subr.bf16.mxu0 0
        %2419 = vmatpush1.bf16.msra.mxu0 0
        %2420 = vmatprep.subr.bf16.mxu0 0
        %2421 = vmatpush1.bf16.msra.mxu0 0
        %2422 = vmatprep.subr.bf16.mxu0 0
        %2423 = vmatpush1.bf16.msra.mxu0 0
        %2424 = vmatprep.subr.bf16.mxu0 0
        %2425 = vmatpush1.bf16.msra.mxu0 0
        %2426 = vmatprep.subr.bf16.mxu0 0
        %2427 = vmatpush1.bf16.msra.mxu0 0
        %2428 = vmatprep.mubr.bf16.mxu0 0
        %2429 = vmatmul.mubr.bf16.gmra.mrb[0].mxu0 %v2391
        %v2430 = vpop.f32.mrb[0].mxu0
        %v2431 = vadd.f32 0.0, %v2430
        %v2432 = vpop.f32.mrb[0].mxu0
        %v2433 = vpop.f32.mrb[0].mxu0
        %v2434 = vpop.f32.mrb[0].mxu0
        %2435 = vdwg.mxu0
        %2436 = vrot.lane.b32.xlu0 %v2047, 64
        %v2437 = vpop.permute.xlu0 %2436
        %v2439 = vsel %vm1196, %v2291, 0
        %v2442 = vsel %vm1443, %v2437, 0
        %2444 = vmatprep.subr.bf16.mxu0 0
        %2445 = vmatpush1.bf16.msra.mxu0 %v2442
        %2446 = vmatprep.subr.bf16.mxu0 0
        %2447 = vmatpush1.bf16.msra.mxu0 0
        %2448 = vmatprep.subr.bf16.mxu0 0
        %2449 = vmatpush1.bf16.msra.mxu0 0
        %2450 = vmatprep.subr.bf16.mxu0 0
        %2451 = vmatpush1.bf16.msra.mxu0 0
        %2452 = vmatprep.subr.bf16.mxu0 0
        %2453 = vmatpush1.bf16.msra.mxu0 0
        %2454 = vmatprep.subr.bf16.mxu0 0
        %2455 = vmatpush1.bf16.msra.mxu0 0
        %2456 = vmatprep.subr.bf16.mxu0 0
        %2457 = vmatpush1.bf16.msra.mxu0 0
        %2458 = vmatprep.subr.bf16.mxu0 0
        %2459 = vmatpush1.bf16.msra.mxu0 0
        %2460 = vmatprep.subr.bf16.mxu0 0
        %2461 = vmatpush1.bf16.msra.mxu0 0
        %2462 = vmatprep.subr.bf16.mxu0 0
        %2463 = vmatpush1.bf16.msra.mxu0 0
        %2464 = vmatprep.subr.bf16.mxu0 0
        %2465 = vmatpush1.bf16.msra.mxu0 0
        %2466 = vmatprep.subr.bf16.mxu0 0
        %2467 = vmatpush1.bf16.msra.mxu0 0
        %2468 = vmatprep.subr.bf16.mxu0 0
        %2469 = vmatpush1.bf16.msra.mxu0 0
        %2470 = vmatprep.subr.bf16.mxu0 0
        %2471 = vmatpush1.bf16.msra.mxu0 0
        %2472 = vmatprep.subr.bf16.mxu0 0
        %2473 = vmatpush1.bf16.msra.mxu0 0
        %2474 = vmatprep.subr.bf16.mxu0 0
        %2475 = vmatpush1.bf16.msra.mxu0 0
        %2476 = vmatprep.mubr.bf16.mxu0 0
        %2477 = vmatmul.mubr.bf16.gmra.mrb[0].mxu0 %v2439
        %v2478 = vpop.f32.mrb[0].mxu0
        %v2479 = vadd.f32 0.0, %v2478
        %v2480 = vpop.f32.mrb[0].mxu0
        %v2481 = vpop.f32.mrb[0].mxu0
        %v2482 = vpop.f32.mrb[0].mxu0
        %2483 = vdwg.mxu0
        %2485 = vrot.lane.b32.xlu0 %v2383, 8
        %v2486 = vpop.permute.xlu0 %2485
        %2489 = vrot.lane.b32.xlu0 %v2431, 16
        %v2490 = vpop.permute.xlu0 %2489
        %2493 = vrot.lane.b32.xlu0 %v2479, 24
        %v2494 = vpop.permute.xlu0 %2493
        %v2496 = vsel %vm1196, %v2335, %v2486
        %v2497 = vsel %vm1644, %v2496, %v2490
        %v2498 = vsel %vm1646, %v2497, %v2494
        %v2499 = vpack.c.bf16 %v2498, %v2498
        %s2500 = scalar_lea.vmem %s7, 16
        %v2501 = vld [vmem:[%s2500] sm:$0xf]
        %v2502 = vld [vmem:[%s2500 + $0x4] sm:$0xf]
        %v2503 = vld [vmem:[%s2500 + $0x8] sm:$0xf]
        %v2504 = vld [vmem:[%s2500 + $0xc] sm:$0xf]
        %s2505 = scalar_lea.vmem %s8, 1
        %v2506 = vld [vmem:[%s2505] sm:$0x1]
        %v2508 = vlaneseq
        %v2509 = vshrl.u32 %v2508, 7
        %v2510 = vsub.s32 0, %v2509
        %v2511 = vrot.slane %v2506, %v2510
        %v2517 = vunpack.c.l.b16 %v2501
        %v2518 = vunpack.c.l.b16 %v2502
        %v2519 = vunpack.c.l.b16 %v2503
        %v2520 = vunpack.c.l.b16 %v2504
        %v2521 = vpack.c.b16 %v2518, %v2517
        %v2522 = vpack.c.b16 %v2520, %v2519
        %v2526 = vsel %vm1083, %v2499, 0
        %2528 = vmatprep.subr.bf16.mxu0 0
        %2529 = vmatpush1.bf16.msra.mxu0 %v2521
        %2530 = vmatprep.subr.bf16.mxu0 0
        %2531 = vmatpush1.bf16.msra.mxu0 %v2522
        %2532 = vmatprep.subr.bf16.mxu0 0
        %2533 = vmatpush1.bf16.msra.mxu0 0
        %2534 = vmatprep.subr.bf16.mxu0 0
        %2535 = vmatpush1.bf16.msra.mxu0 0
        %2536 = vmatprep.subr.bf16.mxu0 0
        %2537 = vmatpush1.bf16.msra.mxu0 0
        %2538 = vmatprep.subr.bf16.mxu0 0
        %2539 = vmatpush1.bf16.msra.mxu0 0
        %2540 = vmatprep.subr.bf16.mxu0 0
        %2541 = vmatpush1.bf16.msra.mxu0 0
        %2542 = vmatprep.subr.bf16.mxu0 0
        %2543 = vmatpush1.bf16.msra.mxu0 0
        %2544 = vmatprep.subr.bf16.mxu0 0
        %2545 = vmatpush1.bf16.msra.mxu0 0
        %2546 = vmatprep.subr.bf16.mxu0 0
        %2547 = vmatpush1.bf16.msra.mxu0 0
        %2548 = vmatprep.subr.bf16.mxu0 0
        %2549 = vmatpush1.bf16.msra.mxu0 0
        %2550 = vmatprep.subr.bf16.mxu0 0
        %2551 = vmatpush1.bf16.msra.mxu0 0
        %2552 = vmatprep.subr.bf16.mxu0 0
        %2553 = vmatpush1.bf16.msra.mxu0 0
        %2554 = vmatprep.subr.bf16.mxu0 0
        %2555 = vmatpush1.bf16.msra.mxu0 0
        %2556 = vmatprep.subr.bf16.mxu0 0
        %2557 = vmatpush1.bf16.msra.mxu0 0
        %2558 = vmatprep.subr.bf16.mxu0 0
        %2559 = vmatpush1.bf16.msra.mxu0 0
        %2560 = vmatprep.mubr.bf16.mxu0 0
        %2561 = vmatmul.mubr.bf16.gmra.mrb[0].mxu0 %v2526
        %v2562 = vpop.f32.mrb[0].mxu0
        %v2563 = vadd.f32 %v2511, %v2562
        %v2564 = vpop.f32.mrb[0].mxu0
        %v2565 = vpop.f32.mrb[0].mxu0
        %v2566 = vpop.f32.mrb[0].mxu0
        %2567 = vdwg.mxu0
        %v2568 = vadd.f32 %v1933, %v2563
        %s2569 = scalar_lea.vmem %s9, 1
        %v2570 = vld [vmem:[%s2569] sm:$0x1]
        %s2571 = scalar_lea.vmem %s10, 1
        %v2572 = vld [vmem:[%s2571] sm:$0x1]
        %v2573 = vsel %vm1083, %v2568, 0.0
        %2574 = vadd.xlane.f32.xlu0 %v2573
        %v2575 = vpop.xlane.xlu0 %2574
        %v2576 = vmul.f32 %v2575, %v1087
        %v2577 = vsub.f32 %v2568, %v2576
        %v2578 = vmul.f32 %v2577, %v2577
        %v2579 = vsel %vm1083, %v2578, 0.0
        %2580 = vadd.xlane.f32.xlu0 %v2579
        %v2581 = vpop.xlane.xlu0 %2580
        %v2582 = vmul.f32 %v2581, %v1087
        %v2583 = vadd.f32 %v2582, 1e-06
        %v2584 = vrsqrt.pop %v2583
        %v2585 = vmul.f32 %v2577, %v2584
        %v2587 = vlaneseq
        %v2588 = vshrl.u32 %v2587, 7
        %v2589 = vsub.s32 0, %v2588
        %v2590 = vrot.slane %v2570, %v2589
        %v2592 = vmul.f32 %v2585, %v2590
        %v2594 = vlaneseq
        %v2595 = vshrl.u32 %v2594, 7
        %v2596 = vsub.s32 0, %v2595
        %v2597 = vrot.slane %v2572, %v2596
        %v2599 = vadd.f32 %v2592, %v2597
        %v2600 = vpack.c.bf16 %v2599, %v2599
        %s2601 = scalar_lea.vmem %s11, 16
        %v2602 = vld [vmem:[%s2601] sm:$0xf]
        %v2603 = vld [vmem:[%s2601 + $0x4] sm:$0xf]
        %v2604 = vld [vmem:[%s2601 + $0x8] sm:$0xf]
        %v2605 = vld [vmem:[%s2601 + $0xc] sm:$0xf]
        %s2606 = scalar_lea.vmem %s12, 1
        %v2607 = vld [vmem:[%s2606] sm:$0x1]
        %v2609 = vlaneseq
        %v2610 = vshrl.u32 %v2609, 7
        %v2611 = vsub.s32 0, %v2610
        %v2612 = vrot.slane %v2607, %v2611
        %v2618 = vunpack.c.l.b16 %v2602
        %v2619 = vunpack.c.l.b16 %v2603
        %v2620 = vunpack.c.l.b16 %v2604
        %v2621 = vunpack.c.l.b16 %v2605
        %v2622 = vpack.c.b16 %v2619, %v2618
        %v2623 = vpack.c.b16 %v2621, %v2620
        %v2627 = vsel %vm1083, %v2600, 0
        %2629 = vmatprep.subr.bf16.mxu0 0
        %2630 = vmatpush1.bf16.msra.mxu0 %v2622
        %2631 = vmatprep.subr.bf16.mxu0 0
        %2632 = vmatpush1.bf16.msra.mxu0 %v2623
        %2633 = vmatprep.subr.bf16.mxu0 0
        %2634 = vmatpush1.bf16.msra.mxu0 0
        %2635 = vmatprep.subr.bf16.mxu0 0
        %2636 = vmatpush1.bf16.msra.mxu0 0
        %2637 = vmatprep.subr.bf16.mxu0 0
        %2638 = vmatpush1.bf16.msra.mxu0 0
        %2639 = vmatprep.subr.bf16.mxu0 0
        %2640 = vmatpush1.bf16.msra.mxu0 0
        %2641 = vmatprep.subr.bf16.mxu0 0
        %2642 = vmatpush1.bf16.msra.mxu0 0
        %2643 = vmatprep.subr.bf16.mxu0 0
        %2644 = vmatpush1.bf16.msra.mxu0 0
        %2645 = vmatprep.subr.bf16.mxu0 0
        %2646 = vmatpush1.bf16.msra.mxu0 0
        %2647 = vmatprep.subr.bf16.mxu0 0
        %2648 = vmatpush1.bf16.msra.mxu0 0
        %2649 = vmatprep.subr.bf16.mxu0 0
        %2650 = vmatpush1.bf16.msra.mxu0 0
        %2651 = vmatprep.subr.bf16.mxu0 0
        %2652 = vmatpush1.bf16.msra.mxu0 0
        %2653 = vmatprep.subr.bf16.mxu0 0
        %2654 = vmatpush1.bf16.msra.mxu0 0
        %2655 = vmatprep.subr.bf16.mxu0 0
        %2656 = vmatpush1.bf16.msra.mxu0 0
        %2657 = vmatprep.subr.bf16.mxu0 0
        %2658 = vmatpush1.bf16.msra.mxu0 0
        %2659 = vmatprep.subr.bf16.mxu0 0
        %2660 = vmatpush1.bf16.msra.mxu0 0
        %2661 = vmatprep.mubr.bf16.mxu0 0
        %2662 = vmatmul.mubr.bf16.gmra.mrb[0].mxu0 %v2627
        %v2663 = vpop.f32.mrb[0].mxu0
        %v2664 = vadd.f32 %v2612, %v2663
        %v2665 = vpop.f32.mrb[0].mxu0
        %v2666 = vpop.f32.mrb[0].mxu0
        %v2667 = vpop.f32.mrb[0].mxu0
        %2668 = vdwg.mxu0
        %v2669 = vmul.f32 %v2664, 0.5
        %v2670 = vmul.f32 %v2664, 0.044715
        %v2671 = vmul.f32 %v2670, %v2664
        %v2672 = vmul.f32 %v2671, %v2664
        %v2673 = vadd.f32 %v2664, %v2672
        %v2674 = vmul.f32 %v2673, 0.7978846
        %v2675 = vtanh.pop %v2674
        %v2676 = vadd.f32 %v2675, 1.0
        %v2677 = vmul.f32 %v2669, %v2676
        %v2678 = vpack.c.bf16 %v2677, %v2677
        %s2679 = scalar_lea.vmem %s13, 64
        %v2680 = vld [vmem:[%s2679] sm:$0xf]
        %v2681 = vld [vmem:[%s2679 + $0x4] sm:$0xf]
        %v2682 = vld [vmem:[%s2679 + $0x8] sm:$0xf]
        %v2683 = vld [vmem:[%s2679 + $0xc] sm:$0xf]
        %v2684 = vld [vmem:[%s2679 + $0x10] sm:$0xf]
        %v2685 = vld [vmem:[%s2679 + $0x14] sm:$0xf]
        %v2686 = vld [vmem:[%s2679 + $0x18] sm:$0xf]
        %v2687 = vld [vmem:[%s2679 + $0x1c] sm:$0xf]
        %v2688 = vld [vmem:[%s2679 + $0x20] sm:$0xf]
        %v2689 = vld [vmem:[%s2679 + $0x24] sm:$0xf]
        %v2690 = vld [vmem:[%s2679 + $0x28] sm:$0xf]
        %v2691 = vld [vmem:[%s2679 + $0x2c] sm:$0xf]
        %v2692 = vld [vmem:[%s2679 + $0x30] sm:$0xf]
        %v2693 = vld [vmem:[%s2679 + $0x34] sm:$0xf]
        %v2694 = vld [vmem:[%s2679 + $0x38] sm:$0xf]
        %v2695 = vld [vmem:[%s2679 + $0x3c] sm:$0xf]
        %s2696 = scalar_lea.vmem %s14, 1
        %v2697 = vld [vmem:[%s2696] sm:$0x1]
        %v2699 = vlaneseq
        %v2700 = vshrl.u32 %v2699, 7
        %v2701 = vsub.s32 0, %v2700
        %v2702 = vrot.slane %v2697, %v2701
        %v2720 = vunpack.c.l.b16 %v2680
        %v2721 = vunpack.c.l.b16 %v2681
        %v2722 = vunpack.c.l.b16 %v2682
        %v2723 = vunpack.c.l.b16 %v2683
        %v2724 = vunpack.c.l.b16 %v2684
        %v2725 = vunpack.c.l.b16 %v2685
        %v2726 = vunpack.c.l.b16 %v2686
        %v2727 = vunpack.c.l.b16 %v2687
        %v2728 = vunpack.c.l.b16 %v2688
        %v2729 = vunpack.c.l.b16 %v2689
        %v2730 = vunpack.c.l.b16 %v2690
        %v2731 = vunpack.c.l.b16 %v2691
        %v2732 = vunpack.c.l.b16 %v2692
        %v2733 = vunpack.c.l.b16 %v2693
        %v2734 = vunpack.c.l.b16 %v2694
        %v2735 = vunpack.c.l.b16 %v2695
        %v2736 = vpack.c.b16 %v2721, %v2720
        %v2737 = vpack.c.b16 %v2723, %v2722
        %v2738 = vpack.c.b16 %v2725, %v2724
        %v2739 = vpack.c.b16 %v2727, %v2726
        %v2740 = vpack.c.b16 %v2729, %v2728
        %v2741 = vpack.c.b16 %v2731, %v2730
        %v2742 = vpack.c.b16 %v2733, %v2732
        %v2743 = vpack.c.b16 %v2735, %v2734
        %2752 = vmatprep.subr.bf16.mxu0 0
        %2753 = vmatpush1.bf16.msra.mxu0 %v2736
        %2754 = vmatprep.subr.bf16.mxu0 0
        %2755 = vmatpush1.bf16.msra.mxu0 %v2737
        %2756 = vmatprep.subr.bf16.mxu0 0
        %2757 = vmatpush1.bf16.msra.mxu0 %v2738
        %2758 = vmatprep.subr.bf16.mxu0 0
        %2759 = vmatpush1.bf16.msra.mxu0 %v2739
        %2760 = vmatprep.subr.bf16.mxu0 0
        %2761 = vmatpush1.bf16.msra.mxu0 %v2740
        %2762 = vmatprep.subr.bf16.mxu0 0
        %2763 = vmatpush1.bf16.msra.mxu0 %v2741
        %2764 = vmatprep.subr.bf16.mxu0 0
        %2765 = vmatpush1.bf16.msra.mxu0 %v2742
        %2766 = vmatprep.subr.bf16.mxu0 0
        %2767 = vmatpush1.bf16.msra.mxu0 %v2743
        %2768 = vmatprep.subr.bf16.mxu0 0
        %2769 = vmatpush1.bf16.msra.mxu0 0
        %2770 = vmatprep.subr.bf16.mxu0 0
        %2771 = vmatpush1.bf16.msra.mxu0 0
        %2772 = vmatprep.subr.bf16.mxu0 0
        %2773 = vmatpush1.bf16.msra.mxu0 0
        %2774 = vmatprep.subr.bf16.mxu0 0
        %2775 = vmatpush1.bf16.msra.mxu0 0
        %2776 = vmatprep.subr.bf16.mxu0 0
        %2777 = vmatpush1.bf16.msra.mxu0 0
        %2778 = vmatprep.subr.bf16.mxu0 0
        %2779 = vmatpush1.bf16.msra.mxu0 0
        %2780 = vmatprep.subr.bf16.mxu0 0
        %2781 = vmatpush1.bf16.msra.mxu0 0
        %2782 = vmatprep.subr.bf16.mxu0 0
        %2783 = vmatpush1.bf16.msra.mxu0 0
        %2784 = vmatprep.mubr.bf16.mxu0 0
        %2785 = vmatmul.mubr.bf16.gmra.mrb[0].mxu0 %v2678
        %v2786 = vpop.f32.mrb[0].mxu0
        %v2787 = vadd.f32 %v2702, %v2786
        %v2788 = vpop.f32.mrb[0].mxu0
        %v2789 = vpop.f32.mrb[0].mxu0
        %v2790 = vpop.f32.mrb[0].mxu0
        %2791 = vdwg.mxu0
        %v2792 = vadd.f32 %v2568, %v2787
        %v2793 = vld [vmem:[%s15] sm:$0x1]
        %v2794 = vld [vmem:[%s16] sm:$0x1]
        %v2795 = vsel %vm1083, %v2792, 0.0
        %2796 = vadd.xlane.f32.xlu0 %v2795
        %v2797 = vpop.xlane.xlu0 %2796
        %v2798 = vmul.f32 %v2797, %v1087
        %v2799 = vsub.f32 %v2792, %v2798
        %v2800 = vmul.f32 %v2799, %v2799
        %v2801 = vsel %vm1083, %v2800, 0.0
        %2802 = vadd.xlane.f32.xlu0 %v2801
        %v2803 = vpop.xlane.xlu0 %2802
        %v2804 = vmul.f32 %v2803, %v1087
        %v2805 = vadd.f32 %v2804, 1e-06
        %v2806 = vrsqrt.pop %v2805
        %v2807 = vmul.f32 %v2799, %v2806
        %v2809 = vlaneseq
        %v2810 = vshrl.u32 %v2809, 7
        %v2811 = vsub.s32 0, %v2810
        %v2812 = vrot.slane %v2793, %v2811
        %v2814 = vmul.f32 %v2807, %v2812
        %v2816 = vlaneseq
        %v2817 = vshrl.u32 %v2816, 7
        %v2818 = vsub.s32 0, %v2817
        %v2819 = vrot.slane %v2794, %v2818
        %v2821 = vadd.f32 %v2814, %v2819
        %2822 = vst.msk [vmem:[%s541] sm:$0xff] %vm1083, %v2821
        %s2823 = sand.u32 %s401, 1
        %s2824 = scalar_lea.sflag [#allocation3], %s2823
        %s2825 = sand.u32 %s401, 1
        %s2826 = smul.addr %s2825, 8
        %s2827 = scalar_lea.vmem [#allocation2], %s2826
        // Predicated region
        $region89: #{tpu_custom_call.1} parent=87 // pred_check
          %p2828 = pneg %p411
        $region90: #{tpu_custom_call.1} parent=87 // pred_check_branch
          %2830 = sbr.rel (%p2828) target = $region92
        $region91: #{tpu_custom_call.1} parent=87 // pred_region
          %s2832 = ssub.s32 128, 128
          %2833 = vsyncadd %s2824, %s2832
          %s2834 = smul.addr %s31, 128
          %s2835 = scalar_lea.hbm %s17, %s2834
          %s2837 = sshll.u32 %s2827, 4
          %s2838 = int_to_ptr.vmem [resolvable:$true] %s2837
          %2840 = dma.vmem_to_hbm [thread:$0]  %s2838, 128, %s2835, %s2824
        $region92: #{tpu_custom_call.1} parent=87 // pred_fallthru
          _
      $region88: #{tpu_custom_call.1} parent=5 // pred_fallthru
        _
      %p2841 = scmp.le.s32.totalorder 2, %s26
      // Predicated region
      $region93: #{tpu_custom_call.1} parent=5 // pred_check
        %p2842 = pneg %p2841
      $region94: #{tpu_custom_call.1} parent=5 // pred_check_branch
        %2844 = sbr.rel (%p2842) target = $region96
      $region95: #{tpu_custom_call.1} parent=5 // pred_region
        %s2845 = ssub.s32 %s26, 2
        // Predicated region
        $region97: #{tpu_custom_call.1} parent=95 // pred_check
          %p2846 = pneg %p417
        $region98: #{tpu_custom_call.1} parent=95 // pred_check_branch
          %2848 = sbr.rel (%p2846) target = $region100
        $region99: #{tpu_custom_call.1} parent=95 // pred_region
          %s2849 = sand.u32 %s402, 1
          %s2850 = scalar_lea.sflag [#allocation3], %s2849
          %s2851 = sand.u32 %s402, 1
          %s2852 = smul.addr %s2851, 8
          %s2853 = scalar_lea.vmem [#allocation2], %s2852
          %2854 = dma.done %s2850, 128
        $region100: #{tpu_custom_call.1} parent=95 // pred_fallthru
          _
      $region96: #{tpu_custom_call.1} parent=5 // pred_fallthru
        _
    $region6: #{tpu_custom_call.1} parent=1 // loop_footer
      %s30 = sadd.s32 1, %s26
    $region7: #{tpu_custom_call.1} parent=1 // loop_footer_branch
      %25 = sbr.rel target = $region3
    $region8: #{tpu_custom_call.1} parent=1 // loop_exit
      _
    %2855 = vsyncpa [#allocation3], 1
    %s2856 = scalar_lea.sflag [#allocation3], 1
    %2857 = vsyncpa %s2856, 1

</llo_original>
